<compile_context>
chip_gen: v6e
topology: v6e:2x2x1
jax: 0.10.0
libtpu: 0.0.40
codegen_flags: <defaults>
</compile_context>

<pallas_src>
import jax
import jax.numpy as jnp
from jax.experimental import pallas as pl
from jax.experimental.pallas import tpu as pltpu

MAX_LENGTH = 10        # L : attention span / encoder length
HIDDEN = 32            # H
OUTPUT = 20            # V : vocab / output_size
OUT_PAD = 128          # lane-dense packed output width (>= V + H + L = 62)

GATE_PAD = 128         # each GRU gate group padded to a full vreg of lanes
GRU_W = 3 * GATE_PAD   # 384 : padded width of the GRU gate block
ATTN_B_OFF = 2 * GRU_W          # bias-pack offsets (all 128-aligned)
COMB_B_OFF = 2 * GRU_W + 128
OUT_B_OFF = 2 * GRU_W + 256
BIAS_W = 2 * GRU_W + 384        # 1152


def decoder_kernel(tok_ref,                       # (T,)  int32  SMEM
                   h0_ref,                        # (1, H)
                   enc_ref,                       # (L, H)
                   emb_ref,                       # (V, H)
                   w_emb_ref,                     # (H, H+L)   [comb_top | attn_top]
                   w_hid_ref,                     # (H, GRU_W+L) [w_hh gate-padded | attn_bot]
                   comb_lo_ref,                   # (H, H)     comb bottom half
                   w_ih_ref,                      # (H, GRU_W) gate-padded
                   out_w_ref,                     # (H, V)
                   bias_ref,                      # (1, BIAS_W)
                   packed_ref):                   # (T, OUT_PAD) output
    H, L, V = HIDDEN, MAX_LENGTH, OUTPUT
    T = tok_ref.shape[0]

    # ---------------- prologue: everything independent of the recurrence ----------------
    b_ih = bias_ref[:, 0:GRU_W]                                   # (1, GRU_W)
    b_hh = bias_ref[:, GRU_W:2 * GRU_W]                           # (1, GRU_W)
    attn_b = bias_ref[:, ATTN_B_OFF:ATTN_B_OFF + L]               # (1, L)
    comb_b = bias_ref[:, COMB_B_OFF:COMB_B_OFF + H]               # (1, H)
    out_b = bias_ref[:, OUT_B_OFF:OUT_B_OFF + V]                  # (1, V)

    # Fold attn_combine's attn_applied half into encoder outputs:
    #   (attn_w @ enc) @ W_lo == attn_w @ (enc @ W_lo)
    enc_comb = jnp.dot(enc_ref[...], comb_lo_ref[...],
                       preferred_element_type=jnp.float32)        # (L, H)

    # Gather all embeddings (token ids clamped -> no OOB VMEM read), then ONE
    # batched matmul for every token-dependent projection.
    emb_rows = [emb_ref[pl.ds(jnp.clip(tok_ref[t], 0, V - 1), 1), :] for t in range(T)]
    embedded_all = jnp.concatenate(emb_rows, axis=0)              # (T, H)
    # TODO(synk): nn.Dropout(p) treated as inference-mode identity (no RNG mask applied).
    emb_proj_all = jnp.dot(embedded_all, w_emb_ref[...],
                           preferred_element_type=jnp.float32)    # (T, H+L)
    emb_comb_all = emb_proj_all[:, :H] + comb_b                   # (T, H) comb-top + bias
    emb_attn_all = emb_proj_all[:, H:H + L] + attn_b              # (T, L) attn-top + bias

    # ---------------- serial recurrence, fully unrolled (T <= MAX_LENGTH) ----------------
    h = h0_ref[...]                                               # (1, H)
    h_list, attn_list = [], []
    for t in range(T):
        # hidden-dependent matmul: GRU gh (gate groups at lanes 0/128/256) + attn bottom
        hid_proj = jnp.dot(h, w_hid_ref[...],
                           preferred_element_type=jnp.float32)    # (1, GRU_W + L)

        # attention softmax (exact divide)
        scores = emb_attn_all[t:t + 1, :] + hid_proj[:, GRU_W:GRU_W + L]   # (1, L)
        scores = scores - jnp.max(scores, axis=1, keepdims=True)
        e = jnp.exp(scores)
        attn_w = e / jnp.sum(e, axis=1, keepdims=True)                     # (1, L)

        # attn_combine(cat(embedded, attn_applied)) + relu  (attn_applied folded into enc_comb)
        x = emb_comb_all[t:t + 1, :] + jnp.dot(attn_w, enc_comb,
                                               preferred_element_type=jnp.float32)
        x = jnp.maximum(x, 0.0)                                            # (1, H)

        # single-step GRU (PyTorch gate order r, z, n); gate slices on vreg boundaries
        gi = jnp.dot(x, w_ih_ref[...], preferred_element_type=jnp.float32) + b_ih
        gh = hid_proj[:, :GRU_W] + b_hh
        r = jax.nn.sigmoid(gi[:, 0:H] + gh[:, 0:H])
        z = jax.nn.sigmoid(gi[:, GATE_PAD:GATE_PAD + H] + gh[:, GATE_PAD:GATE_PAD + H])
        n = jnp.tanh(gi[:, 2 * GATE_PAD:2 * GATE_PAD + H]
                     + r * gh[:, 2 * GATE_PAD:2 * GATE_PAD + H])
        h = (1.0 - z) * n + z * h                                          # (1, H)

        h_list.append(h)
        attn_list.append(attn_w)

    # ---------------- batched epilogue: output head + single lane-dense store ------------
    h_all = jnp.concatenate(h_list, axis=0)                       # (T, H)
    attn_all = jnp.concatenate(attn_list, axis=0)                 # (T, L)
    logits = jnp.dot(h_all, out_w_ref[...],
                     preferred_element_type=jnp.float32) + out_b  # (T, V)
    m = jnp.max(logits, axis=1, keepdims=True)
    lse = jnp.log(jnp.sum(jnp.exp(logits - m), axis=1, keepdims=True)) + m
    logp = logits - lse                                           # (T, V)

    pad = jnp.zeros((T, OUT_PAD - (V + H + L)), jnp.float32)
    packed_ref[...] = jnp.concatenate([logp, h_all, attn_all, pad], axis=1)  # (T, 128)


def attn_decoder_forward(params, tokens, hidden, encoder_outputs):
    """Run the decoder over all `tokens` inside ONE un-gridded pallas_call.

    tokens:          (T,) int32 teacher-forced token ids
    hidden:          (1,1,H) or (1,H) initial hidden state
    encoder_outputs: (L, H)
    returns (log_probs (T,V), hidden_states (T,H), attn_weights (T,L))
    """
    H, L, V = HIDDEN, MAX_LENGTH, OUTPUT
    tokens = jnp.asarray(tokens, jnp.int32).reshape(-1)
    T = tokens.shape[0]

    vmem = pl.BlockSpec(memory_space=pltpu.MemorySpace.VMEM)
    smem = pl.BlockSpec(memory_space=pltpu.MemorySpace.SMEM)

    inputs = (
        tokens,
        hidden.reshape(1, H).astype(jnp.float32),
        encoder_outputs.astype(jnp.float32),
        params['emb'],
        params['w_emb_packed'],
        params['w_hid_packed'],
        params['comb_wT_lo'],
        params['w_ihT_pad'],
        params['out_wT'],
        params['bias_pack'],
    )

    packed = pl.pallas_call(
        decoder_kernel,
        out_shape=jax.ShapeDtypeStruct((T, OUT_PAD), jnp.float32),
        in_specs=[smem] + [vmem] * (len(inputs) - 1),
        out_specs=vmem,
    )(*inputs)

    log_probs = packed[:, :V]
    hidden_states = packed[:, V:V + H]
    attn_weights = packed[:, V + H:V + H + L]
    return log_probs, hidden_states, attn_weights


def decoder_step(params, token, hidden, encoder_outputs):
    """Single step with the original module signature: (1,V), (1,1,H), (1,L)."""
    tok = jnp.asarray(token, jnp.int32).reshape((1,))
    logp, hs, attnw = attn_decoder_forward(params, tok, hidden, encoder_outputs)
    return logp, hs[-1].reshape(1, 1, HIDDEN), attnw


def init_params(key):
    """Deterministic init matching the PyTorch module's parameter shapes (raw layout)."""
    H, V, L = HIDDEN, OUTPUT, MAX_LENGTH
    ks = jax.random.split(key, 11)

    def u(k, shape, bound):
        return jax.random.uniform(k, shape, jnp.float32, -bound, bound)

    b2h = (2 * H) ** -0.5
    bh = H ** -0.5
    return dict(
        emb=jax.random.normal(ks[0], (V, H), jnp.float32),   # nn.Embedding(V, H)
        attn_w=u(ks[1], (L, 2 * H), b2h),                    # nn.Linear(2H, L)
        attn_b=u(ks[2], (1, L), b2h),
        comb_w=u(ks[3], (H, 2 * H), b2h),                    # nn.Linear(2H, H)
        comb_b=u(ks[4], (1, H), b2h),
        w_ih=u(ks[5], (3 * H, H), bh),                       # GRU weight_ih_l0
        w_hh=u(ks[6], (3 * H, H), bh),                       # GRU weight_hh_l0
        b_ih=u(ks[7], (1, 3 * H), bh),
        b_hh=u(ks[8], (1, 3 * H), bh),
        out_w=u(ks[9], (V, H), bh),                          # nn.Linear(H, V)
        out_b=u(ks[10], (1, V), bh),
    )


def pack_params(raw):
    """Host-side packing: transpose, merge-by-activation, 128-align GRU gate groups,
    and fuse all five bias vectors into a single resident array."""
    H, L, V = HIDDEN, MAX_LENGTH, OUTPUT
    attn_wT = raw['attn_w'].T          # (2H, L)
    comb_wT = raw['comb_w'].T          # (2H, H)
    w_hhT = raw['w_hh'].T              # (H, 3H)
    w_ihT = raw['w_ih'].T              # (H, 3H)

    def pad_gates_w(w):                # (H, 3H) -> (H, GRU_W), gate groups at lanes 0/128/256
        out = jnp.zeros((H, GRU_W), jnp.float32)
        for g in range(3):
            out = out.at[:, g * GATE_PAD:g * GATE_PAD + H].set(w[:, g * H:(g + 1) * H])
        return out

    def pad_gates_b(b):                # (1, 3H) -> (1, GRU_W)
        out = jnp.zeros((1, GRU_W), jnp.float32)
        for g in range(3):
            out = out.at[:, g * GATE_PAD:g * GATE_PAD + H].set(b[:, g * H:(g + 1) * H])
        return out

    bias_pack = jnp.zeros((1, BIAS_W), jnp.float32)
    bias_pack = bias_pack.at[:, 0:GRU_W].set(pad_gates_b(raw['b_ih']))
    bias_pack = bias_pack.at[:, GRU_W:2 * GRU_W].set(pad_gates_b(raw['b_hh']))
    bias_pack = bias_pack.at[:, ATTN_B_OFF:ATTN_B_OFF + L].set(raw['attn_b'])
    bias_pack = bias_pack.at[:, COMB_B_OFF:COMB_B_OFF + H].set(raw['comb_b'])
    bias_pack = bias_pack.at[:, OUT_B_OFF:OUT_B_OFF + V].set(raw['out_b'])

    return dict(
        emb=raw['emb'].astype(jnp.float32),
        # embedded @ [comb_top | attn_top] -> (1, H + L)
        w_emb_packed=jnp.concatenate([comb_wT[:H], attn_wT[:H]], axis=1),
        # hidden @ [w_hh (gate-padded) | attn_bottom] -> (1, GRU_W + L)
        w_hid_packed=jnp.concatenate([pad_gates_w(w_hhT), attn_wT[H:]], axis=1),
        comb_wT_lo=comb_wT[H:],        # (H, H) multiplies attn_applied (folded into enc in-kernel)
        w_ihT_pad=pad_gates_w(w_ihT),  # (H, GRU_W)
        out_wT=raw['out_w'].T,         # (H, V)
        bias_pack=bias_pack,           # (1, BIAS_W)
    )


def reference_forward(raw, tokens, hidden0, enc):
    """Pure-JAX reference of the PyTorch Decoder.forward applied over `tokens`."""
    H = HIDDEN
    h = hidden0.reshape(1, H)
    logps, hs, attns = [], [], []
    for tok in tokens:
        emb = raw['emb'][tok][None, :]
        scores = jnp.concatenate([emb, h], axis=1) @ raw['attn_w'].T + raw['attn_b']
        attn_w = jax.nn.softmax(scores, axis=1)
        applied = attn_w @ enc
        x = jnp.concatenate([emb, applied], axis=1) @ raw['comb_w'].T + raw['comb_b']
        x = jnp.maximum(x, 0.0)
        gi = x @ raw['w_ih'].T + raw['b_ih']
        gh = h @ raw['w_hh'].T + raw['b_hh']
        r = jax.nn.sigmoid(gi[:, :H] + gh[:, :H])
        z = jax.nn.sigmoid(gi[:, H:2 * H] + gh[:, H:2 * H])
        n = jnp.tanh(gi[:, 2 * H:] + r * gh[:, 2 * H:])
        h = (1.0 - z) * n + z * h
        logits = h @ raw['out_w'].T + raw['out_b']
        logps.append(jax.nn.log_softmax(logits, axis=1))
        hs.append(h)
        attns.append(attn_w)
    return jnp.concatenate(logps), jnp.concatenate(hs), jnp.concatenate(attns)


if __name__ == "__main__":
    key = jax.random.PRNGKey(0)
    pkey, ekey, tkey = jax.random.split(key, 3)
    raw = init_params(pkey)
    params = pack_params(raw)

    encoder_outputs = jax.random.normal(ekey, (MAX_LENGTH, HIDDEN), jnp.float32)
    hidden0 = jnp.zeros((1, 1, HIDDEN), jnp.float32)                     # initHidden()
    tokens = jax.random.randint(tkey, (MAX_LENGTH,), 0, OUTPUT, jnp.int32)

    fwd = jax.jit(attn_decoder_forward)

    # Whole teacher-forced decode (MAX_LENGTH steps) in ONE kernel invocation.
    log_probs, hidden_states, attn_weights = fwd(params, tokens, hidden0, encoder_outputs)
    jax.block_until_ready((log_probs, hidden_states, attn_weights))
    assert log_probs.shape == (MAX_LENGTH, OUTPUT)
    assert hidden_states.shape == (MAX_LENGTH, HIDDEN)
    assert attn_weights.shape == (MAX_LENGTH, MAX_LENGTH)

    # Single step with the original module signature.
    lp1, h1, aw1 = decoder_step(params, tokens[0], hidden0, encoder_outputs)
    jax.block_until_ready((lp1, h1, aw1))
    assert lp1.shape == (1, OUTPUT)
    assert h1.shape == (1, 1, HIDDEN)
    assert aw1.shape == (1, MAX_LENGTH)

    # Correctness vs. pure-JAX reference (exact softmax divide -> tight tolerance).
    ref_lp, ref_h, ref_aw = reference_forward(raw, tokens, hidden0, encoder_outputs)
    for name, a, b in (("log_probs", log_probs, ref_lp),
                       ("hidden", hidden_states, ref_h),
                       ("attn_weights", attn_weights, ref_aw)):
        err = float(jnp.max(jnp.abs(a - b)))
        assert err < 1e-3, f"{name} mismatch: max abs err {err}"

    print("KERNEL_OK")
</pallas_src>

<mosaic_0001>
module attributes {stable_mosaic.version = 11 : i64} {
  func.func @decoder_kernel(%arg0: memref<10xi32, #tpu.memory_space<smem>>, %arg1: memref<1x32xf32, #tpu.memory_space<vmem>>, %arg2: memref<10x32xf32, #tpu.memory_space<vmem>>, %arg3: memref<20x32xf32, #tpu.memory_space<vmem>>, %arg4: memref<32x42xf32, #tpu.memory_space<vmem>>, %arg5: memref<32x394xf32, #tpu.memory_space<vmem>>, %arg6: memref<32x32xf32, #tpu.memory_space<vmem>>, %arg7: memref<32x384xf32, #tpu.memory_space<vmem>>, %arg8: memref<32x20xf32, #tpu.memory_space<vmem>>, %arg9: memref<1x1152xf32, #tpu.memory_space<vmem>>, %arg10: memref<10x128xf32, #tpu.memory_space<vmem>>) attributes {dimension_semantics = [], scalar_prefetch = 0 : i64, scratch_operands = 0 : i64, tpu.core_type = #tpu.core_type<tc>} {
    %c0 = arith.constant 0 : index
    %c0_0 = arith.constant 0 : index
    %0 = vector.load %arg9[%c0, %c0_0] : memref<1x1152xf32, #tpu.memory_space<vmem>>, vector<1x384xf32>
    %c0_1 = arith.constant 0 : index
    %c384 = arith.constant 384 : index
    %1 = vector.load %arg9[%c0_1, %c384] : memref<1x1152xf32, #tpu.memory_space<vmem>>, vector<1x384xf32>
    %c0_2 = arith.constant 0 : index
    %c768 = arith.constant 768 : index
    %2 = vector.load %arg9[%c0_2, %c768] : memref<1x1152xf32, #tpu.memory_space<vmem>>, vector<1x10xf32>
    %c0_3 = arith.constant 0 : index
    %c896 = arith.constant 896 : index
    %3 = vector.load %arg9[%c0_3, %c896] : memref<1x1152xf32, #tpu.memory_space<vmem>>, vector<1x32xf32>
    %c0_4 = arith.constant 0 : index
    %c1024 = arith.constant 1024 : index
    %4 = vector.load %arg9[%c0_4, %c1024] : memref<1x1152xf32, #tpu.memory_space<vmem>>, vector<1x20xf32>
    %c0_5 = arith.constant 0 : index
    %c0_6 = arith.constant 0 : index
    %5 = vector.load %arg2[%c0_5, %c0_6] : memref<10x32xf32, #tpu.memory_space<vmem>>, vector<10x32xf32>
    %c0_7 = arith.constant 0 : index
    %c0_8 = arith.constant 0 : index
    %6 = vector.load %arg6[%c0_7, %c0_8] : memref<32x32xf32, #tpu.memory_space<vmem>>, vector<32x32xf32>
    %cst = arith.constant dense<0.000000e+00> : vector<10x32xf32>
    %7 = tpu.matmul %5, %6, %cst {dimension_numbers = #tpu.dot_dimension_numbers<[1], [0], [0], [1], [0, 0, 1, 1], [], []>} : vector<10x32xf32>, vector<32x32xf32>, vector<10x32xf32> -> vector<10x32xf32>
    %c0_9 = arith.constant 0 : index
    %8 = memref.load %arg0[%c0_9] : memref<10xi32, #tpu.memory_space<smem>>
    %c0_i32 = arith.constant 0 : i32
    %c19_i32 = arith.constant 19 : i32
    %9 = arith.maxsi %c0_i32, %8 : i32
    %10 = arith.minsi %c19_i32, %9 : i32
    %11 = arith.index_cast %10 : i32 to index
    %c0_10 = arith.constant 0 : index
    %12 = vector.load %arg3[%11, %c0_10] : memref<20x32xf32, #tpu.memory_space<vmem>>, vector<1x32xf32>
    %c1 = arith.constant 1 : index
    %13 = memref.load %arg0[%c1] : memref<10xi32, #tpu.memory_space<smem>>
    %c0_i32_11 = arith.constant 0 : i32
    %c19_i32_12 = arith.constant 19 : i32
    %14 = arith.maxsi %c0_i32_11, %13 : i32
    %15 = arith.minsi %c19_i32_12, %14 : i32
    %16 = arith.index_cast %15 : i32 to index
    %c0_13 = arith.constant 0 : index
    %17 = vector.load %arg3[%16, %c0_13] : memref<20x32xf32, #tpu.memory_space<vmem>>, vector<1x32xf32>
    %c2 = arith.constant 2 : index
    %18 = memref.load %arg0[%c2] : memref<10xi32, #tpu.memory_space<smem>>
    %c0_i32_14 = arith.constant 0 : i32
    %c19_i32_15 = arith.constant 19 : i32
    %19 = arith.maxsi %c0_i32_14, %18 : i32
    %20 = arith.minsi %c19_i32_15, %19 : i32
    %21 = arith.index_cast %20 : i32 to index
    %c0_16 = arith.constant 0 : index
    %22 = vector.load %arg3[%21, %c0_16] : memref<20x32xf32, #tpu.memory_space<vmem>>, vector<1x32xf32>
    %c3 = arith.constant 3 : index
    %23 = memref.load %arg0[%c3] : memref<10xi32, #tpu.memory_space<smem>>
    %c0_i32_17 = arith.constant 0 : i32
    %c19_i32_18 = arith.constant 19 : i32
    %24 = arith.maxsi %c0_i32_17, %23 : i32
    %25 = arith.minsi %c19_i32_18, %24 : i32
    %26 = arith.index_cast %25 : i32 to index
    %c0_19 = arith.constant 0 : index
    %27 = vector.load %arg3[%26, %c0_19] : memref<20x32xf32, #tpu.memory_space<vmem>>, vector<1x32xf32>
    %c4 = arith.constant 4 : index
    %28 = memref.load %arg0[%c4] : memref<10xi32, #tpu.memory_space<smem>>
    %c0_i32_20 = arith.constant 0 : i32
    %c19_i32_21 = arith.constant 19 : i32
    %29 = arith.maxsi %c0_i32_20, %28 : i32
    %30 = arith.minsi %c19_i32_21, %29 : i32
    %31 = arith.index_cast %30 : i32 to index
    %c0_22 = arith.constant 0 : index
    %32 = vector.load %arg3[%31, %c0_22] : memref<20x32xf32, #tpu.memory_space<vmem>>, vector<1x32xf32>
    %c5 = arith.constant 5 : index
    %33 = memref.load %arg0[%c5] : memref<10xi32, #tpu.memory_space<smem>>
    %c0_i32_23 = arith.constant 0 : i32
    %c19_i32_24 = arith.constant 19 : i32
    %34 = arith.maxsi %c0_i32_23, %33 : i32
    %35 = arith.minsi %c19_i32_24, %34 : i32
    %36 = arith.index_cast %35 : i32 to index
    %c0_25 = arith.constant 0 : index
    %37 = vector.load %arg3[%36, %c0_25] : memref<20x32xf32, #tpu.memory_space<vmem>>, vector<1x32xf32>
    %c6 = arith.constant 6 : index
    %38 = memref.load %arg0[%c6] : memref<10xi32, #tpu.memory_space<smem>>
    %c0_i32_26 = arith.constant 0 : i32
    %c19_i32_27 = arith.constant 19 : i32
    %39 = arith.maxsi %c0_i32_26, %38 : i32
    %40 = arith.minsi %c19_i32_27, %39 : i32
    %41 = arith.index_cast %40 : i32 to index
    %c0_28 = arith.constant 0 : index
    %42 = vector.load %arg3[%41, %c0_28] : memref<20x32xf32, #tpu.memory_space<vmem>>, vector<1x32xf32>
    %c7 = arith.constant 7 : index
    %43 = memref.load %arg0[%c7] : memref<10xi32, #tpu.memory_space<smem>>
    %c0_i32_29 = arith.constant 0 : i32
    %c19_i32_30 = arith.constant 19 : i32
    %44 = arith.maxsi %c0_i32_29, %43 : i32
    %45 = arith.minsi %c19_i32_30, %44 : i32
    %46 = arith.index_cast %45 : i32 to index
    %c0_31 = arith.constant 0 : index
    %47 = vector.load %arg3[%46, %c0_31] : memref<20x32xf32, #tpu.memory_space<vmem>>, vector<1x32xf32>
    %c8 = arith.constant 8 : index
    %48 = memref.load %arg0[%c8] : memref<10xi32, #tpu.memory_space<smem>>
    %c0_i32_32 = arith.constant 0 : i32
    %c19_i32_33 = arith.constant 19 : i32
    %49 = arith.maxsi %c0_i32_32, %48 : i32
    %50 = arith.minsi %c19_i32_33, %49 : i32
    %51 = arith.index_cast %50 : i32 to index
    %c0_34 = arith.constant 0 : index
    %52 = vector.load %arg3[%51, %c0_34] : memref<20x32xf32, #tpu.memory_space<vmem>>, vector<1x32xf32>
    %c9 = arith.constant 9 : index
    %53 = memref.load %arg0[%c9] : memref<10xi32, #tpu.memory_space<smem>>
    %c0_i32_35 = arith.constant 0 : i32
    %c19_i32_36 = arith.constant 19 : i32
    %54 = arith.maxsi %c0_i32_35, %53 : i32
    %55 = arith.minsi %c19_i32_36, %54 : i32
    %56 = arith.index_cast %55 : i32 to index
    %c0_37 = arith.constant 0 : index
    %57 = vector.load %arg3[%56, %c0_37] : memref<20x32xf32, #tpu.memory_space<vmem>>, vector<1x32xf32>
    %58 = tpu.concatenate %12, %17, %22, %27, %32, %37, %42, %47, %52, %57 in 0 : vector<1x32xf32>, vector<1x32xf32>, vector<1x32xf32>, vector<1x32xf32>, vector<1x32xf32>, vector<1x32xf32>, vector<1x32xf32>, vector<1x32xf32>, vector<1x32xf32>, vector<1x32xf32> -> vector<10x32xf32>
    %c0_38 = arith.constant 0 : index
    %c0_39 = arith.constant 0 : index
    %59 = vector.load %arg4[%c0_38, %c0_39] : memref<32x42xf32, #tpu.memory_space<vmem>>, vector<32x42xf32>
    %cst_40 = arith.constant dense<0.000000e+00> : vector<10x42xf32>
    %60 = tpu.matmul %58, %59, %cst_40 {dimension_numbers = #tpu.dot_dimension_numbers<[1], [0], [0], [1], [0, 0, 1, 1], [], []>} : vector<10x32xf32>, vector<32x42xf32>, vector<10x42xf32> -> vector<10x42xf32>
    %61 = vector.extract_strided_slice %60 {offsets = [0, 0], sizes = [10, 32], strides = [1, 1]} : vector<10x42xf32> to vector<10x32xf32>
    %62 = vector.broadcast %3 : vector<1x32xf32> to vector<10x32xf32>
    %63 = arith.addf %61, %62 : vector<10x32xf32>
    %64 = vector.extract_strided_slice %60 {offsets = [0, 32], sizes = [10, 10], strides = [1, 1]} : vector<10x42xf32> to vector<10x10xf32>
    %65 = vector.broadcast %2 : vector<1x10xf32> to vector<10x10xf32>
    %66 = arith.addf %64, %65 : vector<10x10xf32>
    %c0_41 = arith.constant 0 : index
    %c0_42 = arith.constant 0 : index
    %67 = vector.load %arg1[%c0_41, %c0_42] : memref<1x32xf32, #tpu.memory_space<vmem>>, vector<1x32xf32>
    %c0_43 = arith.constant 0 : index
    %c0_44 = arith.constant 0 : index
    %68 = vector.load %arg5[%c0_43, %c0_44] : memref<32x394xf32, #tpu.memory_space<vmem>>, vector<32x394xf32>
    %cst_45 = arith.constant dense<0.000000e+00> : vector<1x394xf32>
    %69 = tpu.matmul %67, %68, %cst_45 {dimension_numbers = #tpu.dot_dimension_numbers<[1], [0], [0], [1], [0, 0, 1, 1], [], []>} : vector<1x32xf32>, vector<32x394xf32>, vector<1x394xf32> -> vector<1x394xf32>
    %70 = vector.extract_strided_slice %66 {offsets = [0, 0], sizes = [1, 10], strides = [1, 1]} : vector<10x10xf32> to vector<1x10xf32>
    %71 = vector.extract_strided_slice %69 {offsets = [0, 384], sizes = [1, 10], strides = [1, 1]} : vector<1x394xf32> to vector<1x10xf32>
    %72 = arith.addf %70, %71 : vector<1x10xf32>
    %cst_46 = arith.constant dense<0xFF800000> : vector<1xf32>
    %73 = vector.multi_reduction <maximumf>, %72, %cst_46 [1] : vector<1x10xf32> to vector<1xf32>
    %74 = vector.shape_cast %73 : vector<1xf32> to vector<1x1xf32>
    %75 = vector.broadcast %74 : vector<1x1xf32> to vector<1x10xf32>
    %76 = arith.subf %72, %75 : vector<1x10xf32>
    %77 = math.exp %76 : vector<1x10xf32>
    %cst_47 = arith.constant dense<0.000000e+00> : vector<1xf32>
    %78 = vector.multi_reduction <add>, %77, %cst_47 [1] : vector<1x10xf32> to vector<1xf32>
    %79 = vector.shape_cast %78 : vector<1xf32> to vector<1x1xf32>
    %80 = vector.broadcast %79 : vector<1x1xf32> to vector<1x10xf32>
    %81 = arith.divf %77, %80 : vector<1x10xf32>
    %82 = vector.extract_strided_slice %63 {offsets = [0, 0], sizes = [1, 32], strides = [1, 1]} : vector<10x32xf32> to vector<1x32xf32>
    %cst_48 = arith.constant dense<0.000000e+00> : vector<1x32xf32>
    %83 = tpu.matmul %81, %7, %cst_48 {dimension_numbers = #tpu.dot_dimension_numbers<[1], [0], [0], [1], [0, 0, 1, 1], [], []>} : vector<1x10xf32>, vector<10x32xf32>, vector<1x32xf32> -> vector<1x32xf32>
    %84 = arith.addf %82, %83 : vector<1x32xf32>
    %cst_49 = arith.constant 0.000000e+00 : f32
    %85 = vector.broadcast %cst_49 : f32 to vector<1x32xf32>
    %86 = arith.maximumf %84, %85 : vector<1x32xf32>
    %c0_50 = arith.constant 0 : index
    %c0_51 = arith.constant 0 : index
    %87 = vector.load %arg7[%c0_50, %c0_51] : memref<32x384xf32, #tpu.memory_space<vmem>>, vector<32x384xf32>
    %cst_52 = arith.constant dense<0.000000e+00> : vector<1x384xf32>
    %88 = tpu.matmul %86, %87, %cst_52 {dimension_numbers = #tpu.dot_dimension_numbers<[1], [0], [0], [1], [0, 0, 1, 1], [], []>} : vector<1x32xf32>, vector<32x384xf32>, vector<1x384xf32> -> vector<1x384xf32>
    %89 = arith.addf %88, %0 : vector<1x384xf32>
    %90 = vector.extract_strided_slice %69 {offsets = [0, 0], sizes = [1, 384], strides = [1, 1]} : vector<1x394xf32> to vector<1x384xf32>
    %91 = arith.addf %90, %1 : vector<1x384xf32>
    %92 = vector.extract_strided_slice %89 {offsets = [0, 0], sizes = [1, 32], strides = [1, 1]} : vector<1x384xf32> to vector<1x32xf32>
    %93 = vector.extract_strided_slice %91 {offsets = [0, 0], sizes = [1, 32], strides = [1, 1]} : vector<1x384xf32> to vector<1x32xf32>
    %94 = arith.addf %92, %93 : vector<1x32xf32>
    %95 = arith.negf %94 : vector<1x32xf32>
    %96 = math.exp %95 : vector<1x32xf32>
    %cst_53 = arith.constant 1.000000e+00 : f32
    %97 = vector.broadcast %cst_53 : f32 to vector<1x32xf32>
    %98 = arith.addf %97, %96 : vector<1x32xf32>
    %99 = arith.divf %97, %98 : vector<1x32xf32>
    %100 = vector.extract_strided_slice %89 {offsets = [0, 128], sizes = [1, 32], strides = [1, 1]} : vector<1x384xf32> to vector<1x32xf32>
    %101 = vector.extract_strided_slice %91 {offsets = [0, 128], sizes = [1, 32], strides = [1, 1]} : vector<1x384xf32> to vector<1x32xf32>
    %102 = arith.addf %100, %101 : vector<1x32xf32>
    %103 = arith.negf %102 : vector<1x32xf32>
    %104 = math.exp %103 : vector<1x32xf32>
    %cst_54 = arith.constant 1.000000e+00 : f32
    %105 = vector.broadcast %cst_54 : f32 to vector<1x32xf32>
    %106 = arith.addf %105, %104 : vector<1x32xf32>
    %107 = arith.divf %105, %106 : vector<1x32xf32>
    %108 = vector.extract_strided_slice %89 {offsets = [0, 256], sizes = [1, 32], strides = [1, 1]} : vector<1x384xf32> to vector<1x32xf32>
    %109 = vector.extract_strided_slice %91 {offsets = [0, 256], sizes = [1, 32], strides = [1, 1]} : vector<1x384xf32> to vector<1x32xf32>
    %110 = arith.mulf %99, %109 : vector<1x32xf32>
    %111 = arith.addf %108, %110 : vector<1x32xf32>
    %112 = math.tanh %111 : vector<1x32xf32>
    %cst_55 = arith.constant 1.000000e+00 : f32
    %113 = vector.broadcast %cst_55 : f32 to vector<1x32xf32>
    %114 = arith.subf %113, %107 : vector<1x32xf32>
    %115 = arith.mulf %114, %112 : vector<1x32xf32>
    %116 = arith.mulf %107, %67 : vector<1x32xf32>
    %117 = arith.addf %115, %116 : vector<1x32xf32>
    %c0_56 = arith.constant 0 : index
    %c0_57 = arith.constant 0 : index
    %118 = vector.load %arg5[%c0_56, %c0_57] : memref<32x394xf32, #tpu.memory_space<vmem>>, vector<32x394xf32>
    %cst_58 = arith.constant dense<0.000000e+00> : vector<1x394xf32>
    %119 = tpu.matmul %117, %118, %cst_58 {dimension_numbers = #tpu.dot_dimension_numbers<[1], [0], [0], [1], [0, 0, 1, 1], [], []>} : vector<1x32xf32>, vector<32x394xf32>, vector<1x394xf32> -> vector<1x394xf32>
    %120 = vector.extract_strided_slice %66 {offsets = [1, 0], sizes = [1, 10], strides = [1, 1]} : vector<10x10xf32> to vector<1x10xf32>
    %121 = vector.extract_strided_slice %119 {offsets = [0, 384], sizes = [1, 10], strides = [1, 1]} : vector<1x394xf32> to vector<1x10xf32>
    %122 = arith.addf %120, %121 : vector<1x10xf32>
    %cst_59 = arith.constant dense<0xFF800000> : vector<1xf32>
    %123 = vector.multi_reduction <maximumf>, %122, %cst_59 [1] : vector<1x10xf32> to vector<1xf32>
    %124 = vector.shape_cast %123 : vector<1xf32> to vector<1x1xf32>
    %125 = vector.broadcast %124 : vector<1x1xf32> to vector<1x10xf32>
    %126 = arith.subf %122, %125 : vector<1x10xf32>
    %127 = math.exp %126 : vector<1x10xf32>
    %cst_60 = arith.constant dense<0.000000e+00> : vector<1xf32>
    %128 = vector.multi_reduction <add>, %127, %cst_60 [1] : vector<1x10xf32> to vector<1xf32>
    %129 = vector.shape_cast %128 : vector<1xf32> to vector<1x1xf32>
    %130 = vector.broadcast %129 : vector<1x1xf32> to vector<1x10xf32>
    %131 = arith.divf %127, %130 : vector<1x10xf32>
    %132 = vector.extract_strided_slice %63 {offsets = [1, 0], sizes = [1, 32], strides = [1, 1]} : vector<10x32xf32> to vector<1x32xf32>
    %cst_61 = arith.constant dense<0.000000e+00> : vector<1x32xf32>
    %133 = tpu.matmul %131, %7, %cst_61 {dimension_numbers = #tpu.dot_dimension_numbers<[1], [0], [0], [1], [0, 0, 1, 1], [], []>} : vector<1x10xf32>, vector<10x32xf32>, vector<1x32xf32> -> vector<1x32xf32>
    %134 = arith.addf %132, %133 : vector<1x32xf32>
    %cst_62 = arith.constant 0.000000e+00 : f32
    %135 = vector.broadcast %cst_62 : f32 to vector<1x32xf32>
    %136 = arith.maximumf %134, %135 : vector<1x32xf32>
    %c0_63 = arith.constant 0 : index
    %c0_64 = arith.constant 0 : index
    %137 = vector.load %arg7[%c0_63, %c0_64] : memref<32x384xf32, #tpu.memory_space<vmem>>, vector<32x384xf32>
    %cst_65 = arith.constant dense<0.000000e+00> : vector<1x384xf32>
    %138 = tpu.matmul %136, %137, %cst_65 {dimension_numbers = #tpu.dot_dimension_numbers<[1], [0], [0], [1], [0, 0, 1, 1], [], []>} : vector<1x32xf32>, vector<32x384xf32>, vector<1x384xf32> -> vector<1x384xf32>
    %139 = arith.addf %138, %0 : vector<1x384xf32>
    %140 = vector.extract_strided_slice %119 {offsets = [0, 0], sizes = [1, 384], strides = [1, 1]} : vector<1x394xf32> to vector<1x384xf32>
    %141 = arith.addf %140, %1 : vector<1x384xf32>
    %142 = vector.extract_strided_slice %139 {offsets = [0, 0], sizes = [1, 32], strides = [1, 1]} : vector<1x384xf32> to vector<1x32xf32>
    %143 = vector.extract_strided_slice %141 {offsets = [0, 0], sizes = [1, 32], strides = [1, 1]} : vector<1x384xf32> to vector<1x32xf32>
    %144 = arith.addf %142, %143 : vector<1x32xf32>
    %145 = arith.negf %144 : vector<1x32xf32>
    %146 = math.exp %145 : vector<1x32xf32>
    %cst_66 = arith.constant 1.000000e+00 : f32
    %147 = vector.broadcast %cst_66 : f32 to vector<1x32xf32>
    %148 = arith.addf %147, %146 : vector<1x32xf32>
    %149 = arith.divf %147, %148 : vector<1x32xf32>
    %150 = vector.extract_strided_slice %139 {offsets = [0, 128], sizes = [1, 32], strides = [1, 1]} : vector<1x384xf32> to vector<1x32xf32>
    %151 = vector.extract_strided_slice %141 {offsets = [0, 128], sizes = [1, 32], strides = [1, 1]} : vector<1x384xf32> to vector<1x32xf32>
    %152 = arith.addf %150, %151 : vector<1x32xf32>
    %153 = arith.negf %152 : vector<1x32xf32>
    %154 = math.exp %153 : vector<1x32xf32>
    %cst_67 = arith.constant 1.000000e+00 : f32
    %155 = vector.broadcast %cst_67 : f32 to vector<1x32xf32>
    %156 = arith.addf %155, %154 : vector<1x32xf32>
    %157 = arith.divf %155, %156 : vector<1x32xf32>
    %158 = vector.extract_strided_slice %139 {offsets = [0, 256], sizes = [1, 32], strides = [1, 1]} : vector<1x384xf32> to vector<1x32xf32>
    %159 = vector.extract_strided_slice %141 {offsets = [0, 256], sizes = [1, 32], strides = [1, 1]} : vector<1x384xf32> to vector<1x32xf32>
    %160 = arith.mulf %149, %159 : vector<1x32xf32>
    %161 = arith.addf %158, %160 : vector<1x32xf32>
    %162 = math.tanh %161 : vector<1x32xf32>
    %cst_68 = arith.constant 1.000000e+00 : f32
    %163 = vector.broadcast %cst_68 : f32 to vector<1x32xf32>
    %164 = arith.subf %163, %157 : vector<1x32xf32>
    %165 = arith.mulf %164, %162 : vector<1x32xf32>
    %166 = arith.mulf %157, %117 : vector<1x32xf32>
    %167 = arith.addf %165, %166 : vector<1x32xf32>
    %c0_69 = arith.constant 0 : index
    %c0_70 = arith.constant 0 : index
    %168 = vector.load %arg5[%c0_69, %c0_70] : memref<32x394xf32, #tpu.memory_space<vmem>>, vector<32x394xf32>
    %cst_71 = arith.constant dense<0.000000e+00> : vector<1x394xf32>
    %169 = tpu.matmul %167, %168, %cst_71 {dimension_numbers = #tpu.dot_dimension_numbers<[1], [0], [0], [1], [0, 0, 1, 1], [], []>} : vector<1x32xf32>, vector<32x394xf32>, vector<1x394xf32> -> vector<1x394xf32>
    %170 = vector.extract_strided_slice %66 {offsets = [2, 0], sizes = [1, 10], strides = [1, 1]} : vector<10x10xf32> to vector<1x10xf32>
    %171 = vector.extract_strided_slice %169 {offsets = [0, 384], sizes = [1, 10], strides = [1, 1]} : vector<1x394xf32> to vector<1x10xf32>
    %172 = arith.addf %170, %171 : vector<1x10xf32>
    %cst_72 = arith.constant dense<0xFF800000> : vector<1xf32>
    %173 = vector.multi_reduction <maximumf>, %172, %cst_72 [1] : vector<1x10xf32> to vector<1xf32>
    %174 = vector.shape_cast %173 : vector<1xf32> to vector<1x1xf32>
    %175 = vector.broadcast %174 : vector<1x1xf32> to vector<1x10xf32>
    %176 = arith.subf %172, %175 : vector<1x10xf32>
    %177 = math.exp %176 : vector<1x10xf32>
    %cst_73 = arith.constant dense<0.000000e+00> : vector<1xf32>
    %178 = vector.multi_reduction <add>, %177, %cst_73 [1] : vector<1x10xf32> to vector<1xf32>
    %179 = vector.shape_cast %178 : vector<1xf32> to vector<1x1xf32>
    %180 = vector.broadcast %179 : vector<1x1xf32> to vector<1x10xf32>
    %181 = arith.divf %177, %180 : vector<1x10xf32>
    %182 = vector.extract_strided_slice %63 {offsets = [2, 0], sizes = [1, 32], strides = [1, 1]} : vector<10x32xf32> to vector<1x32xf32>
    %cst_74 = arith.constant dense<0.000000e+00> : vector<1x32xf32>
    %183 = tpu.matmul %181, %7, %cst_74 {dimension_numbers = #tpu.dot_dimension_numbers<[1], [0], [0], [1], [0, 0, 1, 1], [], []>} : vector<1x10xf32>, vector<10x32xf32>, vector<1x32xf32> -> vector<1x32xf32>
    %184 = arith.addf %182, %183 : vector<1x32xf32>
    %cst_75 = arith.constant 0.000000e+00 : f32
    %185 = vector.broadcast %cst_75 : f32 to vector<1x32xf32>
    %186 = arith.maximumf %184, %185 : vector<1x32xf32>
    %c0_76 = arith.constant 0 : index
    %c0_77 = arith.constant 0 : index
    %187 = vector.load %arg7[%c0_76, %c0_77] : memref<32x384xf32, #tpu.memory_space<vmem>>, vector<32x384xf32>
    %cst_78 = arith.constant dense<0.000000e+00> : vector<1x384xf32>
    %188 = tpu.matmul %186, %187, %cst_78 {dimension_numbers = #tpu.dot_dimension_numbers<[1], [0], [0], [1], [0, 0, 1, 1], [], []>} : vector<1x32xf32>, vector<32x384xf32>, vector<1x384xf32> -> vector<1x384xf32>
    %189 = arith.addf %188, %0 : vector<1x384xf32>
    %190 = vector.extract_strided_slice %169 {offsets = [0, 0], sizes = [1, 384], strides = [1, 1]} : vector<1x394xf32> to vector<1x384xf32>
    %191 = arith.addf %190, %1 : vector<1x384xf32>
    %192 = vector.extract_strided_slice %189 {offsets = [0, 0], sizes = [1, 32], strides = [1, 1]} : vector<1x384xf32> to vector<1x32xf32>
    %193 = vector.extract_strided_slice %191 {offsets = [0, 0], sizes = [1, 32], strides = [1, 1]} : vector<1x384xf32> to vector<1x32xf32>
    %194 = arith.addf %192, %193 : vector<1x32xf32>
    %195 = arith.negf %194 : vector<1x32xf32>
    %196 = math.exp %195 : vector<1x32xf32>
    %cst_79 = arith.constant 1.000000e+00 : f32
    %197 = vector.broadcast %cst_79 : f32 to vector<1x32xf32>
    %198 = arith.addf %197, %196 : vector<1x32xf32>
    %199 = arith.divf %197, %198 : vector<1x32xf32>
    %200 = vector.extract_strided_slice %189 {offsets = [0, 128], sizes = [1, 32], strides = [1, 1]} : vector<1x384xf32> to vector<1x32xf32>
    %201 = vector.extract_strided_slice %191 {offsets = [0, 128], sizes = [1, 32], strides = [1, 1]} : vector<1x384xf32> to vector<1x32xf32>
    %202 = arith.addf %200, %201 : vector<1x32xf32>
    %203 = arith.negf %202 : vector<1x32xf32>
    %204 = math.exp %203 : vector<1x32xf32>
    %cst_80 = arith.constant 1.000000e+00 : f32
    %205 = vector.broadcast %cst_80 : f32 to vector<1x32xf32>
    %206 = arith.addf %205, %204 : vector<1x32xf32>
    %207 = arith.divf %205, %206 : vector<1x32xf32>
    %208 = vector.extract_strided_slice %189 {offsets = [0, 256], sizes = [1, 32], strides = [1, 1]} : vector<1x384xf32> to vector<1x32xf32>
    %209 = vector.extract_strided_slice %191 {offsets = [0, 256], sizes = [1, 32], strides = [1, 1]} : vector<1x384xf32> to vector<1x32xf32>
    %210 = arith.mulf %199, %209 : vector<1x32xf32>
    %211 = arith.addf %208, %210 : vector<1x32xf32>
    %212 = math.tanh %211 : vector<1x32xf32>
    %cst_81 = arith.constant 1.000000e+00 : f32
    %213 = vector.broadcast %cst_81 : f32 to vector<1x32xf32>
    %214 = arith.subf %213, %207 : vector<1x32xf32>
    %215 = arith.mulf %214, %212 : vector<1x32xf32>
    %216 = arith.mulf %207, %167 : vector<1x32xf32>
    %217 = arith.addf %215, %216 : vector<1x32xf32>
    %c0_82 = arith.constant 0 : index
    %c0_83 = arith.constant 0 : index
    %218 = vector.load %arg5[%c0_82, %c0_83] : memref<32x394xf32, #tpu.memory_space<vmem>>, vector<32x394xf32>
    %cst_84 = arith.constant dense<0.000000e+00> : vector<1x394xf32>
    %219 = tpu.matmul %217, %218, %cst_84 {dimension_numbers = #tpu.dot_dimension_numbers<[1], [0], [0], [1], [0, 0, 1, 1], [], []>} : vector<1x32xf32>, vector<32x394xf32>, vector<1x394xf32> -> vector<1x394xf32>
    %220 = vector.extract_strided_slice %66 {offsets = [3, 0], sizes = [1, 10], strides = [1, 1]} : vector<10x10xf32> to vector<1x10xf32>
    %221 = vector.extract_strided_slice %219 {offsets = [0, 384], sizes = [1, 10], strides = [1, 1]} : vector<1x394xf32> to vector<1x10xf32>
    %222 = arith.addf %220, %221 : vector<1x10xf32>
    %cst_85 = arith.constant dense<0xFF800000> : vector<1xf32>
    %223 = vector.multi_reduction <maximumf>, %222, %cst_85 [1] : vector<1x10xf32> to vector<1xf32>
    %224 = vector.shape_cast %223 : vector<1xf32> to vector<1x1xf32>
    %225 = vector.broadcast %224 : vector<1x1xf32> to vector<1x10xf32>
    %226 = arith.subf %222, %225 : vector<1x10xf32>
    %227 = math.exp %226 : vector<1x10xf32>
    %cst_86 = arith.constant dense<0.000000e+00> : vector<1xf32>
    %228 = vector.multi_reduction <add>, %227, %cst_86 [1] : vector<1x10xf32> to vector<1xf32>
    %229 = vector.shape_cast %228 : vector<1xf32> to vector<1x1xf32>
    %230 = vector.broadcast %229 : vector<1x1xf32> to vector<1x10xf32>
    %231 = arith.divf %227, %230 : vector<1x10xf32>
    %232 = vector.extract_strided_slice %63 {offsets = [3, 0], sizes = [1, 32], strides = [1, 1]} : vector<10x32xf32> to vector<1x32xf32>
    %cst_87 = arith.constant dense<0.000000e+00> : vector<1x32xf32>
    %233 = tpu.matmul %231, %7, %cst_87 {dimension_numbers = #tpu.dot_dimension_numbers<[1], [0], [0], [1], [0, 0, 1, 1], [], []>} : vector<1x10xf32>, vector<10x32xf32>, vector<1x32xf32> -> vector<1x32xf32>
    %234 = arith.addf %232, %233 : vector<1x32xf32>
    %cst_88 = arith.constant 0.000000e+00 : f32
    %235 = vector.broadcast %cst_88 : f32 to vector<1x32xf32>
    %236 = arith.maximumf %234, %235 : vector<1x32xf32>
    %c0_89 = arith.constant 0 : index
    %c0_90 = arith.constant 0 : index
    %237 = vector.load %arg7[%c0_89, %c0_90] : memref<32x384xf32, #tpu.memory_space<vmem>>, vector<32x384xf32>
    %cst_91 = arith.constant dense<0.000000e+00> : vector<1x384xf32>
    %238 = tpu.matmul %236, %237, %cst_91 {dimension_numbers = #tpu.dot_dimension_numbers<[1], [0], [0], [1], [0, 0, 1, 1], [], []>} : vector<1x32xf32>, vector<32x384xf32>, vector<1x384xf32> -> vector<1x384xf32>
    %239 = arith.addf %238, %0 : vector<1x384xf32>
    %240 = vector.extract_strided_slice %219 {offsets = [0, 0], sizes = [1, 384], strides = [1, 1]} : vector<1x394xf32> to vector<1x384xf32>
    %241 = arith.addf %240, %1 : vector<1x384xf32>
    %242 = vector.extract_strided_slice %239 {offsets = [0, 0], sizes = [1, 32], strides = [1, 1]} : vector<1x384xf32> to vector<1x32xf32>
    %243 = vector.extract_strided_slice %241 {offsets = [0, 0], sizes = [1, 32], strides = [1, 1]} : vector<1x384xf32> to vector<1x32xf32>
    %244 = arith.addf %242, %243 : vector<1x32xf32>
    %245 = arith.negf %244 : vector<1x32xf32>
    %246 = math.exp %245 : vector<1x32xf32>
    %cst_92 = arith.constant 1.000000e+00 : f32
    %247 = vector.broadcast %cst_92 : f32 to vector<1x32xf32>
    %248 = arith.addf %247, %246 : vector<1x32xf32>
    %249 = arith.divf %247, %248 : vector<1x32xf32>
    %250 = vector.extract_strided_slice %239 {offsets = [0, 128], sizes = [1, 32], strides = [1, 1]} : vector<1x384xf32> to vector<1x32xf32>
    %251 = vector.extract_strided_slice %241 {offsets = [0, 128], sizes = [1, 32], strides = [1, 1]} : vector<1x384xf32> to vector<1x32xf32>
    %252 = arith.addf %250, %251 : vector<1x32xf32>
    %253 = arith.negf %252 : vector<1x32xf32>
    %254 = math.exp %253 : vector<1x32xf32>
    %cst_93 = arith.constant 1.000000e+00 : f32
    %255 = vector.broadcast %cst_93 : f32 to vector<1x32xf32>
    %256 = arith.addf %255, %254 : vector<1x32xf32>
    %257 = arith.divf %255, %256 : vector<1x32xf32>
    %258 = vector.extract_strided_slice %239 {offsets = [0, 256], sizes = [1, 32], strides = [1, 1]} : vector<1x384xf32> to vector<1x32xf32>
    %259 = vector.extract_strided_slice %241 {offsets = [0, 256], sizes = [1, 32], strides = [1, 1]} : vector<1x384xf32> to vector<1x32xf32>
    %260 = arith.mulf %249, %259 : vector<1x32xf32>
    %261 = arith.addf %258, %260 : vector<1x32xf32>
    %262 = math.tanh %261 : vector<1x32xf32>
    %cst_94 = arith.constant 1.000000e+00 : f32
    %263 = vector.broadcast %cst_94 : f32 to vector<1x32xf32>
    %264 = arith.subf %263, %257 : vector<1x32xf32>
    %265 = arith.mulf %264, %262 : vector<1x32xf32>
    %266 = arith.mulf %257, %217 : vector<1x32xf32>
    %267 = arith.addf %265, %266 : vector<1x32xf32>
    %c0_95 = arith.constant 0 : index
    %c0_96 = arith.constant 0 : index
    %268 = vector.load %arg5[%c0_95, %c0_96] : memref<32x394xf32, #tpu.memory_space<vmem>>, vector<32x394xf32>
    %cst_97 = arith.constant dense<0.000000e+00> : vector<1x394xf32>
    %269 = tpu.matmul %267, %268, %cst_97 {dimension_numbers = #tpu.dot_dimension_numbers<[1], [0], [0], [1], [0, 0, 1, 1], [], []>} : vector<1x32xf32>, vector<32x394xf32>, vector<1x394xf32> -> vector<1x394xf32>
    %270 = vector.extract_strided_slice %66 {offsets = [4, 0], sizes = [1, 10], strides = [1, 1]} : vector<10x10xf32> to vector<1x10xf32>
    %271 = vector.extract_strided_slice %269 {offsets = [0, 384], sizes = [1, 10], strides = [1, 1]} : vector<1x394xf32> to vector<1x10xf32>
    %272 = arith.addf %270, %271 : vector<1x10xf32>
    %cst_98 = arith.constant dense<0xFF800000> : vector<1xf32>
    %273 = vector.multi_reduction <maximumf>, %272, %cst_98 [1] : vector<1x10xf32> to vector<1xf32>
    %274 = vector.shape_cast %273 : vector<1xf32> to vector<1x1xf32>
    %275 = vector.broadcast %274 : vector<1x1xf32> to vector<1x10xf32>
    %276 = arith.subf %272, %275 : vector<1x10xf32>
    %277 = math.exp %276 : vector<1x10xf32>
    %cst_99 = arith.constant dense<0.000000e+00> : vector<1xf32>
    %278 = vector.multi_reduction <add>, %277, %cst_99 [1] : vector<1x10xf32> to vector<1xf32>
    %279 = vector.shape_cast %278 : vector<1xf32> to vector<1x1xf32>
    %280 = vector.broadcast %279 : vector<1x1xf32> to vector<1x10xf32>
    %281 = arith.divf %277, %280 : vector<1x10xf32>
    %282 = vector.extract_strided_slice %63 {offsets = [4, 0], sizes = [1, 32], strides = [1, 1]} : vector<10x32xf32> to vector<1x32xf32>
    %cst_100 = arith.constant dense<0.000000e+00> : vector<1x32xf32>
    %283 = tpu.matmul %281, %7, %cst_100 {dimension_numbers = #tpu.dot_dimension_numbers<[1], [0], [0], [1], [0, 0, 1, 1], [], []>} : vector<1x10xf32>, vector<10x32xf32>, vector<1x32xf32> -> vector<1x32xf32>
    %284 = arith.addf %282, %283 : vector<1x32xf32>
    %cst_101 = arith.constant 0.000000e+00 : f32
    %285 = vector.broadcast %cst_101 : f32 to vector<1x32xf32>
    %286 = arith.maximumf %284, %285 : vector<1x32xf32>
    %c0_102 = arith.constant 0 : index
    %c0_103 = arith.constant 0 : index
    %287 = vector.load %arg7[%c0_102, %c0_103] : memref<32x384xf32, #tpu.memory_space<vmem>>, vector<32x384xf32>
    %cst_104 = arith.constant dense<0.000000e+00> : vector<1x384xf32>
    %288 = tpu.matmul %286, %287, %cst_104 {dimension_numbers = #tpu.dot_dimension_numbers<[1], [0], [0], [1], [0, 0, 1, 1], [], []>} : vector<1x32xf32>, vector<32x384xf32>, vector<1x384xf32> -> vector<1x384xf32>
    %289 = arith.addf %288, %0 : vector<1x384xf32>
    %290 = vector.extract_strided_slice %269 {offsets = [0, 0], sizes = [1, 384], strides = [1, 1]} : vector<1x394xf32> to vector<1x384xf32>
    %291 = arith.addf %290, %1 : vector<1x384xf32>
    %292 = vector.extract_strided_slice %289 {offsets = [0, 0], sizes = [1, 32], strides = [1, 1]} : vector<1x384xf32> to vector<1x32xf32>
    %293 = vector.extract_strided_slice %291 {offsets = [0, 0], sizes = [1, 32], strides = [1, 1]} : vector<1x384xf32> to vector<1x32xf32>
    %294 = arith.addf %292, %293 : vector<1x32xf32>
    %295 = arith.negf %294 : vector<1x32xf32>
    %296 = math.exp %295 : vector<1x32xf32>
    %cst_105 = arith.constant 1.000000e+00 : f32
    %297 = vector.broadcast %cst_105 : f32 to vector<1x32xf32>
    %298 = arith.addf %297, %296 : vector<1x32xf32>
    %299 = arith.divf %297, %298 : vector<1x32xf32>
    %300 = vector.extract_strided_slice %289 {offsets = [0, 128], sizes = [1, 32], strides = [1, 1]} : vector<1x384xf32> to vector<1x32xf32>
    %301 = vector.extract_strided_slice %291 {offsets = [0, 128], sizes = [1, 32], strides = [1, 1]} : vector<1x384xf32> to vector<1x32xf32>
    %302 = arith.addf %300, %301 : vector<1x32xf32>
    %303 = arith.negf %302 : vector<1x32xf32>
    %304 = math.exp %303 : vector<1x32xf32>
    %cst_106 = arith.constant 1.000000e+00 : f32
    %305 = vector.broadcast %cst_106 : f32 to vector<1x32xf32>
    %306 = arith.addf %305, %304 : vector<1x32xf32>
    %307 = arith.divf %305, %306 : vector<1x32xf32>
    %308 = vector.extract_strided_slice %289 {offsets = [0, 256], sizes = [1, 32], strides = [1, 1]} : vector<1x384xf32> to vector<1x32xf32>
    %309 = vector.extract_strided_slice %291 {offsets = [0, 256], sizes = [1, 32], strides = [1, 1]} : vector<1x384xf32> to vector<1x32xf32>
    %310 = arith.mulf %299, %309 : vector<1x32xf32>
    %311 = arith.addf %308, %310 : vector<1x32xf32>
    %312 = math.tanh %311 : vector<1x32xf32>
    %cst_107 = arith.constant 1.000000e+00 : f32
    %313 = vector.broadcast %cst_107 : f32 to vector<1x32xf32>
    %314 = arith.subf %313, %307 : vector<1x32xf32>
    %315 = arith.mulf %314, %312 : vector<1x32xf32>
    %316 = arith.mulf %307, %267 : vector<1x32xf32>
    %317 = arith.addf %315, %316 : vector<1x32xf32>
    %c0_108 = arith.constant 0 : index
    %c0_109 = arith.constant 0 : index
    %318 = vector.load %arg5[%c0_108, %c0_109] : memref<32x394xf32, #tpu.memory_space<vmem>>, vector<32x394xf32>
    %cst_110 = arith.constant dense<0.000000e+00> : vector<1x394xf32>
    %319 = tpu.matmul %317, %318, %cst_110 {dimension_numbers = #tpu.dot_dimension_numbers<[1], [0], [0], [1], [0, 0, 1, 1], [], []>} : vector<1x32xf32>, vector<32x394xf32>, vector<1x394xf32> -> vector<1x394xf32>
    %320 = vector.extract_strided_slice %66 {offsets = [5, 0], sizes = [1, 10], strides = [1, 1]} : vector<10x10xf32> to vector<1x10xf32>
    %321 = vector.extract_strided_slice %319 {offsets = [0, 384], sizes = [1, 10], strides = [1, 1]} : vector<1x394xf32> to vector<1x10xf32>
    %322 = arith.addf %320, %321 : vector<1x10xf32>
    %cst_111 = arith.constant dense<0xFF800000> : vector<1xf32>
    %323 = vector.multi_reduction <maximumf>, %322, %cst_111 [1] : vector<1x10xf32> to vector<1xf32>
    %324 = vector.shape_cast %323 : vector<1xf32> to vector<1x1xf32>
    %325 = vector.broadcast %324 : vector<1x1xf32> to vector<1x10xf32>
    %326 = arith.subf %322, %325 : vector<1x10xf32>
    %327 = math.exp %326 : vector<1x10xf32>
    %cst_112 = arith.constant dense<0.000000e+00> : vector<1xf32>
    %328 = vector.multi_reduction <add>, %327, %cst_112 [1] : vector<1x10xf32> to vector<1xf32>
    %329 = vector.shape_cast %328 : vector<1xf32> to vector<1x1xf32>
    %330 = vector.broadcast %329 : vector<1x1xf32> to vector<1x10xf32>
    %331 = arith.divf %327, %330 : vector<1x10xf32>
    %332 = vector.extract_strided_slice %63 {offsets = [5, 0], sizes = [1, 32], strides = [1, 1]} : vector<10x32xf32> to vector<1x32xf32>
    %cst_113 = arith.constant dense<0.000000e+00> : vector<1x32xf32>
    %333 = tpu.matmul %331, %7, %cst_113 {dimension_numbers = #tpu.dot_dimension_numbers<[1], [0], [0], [1], [0, 0, 1, 1], [], []>} : vector<1x10xf32>, vector<10x32xf32>, vector<1x32xf32> -> vector<1x32xf32>
    %334 = arith.addf %332, %333 : vector<1x32xf32>
    %cst_114 = arith.constant 0.000000e+00 : f32
    %335 = vector.broadcast %cst_114 : f32 to vector<1x32xf32>
    %336 = arith.maximumf %334, %335 : vector<1x32xf32>
    %c0_115 = arith.constant 0 : index
    %c0_116 = arith.constant 0 : index
    %337 = vector.load %arg7[%c0_115, %c0_116] : memref<32x384xf32, #tpu.memory_space<vmem>>, vector<32x384xf32>
    %cst_117 = arith.constant dense<0.000000e+00> : vector<1x384xf32>
    %338 = tpu.matmul %336, %337, %cst_117 {dimension_numbers = #tpu.dot_dimension_numbers<[1], [0], [0], [1], [0, 0, 1, 1], [], []>} : vector<1x32xf32>, vector<32x384xf32>, vector<1x384xf32> -> vector<1x384xf32>
    %339 = arith.addf %338, %0 : vector<1x384xf32>
    %340 = vector.extract_strided_slice %319 {offsets = [0, 0], sizes = [1, 384], strides = [1, 1]} : vector<1x394xf32> to vector<1x384xf32>
    %341 = arith.addf %340, %1 : vector<1x384xf32>
    %342 = vector.extract_strided_slice %339 {offsets = [0, 0], sizes = [1, 32], strides = [1, 1]} : vector<1x384xf32> to vector<1x32xf32>
    %343 = vector.extract_strided_slice %341 {offsets = [0, 0], sizes = [1, 32], strides = [1, 1]} : vector<1x384xf32> to vector<1x32xf32>
    %344 = arith.addf %342, %343 : vector<1x32xf32>
    %345 = arith.negf %344 : vector<1x32xf32>
    %346 = math.exp %345 : vector<1x32xf32>
    %cst_118 = arith.constant 1.000000e+00 : f32
    %347 = vector.broadcast %cst_118 : f32 to vector<1x32xf32>
    %348 = arith.addf %347, %346 : vector<1x32xf32>
    %349 = arith.divf %347, %348 : vector<1x32xf32>
    %350 = vector.extract_strided_slice %339 {offsets = [0, 128], sizes = [1, 32], strides = [1, 1]} : vector<1x384xf32> to vector<1x32xf32>
    %351 = vector.extract_strided_slice %341 {offsets = [0, 128], sizes = [1, 32], strides = [1, 1]} : vector<1x384xf32> to vector<1x32xf32>
    %352 = arith.addf %350, %351 : vector<1x32xf32>
    %353 = arith.negf %352 : vector<1x32xf32>
    %354 = math.exp %353 : vector<1x32xf32>
    %cst_119 = arith.constant 1.000000e+00 : f32
    %355 = vector.broadcast %cst_119 : f32 to vector<1x32xf32>
    %356 = arith.addf %355, %354 : vector<1x32xf32>
    %357 = arith.divf %355, %356 : vector<1x32xf32>
    %358 = vector.extract_strided_slice %339 {offsets = [0, 256], sizes = [1, 32], strides = [1, 1]} : vector<1x384xf32> to vector<1x32xf32>
    %359 = vector.extract_strided_slice %341 {offsets = [0, 256], sizes = [1, 32], strides = [1, 1]} : vector<1x384xf32> to vector<1x32xf32>
    %360 = arith.mulf %349, %359 : vector<1x32xf32>
    %361 = arith.addf %358, %360 : vector<1x32xf32>
    %362 = math.tanh %361 : vector<1x32xf32>
    %cst_120 = arith.constant 1.000000e+00 : f32
    %363 = vector.broadcast %cst_120 : f32 to vector<1x32xf32>
    %364 = arith.subf %363, %357 : vector<1x32xf32>
    %365 = arith.mulf %364, %362 : vector<1x32xf32>
    %366 = arith.mulf %357, %317 : vector<1x32xf32>
    %367 = arith.addf %365, %366 : vector<1x32xf32>
    %c0_121 = arith.constant 0 : index
    %c0_122 = arith.constant 0 : index
    %368 = vector.load %arg5[%c0_121, %c0_122] : memref<32x394xf32, #tpu.memory_space<vmem>>, vector<32x394xf32>
    %cst_123 = arith.constant dense<0.000000e+00> : vector<1x394xf32>
    %369 = tpu.matmul %367, %368, %cst_123 {dimension_numbers = #tpu.dot_dimension_numbers<[1], [0], [0], [1], [0, 0, 1, 1], [], []>} : vector<1x32xf32>, vector<32x394xf32>, vector<1x394xf32> -> vector<1x394xf32>
    %370 = vector.extract_strided_slice %66 {offsets = [6, 0], sizes = [1, 10], strides = [1, 1]} : vector<10x10xf32> to vector<1x10xf32>
    %371 = vector.extract_strided_slice %369 {offsets = [0, 384], sizes = [1, 10], strides = [1, 1]} : vector<1x394xf32> to vector<1x10xf32>
    %372 = arith.addf %370, %371 : vector<1x10xf32>
    %cst_124 = arith.constant dense<0xFF800000> : vector<1xf32>
    %373 = vector.multi_reduction <maximumf>, %372, %cst_124 [1] : vector<1x10xf32> to vector<1xf32>
    %374 = vector.shape_cast %373 : vector<1xf32> to vector<1x1xf32>
    %375 = vector.broadcast %374 : vector<1x1xf32> to vector<1x10xf32>
    %376 = arith.subf %372, %375 : vector<1x10xf32>
    %377 = math.exp %376 : vector<1x10xf32>
    %cst_125 = arith.constant dense<0.000000e+00> : vector<1xf32>
    %378 = vector.multi_reduction <add>, %377, %cst_125 [1] : vector<1x10xf32> to vector<1xf32>
    %379 = vector.shape_cast %378 : vector<1xf32> to vector<1x1xf32>
    %380 = vector.broadcast %379 : vector<1x1xf32> to vector<1x10xf32>
    %381 = arith.divf %377, %380 : vector<1x10xf32>
    %382 = vector.extract_strided_slice %63 {offsets = [6, 0], sizes = [1, 32], strides = [1, 1]} : vector<10x32xf32> to vector<1x32xf32>
    %cst_126 = arith.constant dense<0.000000e+00> : vector<1x32xf32>
    %383 = tpu.matmul %381, %7, %cst_126 {dimension_numbers = #tpu.dot_dimension_numbers<[1], [0], [0], [1], [0, 0, 1, 1], [], []>} : vector<1x10xf32>, vector<10x32xf32>, vector<1x32xf32> -> vector<1x32xf32>
    %384 = arith.addf %382, %383 : vector<1x32xf32>
    %cst_127 = arith.constant 0.000000e+00 : f32
    %385 = vector.broadcast %cst_127 : f32 to vector<1x32xf32>
    %386 = arith.maximumf %384, %385 : vector<1x32xf32>
    %c0_128 = arith.constant 0 : index
    %c0_129 = arith.constant 0 : index
    %387 = vector.load %arg7[%c0_128, %c0_129] : memref<32x384xf32, #tpu.memory_space<vmem>>, vector<32x384xf32>
    %cst_130 = arith.constant dense<0.000000e+00> : vector<1x384xf32>
    %388 = tpu.matmul %386, %387, %cst_130 {dimension_numbers = #tpu.dot_dimension_numbers<[1], [0], [0], [1], [0, 0, 1, 1], [], []>} : vector<1x32xf32>, vector<32x384xf32>, vector<1x384xf32> -> vector<1x384xf32>
    %389 = arith.addf %388, %0 : vector<1x384xf32>
    %390 = vector.extract_strided_slice %369 {offsets = [0, 0], sizes = [1, 384], strides = [1, 1]} : vector<1x394xf32> to vector<1x384xf32>
    %391 = arith.addf %390, %1 : vector<1x384xf32>
    %392 = vector.extract_strided_slice %389 {offsets = [0, 0], sizes = [1, 32], strides = [1, 1]} : vector<1x384xf32> to vector<1x32xf32>
    %393 = vector.extract_strided_slice %391 {offsets = [0, 0], sizes = [1, 32], strides = [1, 1]} : vector<1x384xf32> to vector<1x32xf32>
    %394 = arith.addf %392, %393 : vector<1x32xf32>
    %395 = arith.negf %394 : vector<1x32xf32>
    %396 = math.exp %395 : vector<1x32xf32>
    %cst_131 = arith.constant 1.000000e+00 : f32
    %397 = vector.broadcast %cst_131 : f32 to vector<1x32xf32>
    %398 = arith.addf %397, %396 : vector<1x32xf32>
    %399 = arith.divf %397, %398 : vector<1x32xf32>
    %400 = vector.extract_strided_slice %389 {offsets = [0, 128], sizes = [1, 32], strides = [1, 1]} : vector<1x384xf32> to vector<1x32xf32>
    %401 = vector.extract_strided_slice %391 {offsets = [0, 128], sizes = [1, 32], strides = [1, 1]} : vector<1x384xf32> to vector<1x32xf32>
    %402 = arith.addf %400, %401 : vector<1x32xf32>
    %403 = arith.negf %402 : vector<1x32xf32>
    %404 = math.exp %403 : vector<1x32xf32>
    %cst_132 = arith.constant 1.000000e+00 : f32
    %405 = vector.broadcast %cst_132 : f32 to vector<1x32xf32>
    %406 = arith.addf %405, %404 : vector<1x32xf32>
    %407 = arith.divf %405, %406 : vector<1x32xf32>
    %408 = vector.extract_strided_slice %389 {offsets = [0, 256], sizes = [1, 32], strides = [1, 1]} : vector<1x384xf32> to vector<1x32xf32>
    %409 = vector.extract_strided_slice %391 {offsets = [0, 256], sizes = [1, 32], strides = [1, 1]} : vector<1x384xf32> to vector<1x32xf32>
    %410 = arith.mulf %399, %409 : vector<1x32xf32>
    %411 = arith.addf %408, %410 : vector<1x32xf32>
    %412 = math.tanh %411 : vector<1x32xf32>
    %cst_133 = arith.constant 1.000000e+00 : f32
    %413 = vector.broadcast %cst_133 : f32 to vector<1x32xf32>
    %414 = arith.subf %413, %407 : vector<1x32xf32>
    %415 = arith.mulf %414, %412 : vector<1x32xf32>
    %416 = arith.mulf %407, %367 : vector<1x32xf32>
    %417 = arith.addf %415, %416 : vector<1x32xf32>
    %c0_134 = arith.constant 0 : index
    %c0_135 = arith.constant 0 : index
    %418 = vector.load %arg5[%c0_134, %c0_135] : memref<32x394xf32, #tpu.memory_space<vmem>>, vector<32x394xf32>
    %cst_136 = arith.constant dense<0.000000e+00> : vector<1x394xf32>
    %419 = tpu.matmul %417, %418, %cst_136 {dimension_numbers = #tpu.dot_dimension_numbers<[1], [0], [0], [1], [0, 0, 1, 1], [], []>} : vector<1x32xf32>, vector<32x394xf32>, vector<1x394xf32> -> vector<1x394xf32>
    %420 = vector.extract_strided_slice %66 {offsets = [7, 0], sizes = [1, 10], strides = [1, 1]} : vector<10x10xf32> to vector<1x10xf32>
    %421 = vector.extract_strided_slice %419 {offsets = [0, 384], sizes = [1, 10], strides = [1, 1]} : vector<1x394xf32> to vector<1x10xf32>
    %422 = arith.addf %420, %421 : vector<1x10xf32>
    %cst_137 = arith.constant dense<0xFF800000> : vector<1xf32>
    %423 = vector.multi_reduction <maximumf>, %422, %cst_137 [1] : vector<1x10xf32> to vector<1xf32>
    %424 = vector.shape_cast %423 : vector<1xf32> to vector<1x1xf32>
    %425 = vector.broadcast %424 : vector<1x1xf32> to vector<1x10xf32>
    %426 = arith.subf %422, %425 : vector<1x10xf32>
    %427 = math.exp %426 : vector<1x10xf32>
    %cst_138 = arith.constant dense<0.000000e+00> : vector<1xf32>
    %428 = vector.multi_reduction <add>, %427, %cst_138 [1] : vector<1x10xf32> to vector<1xf32>
    %429 = vector.shape_cast %428 : vector<1xf32> to vector<1x1xf32>
    %430 = vector.broadcast %429 : vector<1x1xf32> to vector<1x10xf32>
    %431 = arith.divf %427, %430 : vector<1x10xf32>
    %432 = vector.extract_strided_slice %63 {offsets = [7, 0], sizes = [1, 32], strides = [1, 1]} : vector<10x32xf32> to vector<1x32xf32>
    %cst_139 = arith.constant dense<0.000000e+00> : vector<1x32xf32>
    %433 = tpu.matmul %431, %7, %cst_139 {dimension_numbers = #tpu.dot_dimension_numbers<[1], [0], [0], [1], [0, 0, 1, 1], [], []>} : vector<1x10xf32>, vector<10x32xf32>, vector<1x32xf32> -> vector<1x32xf32>
    %434 = arith.addf %432, %433 : vector<1x32xf32>
    %cst_140 = arith.constant 0.000000e+00 : f32
    %435 = vector.broadcast %cst_140 : f32 to vector<1x32xf32>
    %436 = arith.maximumf %434, %435 : vector<1x32xf32>
    %c0_141 = arith.constant 0 : index
    %c0_142 = arith.constant 0 : index
    %437 = vector.load %arg7[%c0_141, %c0_142] : memref<32x384xf32, #tpu.memory_space<vmem>>, vector<32x384xf32>
    %cst_143 = arith.constant dense<0.000000e+00> : vector<1x384xf32>
    %438 = tpu.matmul %436, %437, %cst_143 {dimension_numbers = #tpu.dot_dimension_numbers<[1], [0], [0], [1], [0, 0, 1, 1], [], []>} : vector<1x32xf32>, vector<32x384xf32>, vector<1x384xf32> -> vector<1x384xf32>
    %439 = arith.addf %438, %0 : vector<1x384xf32>
    %440 = vector.extract_strided_slice %419 {offsets = [0, 0], sizes = [1, 384], strides = [1, 1]} : vector<1x394xf32> to vector<1x384xf32>
    %441 = arith.addf %440, %1 : vector<1x384xf32>
    %442 = vector.extract_strided_slice %439 {offsets = [0, 0], sizes = [1, 32], strides = [1, 1]} : vector<1x384xf32> to vector<1x32xf32>
    %443 = vector.extract_strided_slice %441 {offsets = [0, 0], sizes = [1, 32], strides = [1, 1]} : vector<1x384xf32> to vector<1x32xf32>
    %444 = arith.addf %442, %443 : vector<1x32xf32>
    %445 = arith.negf %444 : vector<1x32xf32>
    %446 = math.exp %445 : vector<1x32xf32>
    %cst_144 = arith.constant 1.000000e+00 : f32
    %447 = vector.broadcast %cst_144 : f32 to vector<1x32xf32>
    %448 = arith.addf %447, %446 : vector<1x32xf32>
    %449 = arith.divf %447, %448 : vector<1x32xf32>
    %450 = vector.extract_strided_slice %439 {offsets = [0, 128], sizes = [1, 32], strides = [1, 1]} : vector<1x384xf32> to vector<1x32xf32>
    %451 = vector.extract_strided_slice %441 {offsets = [0, 128], sizes = [1, 32], strides = [1, 1]} : vector<1x384xf32> to vector<1x32xf32>
    %452 = arith.addf %450, %451 : vector<1x32xf32>
    %453 = arith.negf %452 : vector<1x32xf32>
    %454 = math.exp %453 : vector<1x32xf32>
    %cst_145 = arith.constant 1.000000e+00 : f32
    %455 = vector.broadcast %cst_145 : f32 to vector<1x32xf32>
    %456 = arith.addf %455, %454 : vector<1x32xf32>
    %457 = arith.divf %455, %456 : vector<1x32xf32>
    %458 = vector.extract_strided_slice %439 {offsets = [0, 256], sizes = [1, 32], strides = [1, 1]} : vector<1x384xf32> to vector<1x32xf32>
    %459 = vector.extract_strided_slice %441 {offsets = [0, 256], sizes = [1, 32], strides = [1, 1]} : vector<1x384xf32> to vector<1x32xf32>
    %460 = arith.mulf %449, %459 : vector<1x32xf32>
    %461 = arith.addf %458, %460 : vector<1x32xf32>
    %462 = math.tanh %461 : vector<1x32xf32>
    %cst_146 = arith.constant 1.000000e+00 : f32
    %463 = vector.broadcast %cst_146 : f32 to vector<1x32xf32>
    %464 = arith.subf %463, %457 : vector<1x32xf32>
    %465 = arith.mulf %464, %462 : vector<1x32xf32>
    %466 = arith.mulf %457, %417 : vector<1x32xf32>
    %467 = arith.addf %465, %466 : vector<1x32xf32>
    %c0_147 = arith.constant 0 : index
    %c0_148 = arith.constant 0 : index
    %468 = vector.load %arg5[%c0_147, %c0_148] : memref<32x394xf32, #tpu.memory_space<vmem>>, vector<32x394xf32>
    %cst_149 = arith.constant dense<0.000000e+00> : vector<1x394xf32>
    %469 = tpu.matmul %467, %468, %cst_149 {dimension_numbers = #tpu.dot_dimension_numbers<[1], [0], [0], [1], [0, 0, 1, 1], [], []>} : vector<1x32xf32>, vector<32x394xf32>, vector<1x394xf32> -> vector<1x394xf32>
    %470 = vector.extract_strided_slice %66 {offsets = [8, 0], sizes = [1, 10], strides = [1, 1]} : vector<10x10xf32> to vector<1x10xf32>
    %471 = vector.extract_strided_slice %469 {offsets = [0, 384], sizes = [1, 10], strides = [1, 1]} : vector<1x394xf32> to vector<1x10xf32>
    %472 = arith.addf %470, %471 : vector<1x10xf32>
    %cst_150 = arith.constant dense<0xFF800000> : vector<1xf32>
    %473 = vector.multi_reduction <maximumf>, %472, %cst_150 [1] : vector<1x10xf32> to vector<1xf32>
    %474 = vector.shape_cast %473 : vector<1xf32> to vector<1x1xf32>
    %475 = vector.broadcast %474 : vector<1x1xf32> to vector<1x10xf32>
    %476 = arith.subf %472, %475 : vector<1x10xf32>
    %477 = math.exp %476 : vector<1x10xf32>
    %cst_151 = arith.constant dense<0.000000e+00> : vector<1xf32>
    %478 = vector.multi_reduction <add>, %477, %cst_151 [1] : vector<1x10xf32> to vector<1xf32>
    %479 = vector.shape_cast %478 : vector<1xf32> to vector<1x1xf32>
    %480 = vector.broadcast %479 : vector<1x1xf32> to vector<1x10xf32>
    %481 = arith.divf %477, %480 : vector<1x10xf32>
    %482 = vector.extract_strided_slice %63 {offsets = [8, 0], sizes = [1, 32], strides = [1, 1]} : vector<10x32xf32> to vector<1x32xf32>
    %cst_152 = arith.constant dense<0.000000e+00> : vector<1x32xf32>
    %483 = tpu.matmul %481, %7, %cst_152 {dimension_numbers = #tpu.dot_dimension_numbers<[1], [0], [0], [1], [0, 0, 1, 1], [], []>} : vector<1x10xf32>, vector<10x32xf32>, vector<1x32xf32> -> vector<1x32xf32>
    %484 = arith.addf %482, %483 : vector<1x32xf32>
    %cst_153 = arith.constant 0.000000e+00 : f32
    %485 = vector.broadcast %cst_153 : f32 to vector<1x32xf32>
    %486 = arith.maximumf %484, %485 : vector<1x32xf32>
    %c0_154 = arith.constant 0 : index
    %c0_155 = arith.constant 0 : index
    %487 = vector.load %arg7[%c0_154, %c0_155] : memref<32x384xf32, #tpu.memory_space<vmem>>, vector<32x384xf32>
    %cst_156 = arith.constant dense<0.000000e+00> : vector<1x384xf32>
    %488 = tpu.matmul %486, %487, %cst_156 {dimension_numbers = #tpu.dot_dimension_numbers<[1], [0], [0], [1], [0, 0, 1, 1], [], []>} : vector<1x32xf32>, vector<32x384xf32>, vector<1x384xf32> -> vector<1x384xf32>
    %489 = arith.addf %488, %0 : vector<1x384xf32>
    %490 = vector.extract_strided_slice %469 {offsets = [0, 0], sizes = [1, 384], strides = [1, 1]} : vector<1x394xf32> to vector<1x384xf32>
    %491 = arith.addf %490, %1 : vector<1x384xf32>
    %492 = vector.extract_strided_slice %489 {offsets = [0, 0], sizes = [1, 32], strides = [1, 1]} : vector<1x384xf32> to vector<1x32xf32>
    %493 = vector.extract_strided_slice %491 {offsets = [0, 0], sizes = [1, 32], strides = [1, 1]} : vector<1x384xf32> to vector<1x32xf32>
    %494 = arith.addf %492, %493 : vector<1x32xf32>
    %495 = arith.negf %494 : vector<1x32xf32>
    %496 = math.exp %495 : vector<1x32xf32>
    %cst_157 = arith.constant 1.000000e+00 : f32
    %497 = vector.broadcast %cst_157 : f32 to vector<1x32xf32>
    %498 = arith.addf %497, %496 : vector<1x32xf32>
    %499 = arith.divf %497, %498 : vector<1x32xf32>
    %500 = vector.extract_strided_slice %489 {offsets = [0, 128], sizes = [1, 32], strides = [1, 1]} : vector<1x384xf32> to vector<1x32xf32>
    %501 = vector.extract_strided_slice %491 {offsets = [0, 128], sizes = [1, 32], strides = [1, 1]} : vector<1x384xf32> to vector<1x32xf32>
    %502 = arith.addf %500, %501 : vector<1x32xf32>
    %503 = arith.negf %502 : vector<1x32xf32>
    %504 = math.exp %503 : vector<1x32xf32>
    %cst_158 = arith.constant 1.000000e+00 : f32
    %505 = vector.broadcast %cst_158 : f32 to vector<1x32xf32>
    %506 = arith.addf %505, %504 : vector<1x32xf32>
    %507 = arith.divf %505, %506 : vector<1x32xf32>
    %508 = vector.extract_strided_slice %489 {offsets = [0, 256], sizes = [1, 32], strides = [1, 1]} : vector<1x384xf32> to vector<1x32xf32>
    %509 = vector.extract_strided_slice %491 {offsets = [0, 256], sizes = [1, 32], strides = [1, 1]} : vector<1x384xf32> to vector<1x32xf32>
    %510 = arith.mulf %499, %509 : vector<1x32xf32>
    %511 = arith.addf %508, %510 : vector<1x32xf32>
    %512 = math.tanh %511 : vector<1x32xf32>
    %cst_159 = arith.constant 1.000000e+00 : f32
    %513 = vector.broadcast %cst_159 : f32 to vector<1x32xf32>
    %514 = arith.subf %513, %507 : vector<1x32xf32>
    %515 = arith.mulf %514, %512 : vector<1x32xf32>
    %516 = arith.mulf %507, %467 : vector<1x32xf32>
    %517 = arith.addf %515, %516 : vector<1x32xf32>
    %c0_160 = arith.constant 0 : index
    %c0_161 = arith.constant 0 : index
    %518 = vector.load %arg5[%c0_160, %c0_161] : memref<32x394xf32, #tpu.memory_space<vmem>>, vector<32x394xf32>
    %cst_162 = arith.constant dense<0.000000e+00> : vector<1x394xf32>
    %519 = tpu.matmul %517, %518, %cst_162 {dimension_numbers = #tpu.dot_dimension_numbers<[1], [0], [0], [1], [0, 0, 1, 1], [], []>} : vector<1x32xf32>, vector<32x394xf32>, vector<1x394xf32> -> vector<1x394xf32>
    %520 = vector.extract_strided_slice %66 {offsets = [9, 0], sizes = [1, 10], strides = [1, 1]} : vector<10x10xf32> to vector<1x10xf32>
    %521 = vector.extract_strided_slice %519 {offsets = [0, 384], sizes = [1, 10], strides = [1, 1]} : vector<1x394xf32> to vector<1x10xf32>
    %522 = arith.addf %520, %521 : vector<1x10xf32>
    %cst_163 = arith.constant dense<0xFF800000> : vector<1xf32>
    %523 = vector.multi_reduction <maximumf>, %522, %cst_163 [1] : vector<1x10xf32> to vector<1xf32>
    %524 = vector.shape_cast %523 : vector<1xf32> to vector<1x1xf32>
    %525 = vector.broadcast %524 : vector<1x1xf32> to vector<1x10xf32>
    %526 = arith.subf %522, %525 : vector<1x10xf32>
    %527 = math.exp %526 : vector<1x10xf32>
    %cst_164 = arith.constant dense<0.000000e+00> : vector<1xf32>
    %528 = vector.multi_reduction <add>, %527, %cst_164 [1] : vector<1x10xf32> to vector<1xf32>
    %529 = vector.shape_cast %528 : vector<1xf32> to vector<1x1xf32>
    %530 = vector.broadcast %529 : vector<1x1xf32> to vector<1x10xf32>
    %531 = arith.divf %527, %530 : vector<1x10xf32>
    %532 = vector.extract_strided_slice %63 {offsets = [9, 0], sizes = [1, 32], strides = [1, 1]} : vector<10x32xf32> to vector<1x32xf32>
    %cst_165 = arith.constant dense<0.000000e+00> : vector<1x32xf32>
    %533 = tpu.matmul %531, %7, %cst_165 {dimension_numbers = #tpu.dot_dimension_numbers<[1], [0], [0], [1], [0, 0, 1, 1], [], []>} : vector<1x10xf32>, vector<10x32xf32>, vector<1x32xf32> -> vector<1x32xf32>
    %534 = arith.addf %532, %533 : vector<1x32xf32>
    %cst_166 = arith.constant 0.000000e+00 : f32
    %535 = vector.broadcast %cst_166 : f32 to vector<1x32xf32>
    %536 = arith.maximumf %534, %535 : vector<1x32xf32>
    %c0_167 = arith.constant 0 : index
    %c0_168 = arith.constant 0 : index
    %537 = vector.load %arg7[%c0_167, %c0_168] : memref<32x384xf32, #tpu.memory_space<vmem>>, vector<32x384xf32>
    %cst_169 = arith.constant dense<0.000000e+00> : vector<1x384xf32>
    %538 = tpu.matmul %536, %537, %cst_169 {dimension_numbers = #tpu.dot_dimension_numbers<[1], [0], [0], [1], [0, 0, 1, 1], [], []>} : vector<1x32xf32>, vector<32x384xf32>, vector<1x384xf32> -> vector<1x384xf32>
    %539 = arith.addf %538, %0 : vector<1x384xf32>
    %540 = vector.extract_strided_slice %519 {offsets = [0, 0], sizes = [1, 384], strides = [1, 1]} : vector<1x394xf32> to vector<1x384xf32>
    %541 = arith.addf %540, %1 : vector<1x384xf32>
    %542 = vector.extract_strided_slice %539 {offsets = [0, 0], sizes = [1, 32], strides = [1, 1]} : vector<1x384xf32> to vector<1x32xf32>
    %543 = vector.extract_strided_slice %541 {offsets = [0, 0], sizes = [1, 32], strides = [1, 1]} : vector<1x384xf32> to vector<1x32xf32>
    %544 = arith.addf %542, %543 : vector<1x32xf32>
    %545 = arith.negf %544 : vector<1x32xf32>
    %546 = math.exp %545 : vector<1x32xf32>
    %cst_170 = arith.constant 1.000000e+00 : f32
    %547 = vector.broadcast %cst_170 : f32 to vector<1x32xf32>
    %548 = arith.addf %547, %546 : vector<1x32xf32>
    %549 = arith.divf %547, %548 : vector<1x32xf32>
    %550 = vector.extract_strided_slice %539 {offsets = [0, 128], sizes = [1, 32], strides = [1, 1]} : vector<1x384xf32> to vector<1x32xf32>
    %551 = vector.extract_strided_slice %541 {offsets = [0, 128], sizes = [1, 32], strides = [1, 1]} : vector<1x384xf32> to vector<1x32xf32>
    %552 = arith.addf %550, %551 : vector<1x32xf32>
    %553 = arith.negf %552 : vector<1x32xf32>
    %554 = math.exp %553 : vector<1x32xf32>
    %cst_171 = arith.constant 1.000000e+00 : f32
    %555 = vector.broadcast %cst_171 : f32 to vector<1x32xf32>
    %556 = arith.addf %555, %554 : vector<1x32xf32>
    %557 = arith.divf %555, %556 : vector<1x32xf32>
    %558 = vector.extract_strided_slice %539 {offsets = [0, 256], sizes = [1, 32], strides = [1, 1]} : vector<1x384xf32> to vector<1x32xf32>
    %559 = vector.extract_strided_slice %541 {offsets = [0, 256], sizes = [1, 32], strides = [1, 1]} : vector<1x384xf32> to vector<1x32xf32>
    %560 = arith.mulf %549, %559 : vector<1x32xf32>
    %561 = arith.addf %558, %560 : vector<1x32xf32>
    %562 = math.tanh %561 : vector<1x32xf32>
    %cst_172 = arith.constant 1.000000e+00 : f32
    %563 = vector.broadcast %cst_172 : f32 to vector<1x32xf32>
    %564 = arith.subf %563, %557 : vector<1x32xf32>
    %565 = arith.mulf %564, %562 : vector<1x32xf32>
    %566 = arith.mulf %557, %517 : vector<1x32xf32>
    %567 = arith.addf %565, %566 : vector<1x32xf32>
    %568 = tpu.concatenate %117, %167, %217, %267, %317, %367, %417, %467, %517, %567 in 0 : vector<1x32xf32>, vector<1x32xf32>, vector<1x32xf32>, vector<1x32xf32>, vector<1x32xf32>, vector<1x32xf32>, vector<1x32xf32>, vector<1x32xf32>, vector<1x32xf32>, vector<1x32xf32> -> vector<10x32xf32>
    %569 = tpu.concatenate %81, %131, %181, %231, %281, %331, %381, %431, %481, %531 in 0 : vector<1x10xf32>, vector<1x10xf32>, vector<1x10xf32>, vector<1x10xf32>, vector<1x10xf32>, vector<1x10xf32>, vector<1x10xf32>, vector<1x10xf32>, vector<1x10xf32>, vector<1x10xf32> -> vector<10x10xf32>
    %c0_173 = arith.constant 0 : index
    %c0_174 = arith.constant 0 : index
    %570 = vector.load %arg8[%c0_173, %c0_174] : memref<32x20xf32, #tpu.memory_space<vmem>>, vector<32x20xf32>
    %cst_175 = arith.constant dense<0.000000e+00> : vector<10x20xf32>
    %571 = tpu.matmul %568, %570, %cst_175 {dimension_numbers = #tpu.dot_dimension_numbers<[1], [0], [0], [1], [0, 0, 1, 1], [], []>} : vector<10x32xf32>, vector<32x20xf32>, vector<10x20xf32> -> vector<10x20xf32>
    %572 = vector.broadcast %4 : vector<1x20xf32> to vector<10x20xf32>
    %573 = arith.addf %571, %572 : vector<10x20xf32>
    %cst_176 = arith.constant dense<0xFF800000> : vector<10xf32>
    %574 = vector.multi_reduction <maximumf>, %573, %cst_176 [1] : vector<10x20xf32> to vector<10xf32>
    %575 = vector.shape_cast %574 : vector<10xf32> to vector<10x1xf32>
    %576 = vector.broadcast %575 : vector<10x1xf32> to vector<10x20xf32>
    %577 = arith.subf %573, %576 : vector<10x20xf32>
    %578 = math.exp %577 : vector<10x20xf32>
    %cst_177 = arith.constant dense<0.000000e+00> : vector<10xf32>
    %579 = vector.multi_reduction <add>, %578, %cst_177 [1] : vector<10x20xf32> to vector<10xf32>
    %580 = vector.shape_cast %579 : vector<10xf32> to vector<10x1xf32>
    %581 = math.log %580 : vector<10x1xf32>
    %582 = arith.addf %581, %575 : vector<10x1xf32>
    %583 = vector.broadcast %582 : vector<10x1xf32> to vector<10x20xf32>
    %584 = arith.subf %573, %583 : vector<10x20xf32>
    %cst_178 = arith.constant 0.000000e+00 : f32
    %585 = vector.broadcast %cst_178 : f32 to vector<10x66xf32>
    %586 = tpu.concatenate %584, %568, %569, %585 in 1 : vector<10x20xf32>, vector<10x32xf32>, vector<10x10xf32>, vector<10x66xf32> -> vector<10x128xf32>
    %c0_179 = arith.constant 0 : index
    %c0_180 = arith.constant 0 : index
    %587 = vector.load %arg10[%c0_179, %c0_180] : memref<10x128xf32, #tpu.memory_space<vmem>>, vector<10x128xf32>
    tpu.vector_store %arg10[%c0_179, %c0_180], %586 {strides = array<i32>} : memref<10x128xf32, #tpu.memory_space<vmem>>, vector<10x128xf32>,
    return
  }
}

</mosaic_0001>

<llo_original>
// kernel: attn_decoder_forward.1
$region0: #{attn_decoder_forward.1}
  #allocation0 [shape = 'u32[]', space=smem, size = 0x4, offset = 0x4, fixed_abs, tag = 'smem constant byte address 0x4 - core index']
  #allocation1 [shape = 'u32[144,128]{1,0:T(1,128)}', space=vmem, size = 0x12000, scoped, tag = 'internal scratch']
  %s0 = inlined_call_operand.hbm [shape: s32[10], index: 0, kind: input, shape index: {}]
  %s1 = inlined_call_operand.hbm [shape: f32[1,32], index: 1, kind: input, shape index: {}]
  %s2 = inlined_call_operand.vmem [shape: f32[10,32], index: 2, kind: input, shape index: {}]
  %s3 = inlined_call_operand.vmem [shape: f32[20,32], index: 3, kind: input, shape index: {}]
  %s4 = inlined_call_operand.vmem [shape: f32[32,42], index: 4, kind: input, shape index: {}]
  %s5 = inlined_call_operand.hbm [shape: f32[32,394], index: 5, kind: input, shape index: {}]
  %s6 = inlined_call_operand.hbm [shape: f32[32,32], index: 6, kind: input, shape index: {}]
  %s7 = inlined_call_operand.hbm [shape: f32[32,384], index: 7, kind: input, shape index: {}]
  %s8 = inlined_call_operand.vmem [shape: f32[32,20], index: 8, kind: input, shape index: {}]
  %s9 = inlined_call_operand.hbm [shape: f32[1,1152], index: 9, kind: input, shape index: {}]
  %s10 = inlined_call_operand.vmem [shape: f32[10,128], index: 10, kind: output, shape index: {}]
  %s11 = sld [smem:[#allocation0]]
  $region74: #{attn_decoder_forward.1} parent=0
    _
  %s13 = ssub.s32 1, %s11
  %s14 = scalar_select 0, %s13, %s11
  $region1: #{attn_decoder_forward.1} parent=0
    #allocation2 [shape = 'u8[512]{0}', space=smem, size = 0x200, scoped, tag = 'input window, operand 0, single buffered']
    #allocation3 [shape = 's32[1]{0}', space=sflag, size = 0x4, scoped, tag = 'scoped memory for attn_decoder_forward.1']
    #allocation4 [shape = 's32[1]{0}', space=sflag, size = 0x4, scoped, tag = 'scoped memory for attn_decoder_forward.1']
    #allocation5 [shape = 'u8[512]{0}', space=vmem, size = 0x400, scoped, tag = 'input window, operand 1, single buffered']
    #allocation6 [shape = 'u8[65536]{0}', space=vmem, size = 0x10000, scoped, tag = 'input window, operand 5, single buffered']
    #allocation7 [shape = 's32[1]{0}', space=sflag, size = 0x4, scoped, tag = 'scoped memory for attn_decoder_forward.1']
    #allocation8 [shape = 'u8[16384]{0}', space=vmem, size = 0x4000, scoped, tag = 'input window, operand 6, single buffered']
    #allocation9 [shape = 'u8[49152]{0}', space=vmem, size = 0xc000, scoped, tag = 'input window, operand 7, single buffered']
    #allocation10 [shape = 's32[1]{0}', space=sflag, size = 0x4, scoped, tag = 'scoped memory for attn_decoder_forward.1']
    #allocation11 [shape = 'u8[4608]{0}', space=vmem, size = 0x1400, scoped, tag = 'input window, operand 9, single buffered']
    %15 = vsyncpa [#allocation4], 0
    %16 = vsyncpa [#allocation3], 0
    %17 = vsyncpa [#allocation7], 0
    %18 = vsyncpa [#allocation10], 0
    // Predicated region
    $region2: #{attn_decoder_forward.1} parent=1 // pred_check
      _
    $region3: #{attn_decoder_forward.1} parent=1 // pred_check_branch
      %20 = sbr.rel (0) target = $region5
    $region4: #{attn_decoder_forward.1} parent=1 // pred_region
      %s22 = ssub.s32 16, 16
      %23 = vsyncadd [#allocation4], %s22
      %26 = dma.hbm_to_smem %s0, 16, [#allocation2], [#allocation4]
    $region5: #{attn_decoder_forward.1} parent=1 // pred_fallthru
      _
    // Predicated region
    $region6: #{attn_decoder_forward.1} parent=1 // pred_check
      _
    $region7: #{attn_decoder_forward.1} parent=1 // pred_check_branch
      %28 = sbr.rel (0) target = $region9
    $region8: #{attn_decoder_forward.1} parent=1 // pred_region
      %s30 = ssub.s32 16, 16
      %31 = vsyncadd [#allocation3], %s30
      %s33 = sshll.u32 [#allocation5], 4
      %s34 = int_to_ptr.vmem [resolvable:$true] %s33
      %36 = dma.hbm_to_vmem [thread:$0]  %s1, 16, %s34, [#allocation3]
    $region9: #{attn_decoder_forward.1} parent=1 // pred_fallthru
      _
    // Predicated region
    $region10: #{attn_decoder_forward.1} parent=1 // pred_check
      _
    $region11: #{attn_decoder_forward.1} parent=1 // pred_check_branch
      %38 = sbr.rel (0) target = $region13
    $region12: #{attn_decoder_forward.1} parent=1 // pred_region
      _
    $region13: #{attn_decoder_forward.1} parent=1 // pred_fallthru
      _
    // Predicated region
    $region14: #{attn_decoder_forward.1} parent=1 // pred_check
      _
    $region15: #{attn_decoder_forward.1} parent=1 // pred_check_branch
      %40 = sbr.rel (0) target = $region17
    $region16: #{attn_decoder_forward.1} parent=1 // pred_region
      _
    $region17: #{attn_decoder_forward.1} parent=1 // pred_fallthru
      _
    // Predicated region
    $region18: #{attn_decoder_forward.1} parent=1 // pred_check
      _
    $region19: #{attn_decoder_forward.1} parent=1 // pred_check_branch
      %42 = sbr.rel (0) target = $region21
    $region20: #{attn_decoder_forward.1} parent=1 // pred_region
      _
    $region21: #{attn_decoder_forward.1} parent=1 // pred_fallthru
      _
    // Predicated region
    $region22: #{attn_decoder_forward.1} parent=1 // pred_check
      _
    $region23: #{attn_decoder_forward.1} parent=1 // pred_check_branch
      %44 = sbr.rel (0) target = $region25
    $region24: #{attn_decoder_forward.1} parent=1 // pred_region
      %s46 = ssub.s32 2048, 2048
      %47 = vsyncadd [#allocation7], %s46
      %s48 = sshll.u32 [#allocation6], 4
      %s49 = int_to_ptr.vmem [resolvable:$true] %s48
      %54 = dma.hbm_to_vmem [thread:$0]  %s5, 2048, %s49, [#allocation7], 512, 512, 32
    $region25: #{attn_decoder_forward.1} parent=1 // pred_fallthru
      _
    // Predicated region
    $region26: #{attn_decoder_forward.1} parent=1 // pred_check
      _
    $region27: #{attn_decoder_forward.1} parent=1 // pred_check_branch
      %56 = sbr.rel (0) target = $region29
    $region28: #{attn_decoder_forward.1} parent=1 // pred_region
      %s58 = ssub.s32 512, 512
      %59 = vsyncadd [#allocation7], %s58
      %s60 = sshll.u32 [#allocation8], 4
      %s61 = int_to_ptr.vmem [resolvable:$true] %s60
      %66 = dma.hbm_to_vmem [thread:$0]  %s6, 512, %s61, [#allocation7], 128, 128, 8
    $region29: #{attn_decoder_forward.1} parent=1 // pred_fallthru
      _
    // Predicated region
    $region30: #{attn_decoder_forward.1} parent=1 // pred_check
      _
    $region31: #{attn_decoder_forward.1} parent=1 // pred_check_branch
      %68 = sbr.rel (0) target = $region33
    $region32: #{attn_decoder_forward.1} parent=1 // pred_region
      %s70 = ssub.s32 1536, 1536
      %71 = vsyncadd [#allocation10], %s70
      %s72 = sshll.u32 [#allocation9], 4
      %s73 = int_to_ptr.vmem [resolvable:$true] %s72
      %78 = dma.hbm_to_vmem [thread:$0]  %s7, 1536, %s73, [#allocation10], 384, 384, 24
    $region33: #{attn_decoder_forward.1} parent=1 // pred_fallthru
      _
    // Predicated region
    $region34: #{attn_decoder_forward.1} parent=1 // pred_check
      _
    $region35: #{attn_decoder_forward.1} parent=1 // pred_check_branch
      %80 = sbr.rel (0) target = $region37
    $region36: #{attn_decoder_forward.1} parent=1 // pred_region
      _
    $region37: #{attn_decoder_forward.1} parent=1 // pred_fallthru
      _
    // Predicated region
    $region38: #{attn_decoder_forward.1} parent=1 // pred_check
      _
    $region39: #{attn_decoder_forward.1} parent=1 // pred_check_branch
      %82 = sbr.rel (0) target = $region41
    $region40: #{attn_decoder_forward.1} parent=1 // pred_region
      %s84 = ssub.s32 144, 144
      %85 = vsyncadd [#allocation10], %s84
      %s87 = sshll.u32 [#allocation11], 4
      %s88 = int_to_ptr.vmem [resolvable:$true] %s87
      %90 = dma.hbm_to_vmem [thread:$0]  %s9, 144, %s88, [#allocation10]
    $region41: #{attn_decoder_forward.1} parent=1 // pred_fallthru
      _
    // Predicated region
    $region42: #{attn_decoder_forward.1} parent=1 // pred_check
      _
    $region43: #{attn_decoder_forward.1} parent=1 // pred_check_branch
      %92 = sbr.rel (0) target = $region45
    $region44: #{attn_decoder_forward.1} parent=1 // pred_region
      %93 = dma.done [#allocation4], 16
    $region45: #{attn_decoder_forward.1} parent=1 // pred_fallthru
      _
    // Predicated region
    $region46: #{attn_decoder_forward.1} parent=1 // pred_check
      _
    $region47: #{attn_decoder_forward.1} parent=1 // pred_check_branch
      %95 = sbr.rel (0) target = $region49
    $region48: #{attn_decoder_forward.1} parent=1 // pred_region
      %96 = dma.done [#allocation3], 16
    $region49: #{attn_decoder_forward.1} parent=1 // pred_fallthru
      _
    // Predicated region
    $region50: #{attn_decoder_forward.1} parent=1 // pred_check
      _
    $region51: #{attn_decoder_forward.1} parent=1 // pred_check_branch
      %98 = sbr.rel (0) target = $region53
    $region52: #{attn_decoder_forward.1} parent=1 // pred_region
      %99 = dma.done [#allocation7], 2048
    $region53: #{attn_decoder_forward.1} parent=1 // pred_fallthru
      _
    // Predicated region
    $region54: #{attn_decoder_forward.1} parent=1 // pred_check
      _
    $region55: #{attn_decoder_forward.1} parent=1 // pred_check_branch
      %101 = sbr.rel (0) target = $region57
    $region56: #{attn_decoder_forward.1} parent=1 // pred_region
      %102 = dma.done [#allocation7], 512
    $region57: #{attn_decoder_forward.1} parent=1 // pred_fallthru
      _
    // Predicated region
    $region58: #{attn_decoder_forward.1} parent=1 // pred_check
      _
    $region59: #{attn_decoder_forward.1} parent=1 // pred_check_branch
      %104 = sbr.rel (0) target = $region61
    $region60: #{attn_decoder_forward.1} parent=1 // pred_region
      %105 = dma.done [#allocation10], 1536
    $region61: #{attn_decoder_forward.1} parent=1 // pred_fallthru
      _
    // Predicated region
    $region62: #{attn_decoder_forward.1} parent=1 // pred_check
      _
    $region63: #{attn_decoder_forward.1} parent=1 // pred_check_branch
      %107 = sbr.rel (0) target = $region65
    $region64: #{attn_decoder_forward.1} parent=1 // pred_region
      %108 = dma.done [#allocation10], 144
    $region65: #{attn_decoder_forward.1} parent=1 // pred_fallthru
      _
    %109 = sfence
    %v110 = vld [vmem:[#allocation11] sm:$0x7]
    %v111 = vld [vmem:[#allocation11 + $0x3] sm:$0x7]
    %v112 = vld [vmem:[#allocation11 + $0x6] sm:$0x1]
    %v113 = vld [vmem:[#allocation11 + $0x7] sm:$0x1]
    %v114 = vld [vmem:[#allocation11 + $0x8] sm:$0x1]
    %v115 = vld [vmem:[%s2] sm:$0xff]
    %v116 = vld [vmem:[%s2 + $0x8] sm:$0x3]
    %v117 = vld [vmem:[#allocation8] sm:$0xff]
    %v118 = vld [vmem:[#allocation8 + $0x8] sm:$0xff]
    %v119 = vld [vmem:[#allocation8 + $0x10] sm:$0xff]
    %v120 = vld [vmem:[#allocation8 + $0x18] sm:$0xff]
    %vm121 = vcmask 261120
    %v123 = vsel %vm121, %v115, 0
    %v126 = vsel %vm121, %v116, 0
    %128 = vmatprep.subr.mxu0 0.0
    %129 = vmatpush1.msra.mxu0 0.0
    %130 = vmatprep.subr.mxu0 0.0
    %131 = vmatpush1.msra.mxu0 0.0
    %132 = vmatprep.subr.mxu0 0.0
    %133 = vmatpush1.msra.mxu0 0.0
    %134 = vmatprep.subr.mxu0 0.0
    %135 = vmatpush1.msra.mxu0 0.0
    %136 = vmatprep.subr.mxu0 0.0
    %137 = vmatpush1.msra.mxu0 0.0
    %138 = vmatprep.subr.mxu0 0.0
    %139 = vmatpush1.msra.mxu0 0.0
    %140 = vmatprep.subr.mxu0 0.0
    %141 = vmatpush1.msra.mxu0 0.0
    %142 = vmatprep.subr.mxu0 0.0
    %143 = vmatpush1.msra.mxu0 0.0
    %144 = vmatprep.subr.mxu0 0.0
    %145 = vmatpush1.msra.mxu0 0.0
    %146 = vmatprep.subr.mxu0 0.0
    %147 = vmatpush1.msra.mxu0 0.0
    %148 = vmatprep.subr.mxu0 0.0
    %149 = vmatpush1.msra.mxu0 0.0
    %150 = vmatprep.subr.mxu0 0.0
    %151 = vmatpush1.msra.mxu0 0.0
    %152 = vmatprep.subr.mxu0 0.0
    %153 = vmatpush1.msra.mxu0 %v120
    %154 = vmatprep.subr.mxu0 0.0
    %155 = vmatpush1.msra.mxu0 %v119
    %156 = vmatprep.subr.mxu0 0.0
    %157 = vmatpush1.msra.mxu0 %v118
    %158 = vmatprep.subr.mxu0 0.0
    %159 = vmatpush1.msra.mxu0 %v117
    %160 = vmatprep.subr.mxu0 0.0
    %161 = vmatpush2.msra.mxu0 0.0
    %162 = vmatprep.subr.mxu0 0.0
    %163 = vmatpush2.msra.mxu0 0.0
    %164 = vmatprep.subr.mxu0 0.0
    %165 = vmatpush2.msra.mxu0 0.0
    %166 = vmatprep.subr.mxu0 0.0
    %167 = vmatpush2.msra.mxu0 0.0
    %168 = vmatprep.subr.mxu0 0.0
    %169 = vmatpush2.msra.mxu0 0.0
    %170 = vmatprep.subr.mxu0 0.0
    %171 = vmatpush2.msra.mxu0 0.0
    %172 = vmatprep.subr.mxu0 0.0
    %173 = vmatpush2.msra.mxu0 0.0
    %174 = vmatprep.subr.mxu0 0.0
    %175 = vmatpush2.msra.mxu0 0.0
    %176 = vmatprep.subr.mxu0 0.0
    %177 = vmatpush2.msra.mxu0 0.0
    %178 = vmatprep.subr.mxu0 0.0
    %179 = vmatpush2.msra.mxu0 0.0
    %180 = vmatprep.subr.mxu0 0.0
    %181 = vmatpush2.msra.mxu0 0.0
    %182 = vmatprep.subr.mxu0 0.0
    %183 = vmatpush2.msra.mxu0 0.0
    %184 = vmatprep.subr.mxu0 0.0
    %185 = vmatpush2.msra.mxu0 0.0
    %186 = vmatprep.subr.mxu0 0.0
    %187 = vmatpush2.msra.mxu0 0.0
    %188 = vmatprep.subr.mxu0 0.0
    %189 = vmatpush2.msra.mxu0 0.0
    %190 = vmatprep.subr.mxu0 0.0
    %191 = vmatpush2.msra.mxu0 0.0
    %192 = vmatprep.mubr.f32.mxu0 0.0
    %193 = vmatmul.mubr.f32.gmra.mxu0 %v123
    %v194 = vpop.f32.mrf.mxu0
    %v195 = vadd.f32 0.0, %v194
    %v196 = vpop.f32.mrf.mxu0
    %197 = vmatprep.mubr.f32.mxu0 0.0
    %198 = vmatmul.mubr.f32.gmra.mxu0 %v126
    %v199 = vpop.f32.mrf.mxu0
    %v200 = vadd.f32 0.0, %v199
    %v201 = vpop.f32.mrf.mxu0
    %202 = vdwg.mxu0
    %s203 = sld [smem:[#allocation2]]
    %p204 = scmp.gt.s32.totalorder %s203, 0
    %s205 = scalar_select %p204, %s203, 0
    %p206 = scmp.lt.s32.totalorder %s205, 19
    %s207 = scalar_select %p206, %s205, 19
    %s208 = scalar_lea.vmem %s3, %s207
    %v209 = vld [vmem:[%s208] sm:$0x1]
    %s210 = sld [smem:[#allocation2 + $0x1]]
    %p211 = scmp.gt.s32.totalorder %s210, 0
    %s212 = scalar_select %p211, %s210, 0
    %p213 = scmp.lt.s32.totalorder %s212, 19
    %s214 = scalar_select %p213, %s212, 19
    %s215 = scalar_lea.vmem %s3, %s214
    %v216 = vld [vmem:[%s215] sm:$0x1]
    %s217 = sld [smem:[#allocation2 + $0x2]]
    %p218 = scmp.gt.s32.totalorder %s217, 0
    %s219 = scalar_select %p218, %s217, 0
    %p220 = scmp.lt.s32.totalorder %s219, 19
    %s221 = scalar_select %p220, %s219, 19
    %s222 = scalar_lea.vmem %s3, %s221
    %v223 = vld [vmem:[%s222] sm:$0x1]
    %s224 = sld [smem:[#allocation2 + $0x3]]
    %p225 = scmp.gt.s32.totalorder %s224, 0
    %s226 = scalar_select %p225, %s224, 0
    %p227 = scmp.lt.s32.totalorder %s226, 19
    %s228 = scalar_select %p227, %s226, 19
    %s229 = scalar_lea.vmem %s3, %s228
    %v230 = vld [vmem:[%s229] sm:$0x1]
    %s231 = sld [smem:[#allocation2 + $0x4]]
    %p232 = scmp.gt.s32.totalorder %s231, 0
    %s233 = scalar_select %p232, %s231, 0
    %p234 = scmp.lt.s32.totalorder %s233, 19
    %s235 = scalar_select %p234, %s233, 19
    %s236 = scalar_lea.vmem %s3, %s235
    %v237 = vld [vmem:[%s236] sm:$0x1]
    %s238 = sld [smem:[#allocation2 + $0x5]]
    %p239 = scmp.gt.s32.totalorder %s238, 0
    %s240 = scalar_select %p239, %s238, 0
    %p241 = scmp.lt.s32.totalorder %s240, 19
    %s242 = scalar_select %p241, %s240, 19
    %s243 = scalar_lea.vmem %s3, %s242
    %v244 = vld [vmem:[%s243] sm:$0x1]
    %s245 = sld [smem:[#allocation2 + $0x6]]
    %p246 = scmp.gt.s32.totalorder %s245, 0
    %s247 = scalar_select %p246, %s245, 0
    %p248 = scmp.lt.s32.totalorder %s247, 19
    %s249 = scalar_select %p248, %s247, 19
    %s250 = scalar_lea.vmem %s3, %s249
    %v251 = vld [vmem:[%s250] sm:$0x1]
    %s252 = sld [smem:[#allocation2 + $0x7]]
    %p253 = scmp.gt.s32.totalorder %s252, 0
    %s254 = scalar_select %p253, %s252, 0
    %p255 = scmp.lt.s32.totalorder %s254, 19
    %s256 = scalar_select %p255, %s254, 19
    %s257 = scalar_lea.vmem %s3, %s256
    %v258 = vld [vmem:[%s257] sm:$0x1]
    %s259 = sld [smem:[#allocation2 + $0x8]]
    %p260 = scmp.gt.s32.totalorder %s259, 0
    %s261 = scalar_select %p260, %s259, 0
    %p262 = scmp.lt.s32.totalorder %s261, 19
    %s263 = scalar_select %p262, %s261, 19
    %s264 = scalar_lea.vmem %s3, %s263
    %v265 = vld [vmem:[%s264] sm:$0x1]
    %s266 = sld [smem:[#allocation2 + $0x9]]
    %p267 = scmp.gt.s32.totalorder %s266, 0
    %s268 = scalar_select %p267, %s266, 0
    %p269 = scmp.lt.s32.totalorder %s268, 19
    %s270 = scalar_select %p269, %s268, 19
    %s271 = scalar_lea.vmem %s3, %s270
    %v272 = vld [vmem:[%s271] sm:$0x1]
    %v274 = vrot.slane %v216, 7
    %v277 = vrot.slane %v223, 6
    %v280 = vrot.slane %v230, 5
    %v283 = vrot.slane %v237, 4
    %v286 = vrot.slane %v244, 3
    %v289 = vrot.slane %v251, 2
    %v292 = vrot.slane %v258, 1
    %v295 = vrot.slane %v272, 7
    %vm297 = vcmask 1040384
    %v298 = vsel %vm297, %v209, %v274
    %vm299 = vcmask 1041408
    %v300 = vsel %vm299, %v298, %v277
    %vm301 = vcmask 1042432
    %v302 = vsel %vm301, %v300, %v280
    %vm303 = vcmask 1043456
    %v304 = vsel %vm303, %v302, %v283
    %vm305 = vcmask 1044480
    %v306 = vsel %vm305, %v304, %v286
    %vm307 = vcmask 1045504
    %v308 = vsel %vm307, %v306, %v289
    %vm309 = vcmask 1046528
    %v310 = vsel %vm309, %v308, %v292
    %v311 = vsel %vm297, %v265, %v295
    %v312 = vld [vmem:[%s4] sm:$0xff]
    %v313 = vld [vmem:[%s4 + $0x8] sm:$0xff]
    %v314 = vld [vmem:[%s4 + $0x10] sm:$0xff]
    %v315 = vld [vmem:[%s4 + $0x18] sm:$0xff]
    %v317 = vsel %vm121, %v310, 0
    %v320 = vsel %vm121, %v311, 0
    %322 = vmatprep.subr.mxu0 0.0
    %323 = vmatpush1.msra.mxu0 0.0
    %324 = vmatprep.subr.mxu0 0.0
    %325 = vmatpush1.msra.mxu0 0.0
    %326 = vmatprep.subr.mxu0 0.0
    %327 = vmatpush1.msra.mxu0 0.0
    %328 = vmatprep.subr.mxu0 0.0
    %329 = vmatpush1.msra.mxu0 0.0
    %330 = vmatprep.subr.mxu0 0.0
    %331 = vmatpush1.msra.mxu0 0.0
    %332 = vmatprep.subr.mxu0 0.0
    %333 = vmatpush1.msra.mxu0 0.0
    %334 = vmatprep.subr.mxu0 0.0
    %335 = vmatpush1.msra.mxu0 0.0
    %336 = vmatprep.subr.mxu0 0.0
    %337 = vmatpush1.msra.mxu0 0.0
    %338 = vmatprep.subr.mxu0 0.0
    %339 = vmatpush1.msra.mxu0 0.0
    %340 = vmatprep.subr.mxu0 0.0
    %341 = vmatpush1.msra.mxu0 0.0
    %342 = vmatprep.subr.mxu0 0.0
    %343 = vmatpush1.msra.mxu0 0.0
    %344 = vmatprep.subr.mxu0 0.0
    %345 = vmatpush1.msra.mxu0 0.0
    %346 = vmatprep.subr.mxu0 0.0
    %347 = vmatpush1.msra.mxu0 %v315
    %348 = vmatprep.subr.mxu0 0.0
    %349 = vmatpush1.msra.mxu0 %v314
    %350 = vmatprep.subr.mxu0 0.0
    %351 = vmatpush1.msra.mxu0 %v313
    %352 = vmatprep.subr.mxu0 0.0
    %353 = vmatpush1.msra.mxu0 %v312
    %354 = vmatprep.subr.mxu0 0.0
    %355 = vmatpush2.msra.mxu0 0.0
    %356 = vmatprep.subr.mxu0 0.0
    %357 = vmatpush2.msra.mxu0 0.0
    %358 = vmatprep.subr.mxu0 0.0
    %359 = vmatpush2.msra.mxu0 0.0
    %360 = vmatprep.subr.mxu0 0.0
    %361 = vmatpush2.msra.mxu0 0.0
    %362 = vmatprep.subr.mxu0 0.0
    %363 = vmatpush2.msra.mxu0 0.0
    %364 = vmatprep.subr.mxu0 0.0
    %365 = vmatpush2.msra.mxu0 0.0
    %366 = vmatprep.subr.mxu0 0.0
    %367 = vmatpush2.msra.mxu0 0.0
    %368 = vmatprep.subr.mxu0 0.0
    %369 = vmatpush2.msra.mxu0 0.0
    %370 = vmatprep.subr.mxu0 0.0
    %371 = vmatpush2.msra.mxu0 0.0
    %372 = vmatprep.subr.mxu0 0.0
    %373 = vmatpush2.msra.mxu0 0.0
    %374 = vmatprep.subr.mxu0 0.0
    %375 = vmatpush2.msra.mxu0 0.0
    %376 = vmatprep.subr.mxu0 0.0
    %377 = vmatpush2.msra.mxu0 0.0
    %378 = vmatprep.subr.mxu0 0.0
    %379 = vmatpush2.msra.mxu0 0.0
    %380 = vmatprep.subr.mxu0 0.0
    %381 = vmatpush2.msra.mxu0 0.0
    %382 = vmatprep.subr.mxu0 0.0
    %383 = vmatpush2.msra.mxu0 0.0
    %384 = vmatprep.subr.mxu0 0.0
    %385 = vmatpush2.msra.mxu0 0.0
    %386 = vmatprep.mubr.f32.mxu0 0.0
    %387 = vmatmul.mubr.f32.gmra.mxu0 %v317
    %v388 = vpop.f32.mrf.mxu0
    %v389 = vadd.f32 0.0, %v388
    %v390 = vpop.f32.mrf.mxu0
    %391 = vmatprep.mubr.f32.mxu0 0.0
    %392 = vmatmul.mubr.f32.gmra.mxu0 %v320
    %v393 = vpop.f32.mrf.mxu0
    %v394 = vadd.f32 0.0, %v393
    %v395 = vpop.f32.mrf.mxu0
    %396 = vdwg.mxu0
    %v398 = vlaneseq
    %v399 = vshrl.u32 %v398, 7
    %v400 = vsub.s32 0, %v399
    %v401 = vrot.slane %v113, %v400
    %v403 = vadd.f32 %v389, %v401
    %v404 = vadd.f32 %v394, %v401
    %v406 = vlaneseq
    %v407 = vshrl.u32 %v406, 7
    %v408 = vsub.s32 0, %v407
    %v409 = vrot.slane %v112, %v408
    %410 = vrot.lane.b32.xlu0 %v409, 32
    %v411 = vpop.permute.xlu0 %410
    %v413 = vadd.f32 %v389, %v411
    %v414 = vadd.f32 %v394, %v411
    %v415 = vld [vmem:[#allocation5] sm:$0x1]
    %v416 = vld [vmem:[#allocation6] sm:$0xff]
    %v417 = vld [vmem:[#allocation6 + $0x8] sm:$0xff]
    %v418 = vld [vmem:[#allocation6 + $0x10] sm:$0xff]
    %v419 = vld [vmem:[#allocation6 + $0x18] sm:$0xff]
    %v420 = vld [vmem:[#allocation6 + $0x20] sm:$0xff]
    %v421 = vld [vmem:[#allocation6 + $0x28] sm:$0xff]
    %v422 = vld [vmem:[#allocation6 + $0x30] sm:$0xff]
    %v423 = vld [vmem:[#allocation6 + $0x38] sm:$0xff]
    %v424 = vld [vmem:[#allocation6 + $0x40] sm:$0xff]
    %v425 = vld [vmem:[#allocation6 + $0x48] sm:$0xff]
    %v426 = vld [vmem:[#allocation6 + $0x50] sm:$0xff]
    %v427 = vld [vmem:[#allocation6 + $0x58] sm:$0xff]
    %v428 = vld [vmem:[#allocation6 + $0x60] sm:$0xff]
    %v429 = vld [vmem:[#allocation6 + $0x68] sm:$0xff]
    %v430 = vld [vmem:[#allocation6 + $0x70] sm:$0xff]
    %v431 = vld [vmem:[#allocation6 + $0x78] sm:$0xff]
    %v433 = vsel %vm121, %v415, 0
    %435 = vmatprep.subr.mxu0 0.0
    %436 = vmatpush1.msra.mxu0 0.0
    %437 = vmatprep.subr.mxu0 0.0
    %438 = vmatpush1.msra.mxu0 0.0
    %439 = vmatprep.subr.mxu0 0.0
    %440 = vmatpush1.msra.mxu0 0.0
    %441 = vmatprep.subr.mxu0 0.0
    %442 = vmatpush1.msra.mxu0 0.0
    %443 = vmatprep.subr.mxu0 0.0
    %444 = vmatpush1.msra.mxu0 0.0
    %445 = vmatprep.subr.mxu0 0.0
    %446 = vmatpush1.msra.mxu0 0.0
    %447 = vmatprep.subr.mxu0 0.0
    %448 = vmatpush1.msra.mxu0 0.0
    %449 = vmatprep.subr.mxu0 0.0
    %450 = vmatpush1.msra.mxu0 0.0
    %451 = vmatprep.subr.mxu0 0.0
    %452 = vmatpush1.msra.mxu0 0.0
    %453 = vmatprep.subr.mxu0 0.0
    %454 = vmatpush1.msra.mxu0 0.0
    %455 = vmatprep.subr.mxu0 0.0
    %456 = vmatpush1.msra.mxu0 0.0
    %457 = vmatprep.subr.mxu0 0.0
    %458 = vmatpush1.msra.mxu0 0.0
    %459 = vmatprep.subr.mxu0 %v429
    %460 = vmatpush1.msra.mxu0 %v428
    %461 = vmatprep.subr.mxu0 %v425
    %462 = vmatpush1.msra.mxu0 %v424
    %463 = vmatprep.subr.mxu0 %v421
    %464 = vmatpush1.msra.mxu0 %v420
    %465 = vmatprep.subr.mxu0 %v417
    %466 = vmatpush1.msra.mxu0 %v416
    %467 = vmatprep.subr.mxu0 0.0
    %468 = vmatpush2.msra.mxu0 0.0
    %469 = vmatprep.subr.mxu0 0.0
    %470 = vmatpush2.msra.mxu0 0.0
    %471 = vmatprep.subr.mxu0 0.0
    %472 = vmatpush2.msra.mxu0 0.0
    %473 = vmatprep.subr.mxu0 0.0
    %474 = vmatpush2.msra.mxu0 0.0
    %475 = vmatprep.subr.mxu0 0.0
    %476 = vmatpush2.msra.mxu0 0.0
    %477 = vmatprep.subr.mxu0 0.0
    %478 = vmatpush2.msra.mxu0 0.0
    %479 = vmatprep.subr.mxu0 0.0
    %480 = vmatpush2.msra.mxu0 0.0
    %481 = vmatprep.subr.mxu0 0.0
    %482 = vmatpush2.msra.mxu0 0.0
    %483 = vmatprep.subr.mxu0 0.0
    %484 = vmatpush2.msra.mxu0 0.0
    %485 = vmatprep.subr.mxu0 0.0
    %486 = vmatpush2.msra.mxu0 0.0
    %487 = vmatprep.subr.mxu0 0.0
    %488 = vmatpush2.msra.mxu0 0.0
    %489 = vmatprep.subr.mxu0 0.0
    %490 = vmatpush2.msra.mxu0 0.0
    %491 = vmatprep.subr.mxu0 0.0
    %492 = vmatpush2.msra.mxu0 0.0
    %493 = vmatprep.subr.mxu0 0.0
    %494 = vmatpush2.msra.mxu0 0.0
    %495 = vmatprep.subr.mxu0 0.0
    %496 = vmatpush2.msra.mxu0 0.0
    %497 = vmatprep.subr.mxu0 0.0
    %498 = vmatpush2.msra.mxu0 0.0
    %499 = vmatprep.mubr.f32.mxu0 0.0
    %500 = vmatmul.mubr.f32.gmra.mxu0 %v433
    %v501 = vpop.f32.mrf.mxu0
    %v502 = vadd.f32 0.0, %v501
    %v503 = vpop.f32.mrf.mxu0
    %v504 = vadd.f32 0.0, %v503
    %505 = vdwg.mxu0
    %506 = vmatprep.subr.mxu0 0.0
    %507 = vmatpush1.msra.mxu0 0.0
    %508 = vmatprep.subr.mxu0 0.0
    %509 = vmatpush1.msra.mxu0 0.0
    %510 = vmatprep.subr.mxu0 0.0
    %511 = vmatpush1.msra.mxu0 0.0
    %512 = vmatprep.subr.mxu0 0.0
    %513 = vmatpush1.msra.mxu0 0.0
    %514 = vmatprep.subr.mxu0 0.0
    %515 = vmatpush1.msra.mxu0 0.0
    %516 = vmatprep.subr.mxu0 0.0
    %517 = vmatpush1.msra.mxu0 0.0
    %518 = vmatprep.subr.mxu0 0.0
    %519 = vmatpush1.msra.mxu0 0.0
    %520 = vmatprep.subr.mxu0 0.0
    %521 = vmatpush1.msra.mxu0 0.0
    %522 = vmatprep.subr.mxu0 0.0
    %523 = vmatpush1.msra.mxu0 0.0
    %524 = vmatprep.subr.mxu0 0.0
    %525 = vmatpush1.msra.mxu0 0.0
    %526 = vmatprep.subr.mxu0 0.0
    %527 = vmatpush1.msra.mxu0 0.0
    %528 = vmatprep.subr.mxu0 0.0
    %529 = vmatpush1.msra.mxu0 0.0
    %530 = vmatprep.subr.mxu0 %v431
    %531 = vmatpush1.msra.mxu0 %v430
    %532 = vmatprep.subr.mxu0 %v427
    %533 = vmatpush1.msra.mxu0 %v426
    %534 = vmatprep.subr.mxu0 %v423
    %535 = vmatpush1.msra.mxu0 %v422
    %536 = vmatprep.subr.mxu0 %v419
    %537 = vmatpush1.msra.mxu0 %v418
    %538 = vmatprep.subr.mxu0 0.0
    %539 = vmatpush2.msra.mxu0 0.0
    %540 = vmatprep.subr.mxu0 0.0
    %541 = vmatpush2.msra.mxu0 0.0
    %542 = vmatprep.subr.mxu0 0.0
    %543 = vmatpush2.msra.mxu0 0.0
    %544 = vmatprep.subr.mxu0 0.0
    %545 = vmatpush2.msra.mxu0 0.0
    %546 = vmatprep.subr.mxu0 0.0
    %547 = vmatpush2.msra.mxu0 0.0
    %548 = vmatprep.subr.mxu0 0.0
    %549 = vmatpush2.msra.mxu0 0.0
    %550 = vmatprep.subr.mxu0 0.0
    %551 = vmatpush2.msra.mxu0 0.0
    %552 = vmatprep.subr.mxu0 0.0
    %553 = vmatpush2.msra.mxu0 0.0
    %554 = vmatprep.subr.mxu0 0.0
    %555 = vmatpush2.msra.mxu0 0.0
    %556 = vmatprep.subr.mxu0 0.0
    %557 = vmatpush2.msra.mxu0 0.0
    %558 = vmatprep.subr.mxu0 0.0
    %559 = vmatpush2.msra.mxu0 0.0
    %560 = vmatprep.subr.mxu0 0.0
    %561 = vmatpush2.msra.mxu0 0.0
    %562 = vmatprep.subr.mxu0 0.0
    %563 = vmatpush2.msra.mxu0 0.0
    %564 = vmatprep.subr.mxu0 0.0
    %565 = vmatpush2.msra.mxu0 0.0
    %566 = vmatprep.subr.mxu0 0.0
    %567 = vmatpush2.msra.mxu0 0.0
    %568 = vmatprep.subr.mxu0 0.0
    %569 = vmatpush2.msra.mxu0 0.0
    %570 = vmatprep.mubr.f32.mxu0 0.0
    %571 = vmatmul.mubr.f32.gmra.mxu0 %v433
    %v572 = vpop.f32.mrf.mxu0
    %v573 = vadd.f32 0.0, %v572
    %v574 = vpop.f32.mrf.mxu0
    %v575 = vadd.f32 0.0, %v574
    %576 = vdwg.mxu0
    %578 = vrot.lane.b32.xlu0 %v575, 32
    %v579 = vpop.permute.xlu0 %578
    %v581 = vadd.f32 %v413, %v579
    %vm582 = vcmask 336128
    %v583 = vsel %vm582, %v581, -inf
    %584 = vmax.xlane.f32.xlu0 %v583
    %v585 = vpop.xlane.xlu0 %584
    %v586 = vsub.f32 %v581, %v585
    %v587 = vmul.f32 %v586, 1.442695
    %v588 = vpow.pop %v587
    %590 = vrot.lane.b32.xlu0 %v588, 96
    %v591 = vpop.permute.xlu0 %590
    %vm593 = vcmask 73728
    %v594 = vsel %vm593, %v591, 0.0
    %595 = vadd.xlane.f32.xlu0 %v594
    %v596 = vpop.xlane.xlu0 %595
    %v597 = vrcp.pop %v596
    %v598 = vmul.f32 %v588, %v597
    %600 = vrot.lane.b32.xlu0 %v598, 96
    %v601 = vpop.permute.xlu0 %600
    %vm602 = vcmask 80896
    %v603 = vsel %vm602, %v601, 0
    %v606 = vsel %vm299, %v200, 0
    %608 = vmatprep.subr.mxu0 0.0
    %609 = vmatpush1.msra.mxu0 0.0
    %610 = vmatprep.subr.mxu0 0.0
    %611 = vmatpush1.msra.mxu0 0.0
    %612 = vmatprep.subr.mxu0 0.0
    %613 = vmatpush1.msra.mxu0 0.0
    %614 = vmatprep.subr.mxu0 0.0
    %615 = vmatpush1.msra.mxu0 0.0
    %616 = vmatprep.subr.mxu0 0.0
    %617 = vmatpush1.msra.mxu0 0.0
    %618 = vmatprep.subr.mxu0 0.0
    %619 = vmatpush1.msra.mxu0 0.0
    %620 = vmatprep.subr.mxu0 0.0
    %621 = vmatpush1.msra.mxu0 0.0
    %622 = vmatprep.subr.mxu0 0.0
    %623 = vmatpush1.msra.mxu0 0.0
    %624 = vmatprep.subr.mxu0 0.0
    %625 = vmatpush1.msra.mxu0 0.0
    %626 = vmatprep.subr.mxu0 0.0
    %627 = vmatpush1.msra.mxu0 0.0
    %628 = vmatprep.subr.mxu0 0.0
    %629 = vmatpush1.msra.mxu0 0.0
    %630 = vmatprep.subr.mxu0 0.0
    %631 = vmatpush1.msra.mxu0 0.0
    %632 = vmatprep.subr.mxu0 0.0
    %633 = vmatpush1.msra.mxu0 0.0
    %634 = vmatprep.subr.mxu0 0.0
    %635 = vmatpush1.msra.mxu0 0.0
    %636 = vmatprep.subr.mxu0 0.0
    %637 = vmatpush1.msra.mxu0 %v606
    %638 = vmatprep.subr.mxu0 0.0
    %639 = vmatpush1.msra.mxu0 %v195
    %640 = vmatprep.subr.mxu0 0.0
    %641 = vmatpush2.msra.mxu0 0.0
    %642 = vmatprep.subr.mxu0 0.0
    %643 = vmatpush2.msra.mxu0 0.0
    %644 = vmatprep.subr.mxu0 0.0
    %645 = vmatpush2.msra.mxu0 0.0
    %646 = vmatprep.subr.mxu0 0.0
    %647 = vmatpush2.msra.mxu0 0.0
    %648 = vmatprep.subr.mxu0 0.0
    %649 = vmatpush2.msra.mxu0 0.0
    %650 = vmatprep.subr.mxu0 0.0
    %651 = vmatpush2.msra.mxu0 0.0
    %652 = vmatprep.subr.mxu0 0.0
    %653 = vmatpush2.msra.mxu0 0.0
    %654 = vmatprep.subr.mxu0 0.0
    %655 = vmatpush2.msra.mxu0 0.0
    %656 = vmatprep.subr.mxu0 0.0
    %657 = vmatpush2.msra.mxu0 0.0
    %658 = vmatprep.subr.mxu0 0.0
    %659 = vmatpush2.msra.mxu0 0.0
    %660 = vmatprep.subr.mxu0 0.0
    %661 = vmatpush2.msra.mxu0 0.0
    %662 = vmatprep.subr.mxu0 0.0
    %663 = vmatpush2.msra.mxu0 0.0
    %664 = vmatprep.subr.mxu0 0.0
    %665 = vmatpush2.msra.mxu0 0.0
    %666 = vmatprep.subr.mxu0 0.0
    %667 = vmatpush2.msra.mxu0 0.0
    %668 = vmatprep.subr.mxu0 0.0
    %669 = vmatpush2.msra.mxu0 0.0
    %670 = vmatprep.subr.mxu0 0.0
    %671 = vmatpush2.msra.mxu0 0.0
    %672 = vmatprep.mubr.f32.mxu0 0.0
    %673 = vmatmul.mubr.f32.gmra.mxu0 %v603
    %v674 = vpop.f32.mrf.mxu0
    %v675 = vadd.f32 0.0, %v674
    %v676 = vpop.f32.mrf.mxu0
    %677 = vdwg.mxu0
    %v678 = vadd.f32 %v403, %v675
    %v679 = vmax.f32 %v678, 0.0
    %v680 = vld [vmem:[#allocation9] sm:$0xff]
    %v681 = vld [vmem:[#allocation9 + $0x8] sm:$0xff]
    %v682 = vld [vmem:[#allocation9 + $0x10] sm:$0xff]
    %v683 = vld [vmem:[#allocation9 + $0x18] sm:$0xff]
    %v684 = vld [vmem:[#allocation9 + $0x20] sm:$0xff]
    %v685 = vld [vmem:[#allocation9 + $0x28] sm:$0xff]
    %v686 = vld [vmem:[#allocation9 + $0x30] sm:$0xff]
    %v687 = vld [vmem:[#allocation9 + $0x38] sm:$0xff]
    %v688 = vld [vmem:[#allocation9 + $0x40] sm:$0xff]
    %v689 = vld [vmem:[#allocation9 + $0x48] sm:$0xff]
    %v690 = vld [vmem:[#allocation9 + $0x50] sm:$0xff]
    %v691 = vld [vmem:[#allocation9 + $0x58] sm:$0xff]
    %v693 = vlaneseq
    %v694 = vshrl.u32 %v693, 7
    %v695 = vsub.s32 0, %v694
    %v696 = vrot.slane %v110, %v695
    %v697 = vlaneseq
    %v698 = vshrl.u32 %v697, 7
    %v699 = vsub.s32 1, %v698
    %v700 = vrot.slane %v110, %v699
    %v701 = vlaneseq
    %v702 = vshrl.u32 %v701, 7
    %v703 = vsub.s32 2, %v702
    %v704 = vrot.slane %v110, %v703
    %v709 = vsel %vm121, %v679, 0
    %711 = vmatprep.subr.mxu0 0.0
    %712 = vmatpush1.msra.mxu0 0.0
    %713 = vmatprep.subr.mxu0 0.0
    %714 = vmatpush1.msra.mxu0 0.0
    %715 = vmatprep.subr.mxu0 0.0
    %716 = vmatpush1.msra.mxu0 0.0
    %717 = vmatprep.subr.mxu0 0.0
    %718 = vmatpush1.msra.mxu0 0.0
    %719 = vmatprep.subr.mxu0 0.0
    %720 = vmatpush1.msra.mxu0 0.0
    %721 = vmatprep.subr.mxu0 0.0
    %722 = vmatpush1.msra.mxu0 0.0
    %723 = vmatprep.subr.mxu0 0.0
    %724 = vmatpush1.msra.mxu0 0.0
    %725 = vmatprep.subr.mxu0 0.0
    %726 = vmatpush1.msra.mxu0 0.0
    %727 = vmatprep.subr.mxu0 0.0
    %728 = vmatpush1.msra.mxu0 0.0
    %729 = vmatprep.subr.mxu0 0.0
    %730 = vmatpush1.msra.mxu0 0.0
    %731 = vmatprep.subr.mxu0 0.0
    %732 = vmatpush1.msra.mxu0 0.0
    %733 = vmatprep.subr.mxu0 0.0
    %734 = vmatpush1.msra.mxu0 0.0
    %735 = vmatprep.subr.mxu0 %v690
    %736 = vmatpush1.msra.mxu0 %v689
    %737 = vmatprep.subr.mxu0 %v687
    %738 = vmatpush1.msra.mxu0 %v686
    %739 = vmatprep.subr.mxu0 %v684
    %740 = vmatpush1.msra.mxu0 %v683
    %741 = vmatprep.subr.mxu0 %v681
    %742 = vmatpush1.msra.mxu0 %v680
    %743 = vmatprep.subr.mxu0 0.0
    %744 = vmatpush2.msra.mxu0 0.0
    %745 = vmatprep.subr.mxu0 0.0
    %746 = vmatpush2.msra.mxu0 0.0
    %747 = vmatprep.subr.mxu0 0.0
    %748 = vmatpush2.msra.mxu0 0.0
    %749 = vmatprep.subr.mxu0 0.0
    %750 = vmatpush2.msra.mxu0 0.0
    %751 = vmatprep.subr.mxu0 0.0
    %752 = vmatpush2.msra.mxu0 0.0
    %753 = vmatprep.subr.mxu0 0.0
    %754 = vmatpush2.msra.mxu0 0.0
    %755 = vmatprep.subr.mxu0 0.0
    %756 = vmatpush2.msra.mxu0 0.0
    %757 = vmatprep.subr.mxu0 0.0
    %758 = vmatpush2.msra.mxu0 0.0
    %759 = vmatprep.subr.mxu0 0.0
    %760 = vmatpush2.msra.mxu0 0.0
    %761 = vmatprep.subr.mxu0 0.0
    %762 = vmatpush2.msra.mxu0 0.0
    %763 = vmatprep.subr.mxu0 0.0
    %764 = vmatpush2.msra.mxu0 0.0
    %765 = vmatprep.subr.mxu0 0.0
    %766 = vmatpush2.msra.mxu0 0.0
    %767 = vmatprep.subr.mxu0 0.0
    %768 = vmatpush2.msra.mxu0 0.0
    %769 = vmatprep.subr.mxu0 0.0
    %770 = vmatpush2.msra.mxu0 0.0
    %771 = vmatprep.subr.mxu0 0.0
    %772 = vmatpush2.msra.mxu0 0.0
    %773 = vmatprep.subr.mxu0 0.0
    %774 = vmatpush2.msra.mxu0 0.0
    %775 = vmatprep.mubr.f32.mxu0 0.0
    %776 = vmatmul.mubr.f32.gmra.mxu0 %v709
    %v777 = vpop.f32.mrf.mxu0
    %v778 = vadd.f32 %v696, %v777
    %v779 = vpop.f32.mrf.mxu0
    %v780 = vadd.f32 %v700, %v779
    %781 = vdwg.mxu0
    %782 = vmatprep.subr.mxu0 0.0
    %783 = vmatpush1.msra.mxu0 0.0
    %784 = vmatprep.subr.mxu0 0.0
    %785 = vmatpush1.msra.mxu0 0.0
    %786 = vmatprep.subr.mxu0 0.0
    %787 = vmatpush1.msra.mxu0 0.0
    %788 = vmatprep.subr.mxu0 0.0
    %789 = vmatpush1.msra.mxu0 0.0
    %790 = vmatprep.subr.mxu0 0.0
    %791 = vmatpush1.msra.mxu0 0.0
    %792 = vmatprep.subr.mxu0 0.0
    %793 = vmatpush1.msra.mxu0 0.0
    %794 = vmatprep.subr.mxu0 0.0
    %795 = vmatpush1.msra.mxu0 0.0
    %796 = vmatprep.subr.mxu0 0.0
    %797 = vmatpush1.msra.mxu0 0.0
    %798 = vmatprep.subr.mxu0 0.0
    %799 = vmatpush1.msra.mxu0 0.0
    %800 = vmatprep.subr.mxu0 0.0
    %801 = vmatpush1.msra.mxu0 0.0
    %802 = vmatprep.subr.mxu0 0.0
    %803 = vmatpush1.msra.mxu0 0.0
    %804 = vmatprep.subr.mxu0 0.0
    %805 = vmatpush1.msra.mxu0 0.0
    %806 = vmatprep.subr.mxu0 0.0
    %807 = vmatpush1.msra.mxu0 %v691
    %808 = vmatprep.subr.mxu0 0.0
    %809 = vmatpush1.msra.mxu0 %v688
    %810 = vmatprep.subr.mxu0 0.0
    %811 = vmatpush1.msra.mxu0 %v685
    %812 = vmatprep.subr.mxu0 0.0
    %813 = vmatpush1.msra.mxu0 %v682
    %814 = vmatprep.subr.mxu0 0.0
    %815 = vmatpush2.msra.mxu0 0.0
    %816 = vmatprep.subr.mxu0 0.0
    %817 = vmatpush2.msra.mxu0 0.0
    %818 = vmatprep.subr.mxu0 0.0
    %819 = vmatpush2.msra.mxu0 0.0
    %820 = vmatprep.subr.mxu0 0.0
    %821 = vmatpush2.msra.mxu0 0.0
    %822 = vmatprep.subr.mxu0 0.0
    %823 = vmatpush2.msra.mxu0 0.0
    %824 = vmatprep.subr.mxu0 0.0
    %825 = vmatpush2.msra.mxu0 0.0
    %826 = vmatprep.subr.mxu0 0.0
    %827 = vmatpush2.msra.mxu0 0.0
    %828 = vmatprep.subr.mxu0 0.0
    %829 = vmatpush2.msra.mxu0 0.0
    %830 = vmatprep.subr.mxu0 0.0
    %831 = vmatpush2.msra.mxu0 0.0
    %832 = vmatprep.subr.mxu0 0.0
    %833 = vmatpush2.msra.mxu0 0.0
    %834 = vmatprep.subr.mxu0 0.0
    %835 = vmatpush2.msra.mxu0 0.0
    %836 = vmatprep.subr.mxu0 0.0
    %837 = vmatpush2.msra.mxu0 0.0
    %838 = vmatprep.subr.mxu0 0.0
    %839 = vmatpush2.msra.mxu0 0.0
    %840 = vmatprep.subr.mxu0 0.0
    %841 = vmatpush2.msra.mxu0 0.0
    %842 = vmatprep.subr.mxu0 0.0
    %843 = vmatpush2.msra.mxu0 0.0
    %844 = vmatprep.subr.mxu0 0.0
    %845 = vmatpush2.msra.mxu0 0.0
    %846 = vmatprep.mubr.f32.mxu0 0.0
    %847 = vmatmul.mubr.f32.gmra.mxu0 %v709
    %v848 = vpop.f32.mrf.mxu0
    %v849 = vadd.f32 %v704, %v848
    %v850 = vpop.f32.mrf.mxu0
    %851 = vdwg.mxu0
    %v853 = vlaneseq
    %v854 = vshrl.u32 %v853, 7
    %v855 = vsub.s32 0, %v854
    %v856 = vrot.slane %v111, %v855
    %v857 = vlaneseq
    %v858 = vshrl.u32 %v857, 7
    %v859 = vsub.s32 1, %v858
    %v860 = vrot.slane %v111, %v859
    %v861 = vlaneseq
    %v862 = vshrl.u32 %v861, 7
    %v863 = vsub.s32 2, %v862
    %v864 = vrot.slane %v111, %v863
    %v868 = vadd.f32 %v502, %v856
    %v869 = vadd.f32 %v504, %v860
    %v870 = vadd.f32 %v573, %v864
    %v871 = vadd.f32 %v778, %v868
    %v872 = vxor.u32 %v871, 2147483648
    %v873 = vmul.f32 %v872, 1.442695
    %v874 = vpow.pop %v873
    %v875 = vadd.f32 %v874, 1.0
    %v876 = vrcp.pop %v875
    %v877 = vmul.f32 1.0, %v876
    %v878 = vadd.f32 %v780, %v869
    %v879 = vxor.u32 %v878, 2147483648
    %v880 = vmul.f32 %v879, 1.442695
    %v881 = vpow.pop %v880
    %v882 = vadd.f32 %v881, 1.0
    %v883 = vrcp.pop %v882
    %v884 = vmul.f32 1.0, %v883
    %v885 = vmul.f32 %v877, %v870
    %v886 = vadd.f32 %v849, %v885
    %v887 = vtanh.pop %v886
    %v888 = vsub.f32 1.0, %v884
    %v889 = vmul.f32 %v888, %v887
    %v890 = vmul.f32 %v884, %v415
    %v891 = vadd.f32 %v889, %v890
    %v893 = vsel %vm121, %v891, 0
    %895 = vmatprep.subr.mxu0 0.0
    %896 = vmatpush1.msra.mxu0 0.0
    %897 = vmatprep.subr.mxu0 0.0
    %898 = vmatpush1.msra.mxu0 0.0
    %899 = vmatprep.subr.mxu0 0.0
    %900 = vmatpush1.msra.mxu0 0.0
    %901 = vmatprep.subr.mxu0 0.0
    %902 = vmatpush1.msra.mxu0 0.0
    %903 = vmatprep.subr.mxu0 0.0
    %904 = vmatpush1.msra.mxu0 0.0
    %905 = vmatprep.subr.mxu0 0.0
    %906 = vmatpush1.msra.mxu0 0.0
    %907 = vmatprep.subr.mxu0 0.0
    %908 = vmatpush1.msra.mxu0 0.0
    %909 = vmatprep.subr.mxu0 0.0
    %910 = vmatpush1.msra.mxu0 0.0
    %911 = vmatprep.subr.mxu0 0.0
    %912 = vmatpush1.msra.mxu0 0.0
    %913 = vmatprep.subr.mxu0 0.0
    %914 = vmatpush1.msra.mxu0 0.0
    %915 = vmatprep.subr.mxu0 0.0
    %916 = vmatpush1.msra.mxu0 0.0
    %917 = vmatprep.subr.mxu0 0.0
    %918 = vmatpush1.msra.mxu0 0.0
    %919 = vmatprep.subr.mxu0 %v429
    %920 = vmatpush1.msra.mxu0 %v428
    %921 = vmatprep.subr.mxu0 %v425
    %922 = vmatpush1.msra.mxu0 %v424
    %923 = vmatprep.subr.mxu0 %v421
    %924 = vmatpush1.msra.mxu0 %v420
    %925 = vmatprep.subr.mxu0 %v417
    %926 = vmatpush1.msra.mxu0 %v416
    %927 = vmatprep.subr.mxu0 0.0
    %928 = vmatpush2.msra.mxu0 0.0
    %929 = vmatprep.subr.mxu0 0.0
    %930 = vmatpush2.msra.mxu0 0.0
    %931 = vmatprep.subr.mxu0 0.0
    %932 = vmatpush2.msra.mxu0 0.0
    %933 = vmatprep.subr.mxu0 0.0
    %934 = vmatpush2.msra.mxu0 0.0
    %935 = vmatprep.subr.mxu0 0.0
    %936 = vmatpush2.msra.mxu0 0.0
    %937 = vmatprep.subr.mxu0 0.0
    %938 = vmatpush2.msra.mxu0 0.0
    %939 = vmatprep.subr.mxu0 0.0
    %940 = vmatpush2.msra.mxu0 0.0
    %941 = vmatprep.subr.mxu0 0.0
    %942 = vmatpush2.msra.mxu0 0.0
    %943 = vmatprep.subr.mxu0 0.0
    %944 = vmatpush2.msra.mxu0 0.0
    %945 = vmatprep.subr.mxu0 0.0
    %946 = vmatpush2.msra.mxu0 0.0
    %947 = vmatprep.subr.mxu0 0.0
    %948 = vmatpush2.msra.mxu0 0.0
    %949 = vmatprep.subr.mxu0 0.0
    %950 = vmatpush2.msra.mxu0 0.0
    %951 = vmatprep.subr.mxu0 0.0
    %952 = vmatpush2.msra.mxu0 0.0
    %953 = vmatprep.subr.mxu0 0.0
    %954 = vmatpush2.msra.mxu0 0.0
    %955 = vmatprep.subr.mxu0 0.0
    %956 = vmatpush2.msra.mxu0 0.0
    %957 = vmatprep.subr.mxu0 0.0
    %958 = vmatpush2.msra.mxu0 0.0
    %959 = vmatprep.mubr.f32.mxu0 0.0
    %960 = vmatmul.mubr.f32.gmra.mxu0 %v893
    %v961 = vpop.f32.mrf.mxu0
    %v962 = vadd.f32 0.0, %v961
    %v963 = vpop.f32.mrf.mxu0
    %v964 = vadd.f32 0.0, %v963
    %965 = vdwg.mxu0
    %966 = vmatprep.subr.mxu0 0.0
    %967 = vmatpush1.msra.mxu0 0.0
    %968 = vmatprep.subr.mxu0 0.0
    %969 = vmatpush1.msra.mxu0 0.0
    %970 = vmatprep.subr.mxu0 0.0
    %971 = vmatpush1.msra.mxu0 0.0
    %972 = vmatprep.subr.mxu0 0.0
    %973 = vmatpush1.msra.mxu0 0.0
    %974 = vmatprep.subr.mxu0 0.0
    %975 = vmatpush1.msra.mxu0 0.0
    %976 = vmatprep.subr.mxu0 0.0
    %977 = vmatpush1.msra.mxu0 0.0
    %978 = vmatprep.subr.mxu0 0.0
    %979 = vmatpush1.msra.mxu0 0.0
    %980 = vmatprep.subr.mxu0 0.0
    %981 = vmatpush1.msra.mxu0 0.0
    %982 = vmatprep.subr.mxu0 0.0
    %983 = vmatpush1.msra.mxu0 0.0
    %984 = vmatprep.subr.mxu0 0.0
    %985 = vmatpush1.msra.mxu0 0.0
    %986 = vmatprep.subr.mxu0 0.0
    %987 = vmatpush1.msra.mxu0 0.0
    %988 = vmatprep.subr.mxu0 0.0
    %989 = vmatpush1.msra.mxu0 0.0
    %990 = vmatprep.subr.mxu0 %v431
    %991 = vmatpush1.msra.mxu0 %v430
    %992 = vmatprep.subr.mxu0 %v427
    %993 = vmatpush1.msra.mxu0 %v426
    %994 = vmatprep.subr.mxu0 %v423
    %995 = vmatpush1.msra.mxu0 %v422
    %996 = vmatprep.subr.mxu0 %v419
    %997 = vmatpush1.msra.mxu0 %v418
    %998 = vmatprep.subr.mxu0 0.0
    %999 = vmatpush2.msra.mxu0 0.0
    %1000 = vmatprep.subr.mxu0 0.0
    %1001 = vmatpush2.msra.mxu0 0.0
    %1002 = vmatprep.subr.mxu0 0.0
    %1003 = vmatpush2.msra.mxu0 0.0
    %1004 = vmatprep.subr.mxu0 0.0
    %1005 = vmatpush2.msra.mxu0 0.0
    %1006 = vmatprep.subr.mxu0 0.0
    %1007 = vmatpush2.msra.mxu0 0.0
    %1008 = vmatprep.subr.mxu0 0.0
    %1009 = vmatpush2.msra.mxu0 0.0
    %1010 = vmatprep.subr.mxu0 0.0
    %1011 = vmatpush2.msra.mxu0 0.0
    %1012 = vmatprep.subr.mxu0 0.0
    %1013 = vmatpush2.msra.mxu0 0.0
    %1014 = vmatprep.subr.mxu0 0.0
    %1015 = vmatpush2.msra.mxu0 0.0
    %1016 = vmatprep.subr.mxu0 0.0
    %1017 = vmatpush2.msra.mxu0 0.0
    %1018 = vmatprep.subr.mxu0 0.0
    %1019 = vmatpush2.msra.mxu0 0.0
    %1020 = vmatprep.subr.mxu0 0.0
    %1021 = vmatpush2.msra.mxu0 0.0
    %1022 = vmatprep.subr.mxu0 0.0
    %1023 = vmatpush2.msra.mxu0 0.0
    %1024 = vmatprep.subr.mxu0 0.0
    %1025 = vmatpush2.msra.mxu0 0.0
    %1026 = vmatprep.subr.mxu0 0.0
    %1027 = vmatpush2.msra.mxu0 0.0
    %1028 = vmatprep.subr.mxu0 0.0
    %1029 = vmatpush2.msra.mxu0 0.0
    %1030 = vmatprep.mubr.f32.mxu0 0.0
    %1031 = vmatmul.mubr.f32.gmra.mxu0 %v893
    %v1032 = vpop.f32.mrf.mxu0
    %v1033 = vadd.f32 0.0, %v1032
    %v1034 = vpop.f32.mrf.mxu0
    %v1035 = vadd.f32 0.0, %v1034
    %1036 = vdwg.mxu0
    %v1038 = vrot.slane %v1035, 7
    %1039 = vrot.lane.b32.xlu0 %v1038, 32
    %v1040 = vpop.permute.xlu0 %1039
    %v1042 = vadd.f32 %v413, %v1040
    %vm1043 = vcmask 337153
    %v1044 = vsel %vm1043, %v1042, -inf
    %1045 = vmax.xlane.f32.xlu0 %v1044
    %v1046 = vpop.xlane.xlu0 %1045
    %v1047 = vsub.f32 %v1042, %v1046
    %v1048 = vmul.f32 %v1047, 1.442695
    %v1049 = vpow.pop %v1048
    %1051 = vrot.lane.b32.xlu0 %v1049, 96
    %v1052 = vpop.permute.xlu0 %1051
    %vm1054 = vcmask 74753
    %v1055 = vsel %vm1054, %v1052, 0.0
    %1056 = vadd.xlane.f32.xlu0 %v1055
    %v1057 = vpop.xlane.xlu0 %1056
    %v1058 = vrcp.pop %v1057
    %v1059 = vmul.f32 %v1049, %v1058
    %v1061 = vrot.slane %v1059, 1
    %1062 = vrot.lane.b32.xlu0 %v1061, 96
    %v1063 = vpop.permute.xlu0 %1062
    %v1064 = vsel %vm602, %v1063, 0
    %1066 = vmatprep.subr.mxu0 0.0
    %1067 = vmatpush1.msra.mxu0 0.0
    %1068 = vmatprep.subr.mxu0 0.0
    %1069 = vmatpush1.msra.mxu0 0.0
    %1070 = vmatprep.subr.mxu0 0.0
    %1071 = vmatpush1.msra.mxu0 0.0
    %1072 = vmatprep.subr.mxu0 0.0
    %1073 = vmatpush1.msra.mxu0 0.0
    %1074 = vmatprep.subr.mxu0 0.0
    %1075 = vmatpush1.msra.mxu0 0.0
    %1076 = vmatprep.subr.mxu0 0.0
    %1077 = vmatpush1.msra.mxu0 0.0
    %1078 = vmatprep.subr.mxu0 0.0
    %1079 = vmatpush1.msra.mxu0 0.0
    %1080 = vmatprep.subr.mxu0 0.0
    %1081 = vmatpush1.msra.mxu0 0.0
    %1082 = vmatprep.subr.mxu0 0.0
    %1083 = vmatpush1.msra.mxu0 0.0
    %1084 = vmatprep.subr.mxu0 0.0
    %1085 = vmatpush1.msra.mxu0 0.0
    %1086 = vmatprep.subr.mxu0 0.0
    %1087 = vmatpush1.msra.mxu0 0.0
    %1088 = vmatprep.subr.mxu0 0.0
    %1089 = vmatpush1.msra.mxu0 0.0
    %1090 = vmatprep.subr.mxu0 0.0
    %1091 = vmatpush1.msra.mxu0 0.0
    %1092 = vmatprep.subr.mxu0 0.0
    %1093 = vmatpush1.msra.mxu0 0.0
    %1094 = vmatprep.subr.mxu0 0.0
    %1095 = vmatpush1.msra.mxu0 %v606
    %1096 = vmatprep.subr.mxu0 0.0
    %1097 = vmatpush1.msra.mxu0 %v195
    %1098 = vmatprep.subr.mxu0 0.0
    %1099 = vmatpush2.msra.mxu0 0.0
    %1100 = vmatprep.subr.mxu0 0.0
    %1101 = vmatpush2.msra.mxu0 0.0
    %1102 = vmatprep.subr.mxu0 0.0
    %1103 = vmatpush2.msra.mxu0 0.0
    %1104 = vmatprep.subr.mxu0 0.0
    %1105 = vmatpush2.msra.mxu0 0.0
    %1106 = vmatprep.subr.mxu0 0.0
    %1107 = vmatpush2.msra.mxu0 0.0
    %1108 = vmatprep.subr.mxu0 0.0
    %1109 = vmatpush2.msra.mxu0 0.0
    %1110 = vmatprep.subr.mxu0 0.0
    %1111 = vmatpush2.msra.mxu0 0.0
    %1112 = vmatprep.subr.mxu0 0.0
    %1113 = vmatpush2.msra.mxu0 0.0
    %1114 = vmatprep.subr.mxu0 0.0
    %1115 = vmatpush2.msra.mxu0 0.0
    %1116 = vmatprep.subr.mxu0 0.0
    %1117 = vmatpush2.msra.mxu0 0.0
    %1118 = vmatprep.subr.mxu0 0.0
    %1119 = vmatpush2.msra.mxu0 0.0
    %1120 = vmatprep.subr.mxu0 0.0
    %1121 = vmatpush2.msra.mxu0 0.0
    %1122 = vmatprep.subr.mxu0 0.0
    %1123 = vmatpush2.msra.mxu0 0.0
    %1124 = vmatprep.subr.mxu0 0.0
    %1125 = vmatpush2.msra.mxu0 0.0
    %1126 = vmatprep.subr.mxu0 0.0
    %1127 = vmatpush2.msra.mxu0 0.0
    %1128 = vmatprep.subr.mxu0 0.0
    %1129 = vmatpush2.msra.mxu0 0.0
    %1130 = vmatprep.mubr.f32.mxu0 0.0
    %1131 = vmatmul.mubr.f32.gmra.mxu0 %v1064
    %v1132 = vpop.f32.mrf.mxu0
    %v1133 = vadd.f32 0.0, %v1132
    %v1134 = vpop.f32.mrf.mxu0
    %1135 = vdwg.mxu0
    %v1137 = vrot.slane %v1133, 7
    %v1139 = vadd.f32 %v403, %v1137
    %v1140 = vmax.f32 %v1139, 0.0
    %v1142 = vrot.slane %v1140, 1
    %v1143 = vsel %vm121, %v1142, 0
    %1145 = vmatprep.subr.mxu0 0.0
    %1146 = vmatpush1.msra.mxu0 0.0
    %1147 = vmatprep.subr.mxu0 0.0
    %1148 = vmatpush1.msra.mxu0 0.0
    %1149 = vmatprep.subr.mxu0 0.0
    %1150 = vmatpush1.msra.mxu0 0.0
    %1151 = vmatprep.subr.mxu0 0.0
    %1152 = vmatpush1.msra.mxu0 0.0
    %1153 = vmatprep.subr.mxu0 0.0
    %1154 = vmatpush1.msra.mxu0 0.0
    %1155 = vmatprep.subr.mxu0 0.0
    %1156 = vmatpush1.msra.mxu0 0.0
    %1157 = vmatprep.subr.mxu0 0.0
    %1158 = vmatpush1.msra.mxu0 0.0
    %1159 = vmatprep.subr.mxu0 0.0
    %1160 = vmatpush1.msra.mxu0 0.0
    %1161 = vmatprep.subr.mxu0 0.0
    %1162 = vmatpush1.msra.mxu0 0.0
    %1163 = vmatprep.subr.mxu0 0.0
    %1164 = vmatpush1.msra.mxu0 0.0
    %1165 = vmatprep.subr.mxu0 0.0
    %1166 = vmatpush1.msra.mxu0 0.0
    %1167 = vmatprep.subr.mxu0 0.0
    %1168 = vmatpush1.msra.mxu0 0.0
    %1169 = vmatprep.subr.mxu0 %v690
    %1170 = vmatpush1.msra.mxu0 %v689
    %1171 = vmatprep.subr.mxu0 %v687
    %1172 = vmatpush1.msra.mxu0 %v686
    %1173 = vmatprep.subr.mxu0 %v684
    %1174 = vmatpush1.msra.mxu0 %v683
    %1175 = vmatprep.subr.mxu0 %v681
    %1176 = vmatpush1.msra.mxu0 %v680
    %1177 = vmatprep.subr.mxu0 0.0
    %1178 = vmatpush2.msra.mxu0 0.0
    %1179 = vmatprep.subr.mxu0 0.0
    %1180 = vmatpush2.msra.mxu0 0.0
    %1181 = vmatprep.subr.mxu0 0.0
    %1182 = vmatpush2.msra.mxu0 0.0
    %1183 = vmatprep.subr.mxu0 0.0
    %1184 = vmatpush2.msra.mxu0 0.0
    %1185 = vmatprep.subr.mxu0 0.0
    %1186 = vmatpush2.msra.mxu0 0.0
    %1187 = vmatprep.subr.mxu0 0.0
    %1188 = vmatpush2.msra.mxu0 0.0
    %1189 = vmatprep.subr.mxu0 0.0
    %1190 = vmatpush2.msra.mxu0 0.0
    %1191 = vmatprep.subr.mxu0 0.0
    %1192 = vmatpush2.msra.mxu0 0.0
    %1193 = vmatprep.subr.mxu0 0.0
    %1194 = vmatpush2.msra.mxu0 0.0
    %1195 = vmatprep.subr.mxu0 0.0
    %1196 = vmatpush2.msra.mxu0 0.0
    %1197 = vmatprep.subr.mxu0 0.0
    %1198 = vmatpush2.msra.mxu0 0.0
    %1199 = vmatprep.subr.mxu0 0.0
    %1200 = vmatpush2.msra.mxu0 0.0
    %1201 = vmatprep.subr.mxu0 0.0
    %1202 = vmatpush2.msra.mxu0 0.0
    %1203 = vmatprep.subr.mxu0 0.0
    %1204 = vmatpush2.msra.mxu0 0.0
    %1205 = vmatprep.subr.mxu0 0.0
    %1206 = vmatpush2.msra.mxu0 0.0
    %1207 = vmatprep.subr.mxu0 0.0
    %1208 = vmatpush2.msra.mxu0 0.0
    %1209 = vmatprep.mubr.f32.mxu0 0.0
    %1210 = vmatmul.mubr.f32.gmra.mxu0 %v1143
    %v1211 = vpop.f32.mrf.mxu0
    %v1212 = vadd.f32 %v696, %v1211
    %v1213 = vpop.f32.mrf.mxu0
    %v1214 = vadd.f32 %v700, %v1213
    %1215 = vdwg.mxu0
    %1216 = vmatprep.subr.mxu0 0.0
    %1217 = vmatpush1.msra.mxu0 0.0
    %1218 = vmatprep.subr.mxu0 0.0
    %1219 = vmatpush1.msra.mxu0 0.0
    %1220 = vmatprep.subr.mxu0 0.0
    %1221 = vmatpush1.msra.mxu0 0.0
    %1222 = vmatprep.subr.mxu0 0.0
    %1223 = vmatpush1.msra.mxu0 0.0
    %1224 = vmatprep.subr.mxu0 0.0
    %1225 = vmatpush1.msra.mxu0 0.0
    %1226 = vmatprep.subr.mxu0 0.0
    %1227 = vmatpush1.msra.mxu0 0.0
    %1228 = vmatprep.subr.mxu0 0.0
    %1229 = vmatpush1.msra.mxu0 0.0
    %1230 = vmatprep.subr.mxu0 0.0
    %1231 = vmatpush1.msra.mxu0 0.0
    %1232 = vmatprep.subr.mxu0 0.0
    %1233 = vmatpush1.msra.mxu0 0.0
    %1234 = vmatprep.subr.mxu0 0.0
    %1235 = vmatpush1.msra.mxu0 0.0
    %1236 = vmatprep.subr.mxu0 0.0
    %1237 = vmatpush1.msra.mxu0 0.0
    %1238 = vmatprep.subr.mxu0 0.0
    %1239 = vmatpush1.msra.mxu0 0.0
    %1240 = vmatprep.subr.mxu0 0.0
    %1241 = vmatpush1.msra.mxu0 %v691
    %1242 = vmatprep.subr.mxu0 0.0
    %1243 = vmatpush1.msra.mxu0 %v688
    %1244 = vmatprep.subr.mxu0 0.0
    %1245 = vmatpush1.msra.mxu0 %v685
    %1246 = vmatprep.subr.mxu0 0.0
    %1247 = vmatpush1.msra.mxu0 %v682
    %1248 = vmatprep.subr.mxu0 0.0
    %1249 = vmatpush2.msra.mxu0 0.0
    %1250 = vmatprep.subr.mxu0 0.0
    %1251 = vmatpush2.msra.mxu0 0.0
    %1252 = vmatprep.subr.mxu0 0.0
    %1253 = vmatpush2.msra.mxu0 0.0
    %1254 = vmatprep.subr.mxu0 0.0
    %1255 = vmatpush2.msra.mxu0 0.0
    %1256 = vmatprep.subr.mxu0 0.0
    %1257 = vmatpush2.msra.mxu0 0.0
    %1258 = vmatprep.subr.mxu0 0.0
    %1259 = vmatpush2.msra.mxu0 0.0
    %1260 = vmatprep.subr.mxu0 0.0
    %1261 = vmatpush2.msra.mxu0 0.0
    %1262 = vmatprep.subr.mxu0 0.0
    %1263 = vmatpush2.msra.mxu0 0.0
    %1264 = vmatprep.subr.mxu0 0.0
    %1265 = vmatpush2.msra.mxu0 0.0
    %1266 = vmatprep.subr.mxu0 0.0
    %1267 = vmatpush2.msra.mxu0 0.0
    %1268 = vmatprep.subr.mxu0 0.0
    %1269 = vmatpush2.msra.mxu0 0.0
    %1270 = vmatprep.subr.mxu0 0.0
    %1271 = vmatpush2.msra.mxu0 0.0
    %1272 = vmatprep.subr.mxu0 0.0
    %1273 = vmatpush2.msra.mxu0 0.0
    %1274 = vmatprep.subr.mxu0 0.0
    %1275 = vmatpush2.msra.mxu0 0.0
    %1276 = vmatprep.subr.mxu0 0.0
    %1277 = vmatpush2.msra.mxu0 0.0
    %1278 = vmatprep.subr.mxu0 0.0
    %1279 = vmatpush2.msra.mxu0 0.0
    %1280 = vmatprep.mubr.f32.mxu0 0.0
    %1281 = vmatmul.mubr.f32.gmra.mxu0 %v1143
    %v1282 = vpop.f32.mrf.mxu0
    %v1283 = vadd.f32 %v704, %v1282
    %v1284 = vpop.f32.mrf.mxu0
    %1285 = vdwg.mxu0
    %v1286 = vadd.f32 %v962, %v856
    %v1287 = vadd.f32 %v964, %v860
    %v1288 = vadd.f32 %v1033, %v864
    %v1289 = vadd.f32 %v1212, %v1286
    %v1290 = vxor.u32 %v1289, 2147483648
    %v1291 = vmul.f32 %v1290, 1.442695
    %v1292 = vpow.pop %v1291
    %v1293 = vadd.f32 %v1292, 1.0
    %v1294 = vrcp.pop %v1293
    %v1295 = vmul.f32 1.0, %v1294
    %v1296 = vadd.f32 %v1214, %v1287
    %v1297 = vxor.u32 %v1296, 2147483648
    %v1298 = vmul.f32 %v1297, 1.442695
    %v1299 = vpow.pop %v1298
    %v1300 = vadd.f32 %v1299, 1.0
    %v1301 = vrcp.pop %v1300
    %v1302 = vmul.f32 1.0, %v1301
    %v1303 = vmul.f32 %v1295, %v1288
    %v1304 = vadd.f32 %v1283, %v1303
    %v1305 = vtanh.pop %v1304
    %v1306 = vsub.f32 1.0, %v1302
    %v1307 = vmul.f32 %v1306, %v1305
    %v1308 = vmul.f32 %v1302, %v891
    %v1309 = vadd.f32 %v1307, %v1308
    %v1311 = vsel %vm121, %v1309, 0
    %1313 = vmatprep.subr.mxu0 0.0
    %1314 = vmatpush1.msra.mxu0 0.0
    %1315 = vmatprep.subr.mxu0 0.0
    %1316 = vmatpush1.msra.mxu0 0.0
    %1317 = vmatprep.subr.mxu0 0.0
    %1318 = vmatpush1.msra.mxu0 0.0
    %1319 = vmatprep.subr.mxu0 0.0
    %1320 = vmatpush1.msra.mxu0 0.0
    %1321 = vmatprep.subr.mxu0 0.0
    %1322 = vmatpush1.msra.mxu0 0.0
    %1323 = vmatprep.subr.mxu0 0.0
    %1324 = vmatpush1.msra.mxu0 0.0
    %1325 = vmatprep.subr.mxu0 0.0
    %1326 = vmatpush1.msra.mxu0 0.0
    %1327 = vmatprep.subr.mxu0 0.0
    %1328 = vmatpush1.msra.mxu0 0.0
    %1329 = vmatprep.subr.mxu0 0.0
    %1330 = vmatpush1.msra.mxu0 0.0
    %1331 = vmatprep.subr.mxu0 0.0
    %1332 = vmatpush1.msra.mxu0 0.0
    %1333 = vmatprep.subr.mxu0 0.0
    %1334 = vmatpush1.msra.mxu0 0.0
    %1335 = vmatprep.subr.mxu0 0.0
    %1336 = vmatpush1.msra.mxu0 0.0
    %1337 = vmatprep.subr.mxu0 %v429
    %1338 = vmatpush1.msra.mxu0 %v428
    %1339 = vmatprep.subr.mxu0 %v425
    %1340 = vmatpush1.msra.mxu0 %v424
    %1341 = vmatprep.subr.mxu0 %v421
    %1342 = vmatpush1.msra.mxu0 %v420
    %1343 = vmatprep.subr.mxu0 %v417
    %1344 = vmatpush1.msra.mxu0 %v416
    %1345 = vmatprep.subr.mxu0 0.0
    %1346 = vmatpush2.msra.mxu0 0.0
    %1347 = vmatprep.subr.mxu0 0.0
    %1348 = vmatpush2.msra.mxu0 0.0
    %1349 = vmatprep.subr.mxu0 0.0
    %1350 = vmatpush2.msra.mxu0 0.0
    %1351 = vmatprep.subr.mxu0 0.0
    %1352 = vmatpush2.msra.mxu0 0.0
    %1353 = vmatprep.subr.mxu0 0.0
    %1354 = vmatpush2.msra.mxu0 0.0
    %1355 = vmatprep.subr.mxu0 0.0
    %1356 = vmatpush2.msra.mxu0 0.0
    %1357 = vmatprep.subr.mxu0 0.0
    %1358 = vmatpush2.msra.mxu0 0.0
    %1359 = vmatprep.subr.mxu0 0.0
    %1360 = vmatpush2.msra.mxu0 0.0
    %1361 = vmatprep.subr.mxu0 0.0
    %1362 = vmatpush2.msra.mxu0 0.0
    %1363 = vmatprep.subr.mxu0 0.0
    %1364 = vmatpush2.msra.mxu0 0.0
    %1365 = vmatprep.subr.mxu0 0.0
    %1366 = vmatpush2.msra.mxu0 0.0
    %1367 = vmatprep.subr.mxu0 0.0
    %1368 = vmatpush2.msra.mxu0 0.0
    %1369 = vmatprep.subr.mxu0 0.0
    %1370 = vmatpush2.msra.mxu0 0.0
    %1371 = vmatprep.subr.mxu0 0.0
    %1372 = vmatpush2.msra.mxu0 0.0
    %1373 = vmatprep.subr.mxu0 0.0
    %1374 = vmatpush2.msra.mxu0 0.0
    %1375 = vmatprep.subr.mxu0 0.0
    %1376 = vmatpush2.msra.mxu0 0.0
    %1377 = vmatprep.mubr.f32.mxu0 0.0
    %1378 = vmatmul.mubr.f32.gmra.mxu0 %v1311
    %v1379 = vpop.f32.mrf.mxu0
    %v1380 = vadd.f32 0.0, %v1379
    %v1381 = vpop.f32.mrf.mxu0
    %v1382 = vadd.f32 0.0, %v1381
    %1383 = vdwg.mxu0
    %1384 = vmatprep.subr.mxu0 0.0
    %1385 = vmatpush1.msra.mxu0 0.0
    %1386 = vmatprep.subr.mxu0 0.0
    %1387 = vmatpush1.msra.mxu0 0.0
    %1388 = vmatprep.subr.mxu0 0.0
    %1389 = vmatpush1.msra.mxu0 0.0
    %1390 = vmatprep.subr.mxu0 0.0
    %1391 = vmatpush1.msra.mxu0 0.0
    %1392 = vmatprep.subr.mxu0 0.0
    %1393 = vmatpush1.msra.mxu0 0.0
    %1394 = vmatprep.subr.mxu0 0.0
    %1395 = vmatpush1.msra.mxu0 0.0
    %1396 = vmatprep.subr.mxu0 0.0
    %1397 = vmatpush1.msra.mxu0 0.0
    %1398 = vmatprep.subr.mxu0 0.0
    %1399 = vmatpush1.msra.mxu0 0.0
    %1400 = vmatprep.subr.mxu0 0.0
    %1401 = vmatpush1.msra.mxu0 0.0
    %1402 = vmatprep.subr.mxu0 0.0
    %1403 = vmatpush1.msra.mxu0 0.0
    %1404 = vmatprep.subr.mxu0 0.0
    %1405 = vmatpush1.msra.mxu0 0.0
    %1406 = vmatprep.subr.mxu0 0.0
    %1407 = vmatpush1.msra.mxu0 0.0
    %1408 = vmatprep.subr.mxu0 %v431
    %1409 = vmatpush1.msra.mxu0 %v430
    %1410 = vmatprep.subr.mxu0 %v427
    %1411 = vmatpush1.msra.mxu0 %v426
    %1412 = vmatprep.subr.mxu0 %v423
    %1413 = vmatpush1.msra.mxu0 %v422
    %1414 = vmatprep.subr.mxu0 %v419
    %1415 = vmatpush1.msra.mxu0 %v418
    %1416 = vmatprep.subr.mxu0 0.0
    %1417 = vmatpush2.msra.mxu0 0.0
    %1418 = vmatprep.subr.mxu0 0.0
    %1419 = vmatpush2.msra.mxu0 0.0
    %1420 = vmatprep.subr.mxu0 0.0
    %1421 = vmatpush2.msra.mxu0 0.0
    %1422 = vmatprep.subr.mxu0 0.0
    %1423 = vmatpush2.msra.mxu0 0.0
    %1424 = vmatprep.subr.mxu0 0.0
    %1425 = vmatpush2.msra.mxu0 0.0
    %1426 = vmatprep.subr.mxu0 0.0
    %1427 = vmatpush2.msra.mxu0 0.0
    %1428 = vmatprep.subr.mxu0 0.0
    %1429 = vmatpush2.msra.mxu0 0.0
    %1430 = vmatprep.subr.mxu0 0.0
    %1431 = vmatpush2.msra.mxu0 0.0
    %1432 = vmatprep.subr.mxu0 0.0
    %1433 = vmatpush2.msra.mxu0 0.0
    %1434 = vmatprep.subr.mxu0 0.0
    %1435 = vmatpush2.msra.mxu0 0.0
    %1436 = vmatprep.subr.mxu0 0.0
    %1437 = vmatpush2.msra.mxu0 0.0
    %1438 = vmatprep.subr.mxu0 0.0
    %1439 = vmatpush2.msra.mxu0 0.0
    %1440 = vmatprep.subr.mxu0 0.0
    %1441 = vmatpush2.msra.mxu0 0.0
    %1442 = vmatprep.subr.mxu0 0.0
    %1443 = vmatpush2.msra.mxu0 0.0
    %1444 = vmatprep.subr.mxu0 0.0
    %1445 = vmatpush2.msra.mxu0 0.0
    %1446 = vmatprep.subr.mxu0 0.0
    %1447 = vmatpush2.msra.mxu0 0.0
    %1448 = vmatprep.mubr.f32.mxu0 0.0
    %1449 = vmatmul.mubr.f32.gmra.mxu0 %v1311
    %v1450 = vpop.f32.mrf.mxu0
    %v1451 = vadd.f32 0.0, %v1450
    %v1452 = vpop.f32.mrf.mxu0
    %v1453 = vadd.f32 0.0, %v1452
    %1454 = vdwg.mxu0
    %v1456 = vrot.slane %v1453, 6
    %1457 = vrot.lane.b32.xlu0 %v1456, 32
    %v1458 = vpop.permute.xlu0 %1457
    %v1460 = vadd.f32 %v413, %v1458
    %vm1461 = vcmask 338178
    %v1462 = vsel %vm1461, %v1460, -inf
    %1463 = vmax.xlane.f32.xlu0 %v1462
    %v1464 = vpop.xlane.xlu0 %1463
    %v1465 = vsub.f32 %v1460, %v1464
    %v1466 = vmul.f32 %v1465, 1.442695
    %v1467 = vpow.pop %v1466
    %1469 = vrot.lane.b32.xlu0 %v1467, 96
    %v1470 = vpop.permute.xlu0 %1469
    %vm1472 = vcmask 75778
    %v1473 = vsel %vm1472, %v1470, 0.0
    %1474 = vadd.xlane.f32.xlu0 %v1473
    %v1475 = vpop.xlane.xlu0 %1474
    %v1476 = vrcp.pop %v1475
    %v1477 = vmul.f32 %v1467, %v1476
    %v1479 = vrot.slane %v1477, 2
    %1480 = vrot.lane.b32.xlu0 %v1479, 96
    %v1481 = vpop.permute.xlu0 %1480
    %v1482 = vsel %vm602, %v1481, 0
    %1484 = vmatprep.subr.mxu0 0.0
    %1485 = vmatpush1.msra.mxu0 0.0
    %1486 = vmatprep.subr.mxu0 0.0
    %1487 = vmatpush1.msra.mxu0 0.0
    %1488 = vmatprep.subr.mxu0 0.0
    %1489 = vmatpush1.msra.mxu0 0.0
    %1490 = vmatprep.subr.mxu0 0.0
    %1491 = vmatpush1.msra.mxu0 0.0
    %1492 = vmatprep.subr.mxu0 0.0
    %1493 = vmatpush1.msra.mxu0 0.0
    %1494 = vmatprep.subr.mxu0 0.0
    %1495 = vmatpush1.msra.mxu0 0.0
    %1496 = vmatprep.subr.mxu0 0.0
    %1497 = vmatpush1.msra.mxu0 0.0
    %1498 = vmatprep.subr.mxu0 0.0
    %1499 = vmatpush1.msra.mxu0 0.0
    %1500 = vmatprep.subr.mxu0 0.0
    %1501 = vmatpush1.msra.mxu0 0.0
    %1502 = vmatprep.subr.mxu0 0.0
    %1503 = vmatpush1.msra.mxu0 0.0
    %1504 = vmatprep.subr.mxu0 0.0
    %1505 = vmatpush1.msra.mxu0 0.0
    %1506 = vmatprep.subr.mxu0 0.0
    %1507 = vmatpush1.msra.mxu0 0.0
    %1508 = vmatprep.subr.mxu0 0.0
    %1509 = vmatpush1.msra.mxu0 0.0
    %1510 = vmatprep.subr.mxu0 0.0
    %1511 = vmatpush1.msra.mxu0 0.0
    %1512 = vmatprep.subr.mxu0 0.0
    %1513 = vmatpush1.msra.mxu0 %v606
    %1514 = vmatprep.subr.mxu0 0.0
    %1515 = vmatpush1.msra.mxu0 %v195
    %1516 = vmatprep.subr.mxu0 0.0
    %1517 = vmatpush2.msra.mxu0 0.0
    %1518 = vmatprep.subr.mxu0 0.0
    %1519 = vmatpush2.msra.mxu0 0.0
    %1520 = vmatprep.subr.mxu0 0.0
    %1521 = vmatpush2.msra.mxu0 0.0
    %1522 = vmatprep.subr.mxu0 0.0
    %1523 = vmatpush2.msra.mxu0 0.0
    %1524 = vmatprep.subr.mxu0 0.0
    %1525 = vmatpush2.msra.mxu0 0.0
    %1526 = vmatprep.subr.mxu0 0.0
    %1527 = vmatpush2.msra.mxu0 0.0
    %1528 = vmatprep.subr.mxu0 0.0
    %1529 = vmatpush2.msra.mxu0 0.0
    %1530 = vmatprep.subr.mxu0 0.0
    %1531 = vmatpush2.msra.mxu0 0.0
    %1532 = vmatprep.subr.mxu0 0.0
    %1533 = vmatpush2.msra.mxu0 0.0
    %1534 = vmatprep.subr.mxu0 0.0
    %1535 = vmatpush2.msra.mxu0 0.0
    %1536 = vmatprep.subr.mxu0 0.0
    %1537 = vmatpush2.msra.mxu0 0.0
    %1538 = vmatprep.subr.mxu0 0.0
    %1539 = vmatpush2.msra.mxu0 0.0
    %1540 = vmatprep.subr.mxu0 0.0
    %1541 = vmatpush2.msra.mxu0 0.0
    %1542 = vmatprep.subr.mxu0 0.0
    %1543 = vmatpush2.msra.mxu0 0.0
    %1544 = vmatprep.subr.mxu0 0.0
    %1545 = vmatpush2.msra.mxu0 0.0
    %1546 = vmatprep.subr.mxu0 0.0
    %1547 = vmatpush2.msra.mxu0 0.0
    %1548 = vmatprep.mubr.f32.mxu0 0.0
    %1549 = vmatmul.mubr.f32.gmra.mxu0 %v1482
    %v1550 = vpop.f32.mrf.mxu0
    %v1551 = vadd.f32 0.0, %v1550
    %v1552 = vpop.f32.mrf.mxu0
    %1553 = vdwg.mxu0
    %v1555 = vrot.slane %v1551, 6
    %v1557 = vadd.f32 %v403, %v1555
    %v1558 = vmax.f32 %v1557, 0.0
    %v1560 = vrot.slane %v1558, 2
    %v1561 = vsel %vm121, %v1560, 0
    %1563 = vmatprep.subr.mxu0 0.0
    %1564 = vmatpush1.msra.mxu0 0.0
    %1565 = vmatprep.subr.mxu0 0.0
    %1566 = vmatpush1.msra.mxu0 0.0
    %1567 = vmatprep.subr.mxu0 0.0
    %1568 = vmatpush1.msra.mxu0 0.0
    %1569 = vmatprep.subr.mxu0 0.0
    %1570 = vmatpush1.msra.mxu0 0.0
    %1571 = vmatprep.subr.mxu0 0.0
    %1572 = vmatpush1.msra.mxu0 0.0
    %1573 = vmatprep.subr.mxu0 0.0
    %1574 = vmatpush1.msra.mxu0 0.0
    %1575 = vmatprep.subr.mxu0 0.0
    %1576 = vmatpush1.msra.mxu0 0.0
    %1577 = vmatprep.subr.mxu0 0.0
    %1578 = vmatpush1.msra.mxu0 0.0
    %1579 = vmatprep.subr.mxu0 0.0
    %1580 = vmatpush1.msra.mxu0 0.0
    %1581 = vmatprep.subr.mxu0 0.0
    %1582 = vmatpush1.msra.mxu0 0.0
    %1583 = vmatprep.subr.mxu0 0.0
    %1584 = vmatpush1.msra.mxu0 0.0
    %1585 = vmatprep.subr.mxu0 0.0
    %1586 = vmatpush1.msra.mxu0 0.0
    %1587 = vmatprep.subr.mxu0 %v690
    %1588 = vmatpush1.msra.mxu0 %v689
    %1589 = vmatprep.subr.mxu0 %v687
    %1590 = vmatpush1.msra.mxu0 %v686
    %1591 = vmatprep.subr.mxu0 %v684
    %1592 = vmatpush1.msra.mxu0 %v683
    %1593 = vmatprep.subr.mxu0 %v681
    %1594 = vmatpush1.msra.mxu0 %v680
    %1595 = vmatprep.subr.mxu0 0.0
    %1596 = vmatpush2.msra.mxu0 0.0
    %1597 = vmatprep.subr.mxu0 0.0
    %1598 = vmatpush2.msra.mxu0 0.0
    %1599 = vmatprep.subr.mxu0 0.0
    %1600 = vmatpush2.msra.mxu0 0.0
    %1601 = vmatprep.subr.mxu0 0.0
    %1602 = vmatpush2.msra.mxu0 0.0
    %1603 = vmatprep.subr.mxu0 0.0
    %1604 = vmatpush2.msra.mxu0 0.0
    %1605 = vmatprep.subr.mxu0 0.0
    %1606 = vmatpush2.msra.mxu0 0.0
    %1607 = vmatprep.subr.mxu0 0.0
    %1608 = vmatpush2.msra.mxu0 0.0
    %1609 = vmatprep.subr.mxu0 0.0
    %1610 = vmatpush2.msra.mxu0 0.0
    %1611 = vmatprep.subr.mxu0 0.0
    %1612 = vmatpush2.msra.mxu0 0.0
    %1613 = vmatprep.subr.mxu0 0.0
    %1614 = vmatpush2.msra.mxu0 0.0
    %1615 = vmatprep.subr.mxu0 0.0
    %1616 = vmatpush2.msra.mxu0 0.0
    %1617 = vmatprep.subr.mxu0 0.0
    %1618 = vmatpush2.msra.mxu0 0.0
    %1619 = vmatprep.subr.mxu0 0.0
    %1620 = vmatpush2.msra.mxu0 0.0
    %1621 = vmatprep.subr.mxu0 0.0
    %1622 = vmatpush2.msra.mxu0 0.0
    %1623 = vmatprep.subr.mxu0 0.0
    %1624 = vmatpush2.msra.mxu0 0.0
    %1625 = vmatprep.subr.mxu0 0.0
    %1626 = vmatpush2.msra.mxu0 0.0
    %1627 = vmatprep.mubr.f32.mxu0 0.0
    %1628 = vmatmul.mubr.f32.gmra.mxu0 %v1561
    %v1629 = vpop.f32.mrf.mxu0
    %v1630 = vadd.f32 %v696, %v1629
    %v1631 = vpop.f32.mrf.mxu0
    %v1632 = vadd.f32 %v700, %v1631
    %1633 = vdwg.mxu0
    %1634 = vmatprep.subr.mxu0 0.0
    %1635 = vmatpush1.msra.mxu0 0.0
    %1636 = vmatprep.subr.mxu0 0.0
    %1637 = vmatpush1.msra.mxu0 0.0
    %1638 = vmatprep.subr.mxu0 0.0
    %1639 = vmatpush1.msra.mxu0 0.0
    %1640 = vmatprep.subr.mxu0 0.0
    %1641 = vmatpush1.msra.mxu0 0.0
    %1642 = vmatprep.subr.mxu0 0.0
    %1643 = vmatpush1.msra.mxu0 0.0
    %1644 = vmatprep.subr.mxu0 0.0
    %1645 = vmatpush1.msra.mxu0 0.0
    %1646 = vmatprep.subr.mxu0 0.0
    %1647 = vmatpush1.msra.mxu0 0.0
    %1648 = vmatprep.subr.mxu0 0.0
    %1649 = vmatpush1.msra.mxu0 0.0
    %1650 = vmatprep.subr.mxu0 0.0
    %1651 = vmatpush1.msra.mxu0 0.0
    %1652 = vmatprep.subr.mxu0 0.0
    %1653 = vmatpush1.msra.mxu0 0.0
    %1654 = vmatprep.subr.mxu0 0.0
    %1655 = vmatpush1.msra.mxu0 0.0
    %1656 = vmatprep.subr.mxu0 0.0
    %1657 = vmatpush1.msra.mxu0 0.0
    %1658 = vmatprep.subr.mxu0 0.0
    %1659 = vmatpush1.msra.mxu0 %v691
    %1660 = vmatprep.subr.mxu0 0.0
    %1661 = vmatpush1.msra.mxu0 %v688
    %1662 = vmatprep.subr.mxu0 0.0
    %1663 = vmatpush1.msra.mxu0 %v685
    %1664 = vmatprep.subr.mxu0 0.0
    %1665 = vmatpush1.msra.mxu0 %v682
    %1666 = vmatprep.subr.mxu0 0.0
    %1667 = vmatpush2.msra.mxu0 0.0
    %1668 = vmatprep.subr.mxu0 0.0
    %1669 = vmatpush2.msra.mxu0 0.0
    %1670 = vmatprep.subr.mxu0 0.0
    %1671 = vmatpush2.msra.mxu0 0.0
    %1672 = vmatprep.subr.mxu0 0.0
    %1673 = vmatpush2.msra.mxu0 0.0
    %1674 = vmatprep.subr.mxu0 0.0
    %1675 = vmatpush2.msra.mxu0 0.0
    %1676 = vmatprep.subr.mxu0 0.0
    %1677 = vmatpush2.msra.mxu0 0.0
    %1678 = vmatprep.subr.mxu0 0.0
    %1679 = vmatpush2.msra.mxu0 0.0
    %1680 = vmatprep.subr.mxu0 0.0
    %1681 = vmatpush2.msra.mxu0 0.0
    %1682 = vmatprep.subr.mxu0 0.0
    %1683 = vmatpush2.msra.mxu0 0.0
    %1684 = vmatprep.subr.mxu0 0.0
    %1685 = vmatpush2.msra.mxu0 0.0
    %1686 = vmatprep.subr.mxu0 0.0
    %1687 = vmatpush2.msra.mxu0 0.0
    %1688 = vmatprep.subr.mxu0 0.0
    %1689 = vmatpush2.msra.mxu0 0.0
    %1690 = vmatprep.subr.mxu0 0.0
    %1691 = vmatpush2.msra.mxu0 0.0
    %1692 = vmatprep.subr.mxu0 0.0
    %1693 = vmatpush2.msra.mxu0 0.0
    %1694 = vmatprep.subr.mxu0 0.0
    %1695 = vmatpush2.msra.mxu0 0.0
    %1696 = vmatprep.subr.mxu0 0.0
    %1697 = vmatpush2.msra.mxu0 0.0
    %1698 = vmatprep.mubr.f32.mxu0 0.0
    %1699 = vmatmul.mubr.f32.gmra.mxu0 %v1561
    %v1700 = vpop.f32.mrf.mxu0
    %v1701 = vadd.f32 %v704, %v1700
    %v1702 = vpop.f32.mrf.mxu0
    %1703 = vdwg.mxu0
    %v1704 = vadd.f32 %v1380, %v856
    %v1705 = vadd.f32 %v1382, %v860
    %v1706 = vadd.f32 %v1451, %v864
    %v1707 = vadd.f32 %v1630, %v1704
    %v1708 = vxor.u32 %v1707, 2147483648
    %v1709 = vmul.f32 %v1708, 1.442695
    %v1710 = vpow.pop %v1709
    %v1711 = vadd.f32 %v1710, 1.0
    %v1712 = vrcp.pop %v1711
    %v1713 = vmul.f32 1.0, %v1712
    %v1714 = vadd.f32 %v1632, %v1705
    %v1715 = vxor.u32 %v1714, 2147483648
    %v1716 = vmul.f32 %v1715, 1.442695
    %v1717 = vpow.pop %v1716
    %v1718 = vadd.f32 %v1717, 1.0
    %v1719 = vrcp.pop %v1718
    %v1720 = vmul.f32 1.0, %v1719
    %v1721 = vmul.f32 %v1713, %v1706
    %v1722 = vadd.f32 %v1701, %v1721
    %v1723 = vtanh.pop %v1722
    %v1724 = vsub.f32 1.0, %v1720
    %v1725 = vmul.f32 %v1724, %v1723
    %v1726 = vmul.f32 %v1720, %v1309
    %v1727 = vadd.f32 %v1725, %v1726
    %v1729 = vsel %vm121, %v1727, 0
    %1731 = vmatprep.subr.mxu0 0.0
    %1732 = vmatpush1.msra.mxu0 0.0
    %1733 = vmatprep.subr.mxu0 0.0
    %1734 = vmatpush1.msra.mxu0 0.0
    %1735 = vmatprep.subr.mxu0 0.0
    %1736 = vmatpush1.msra.mxu0 0.0
    %1737 = vmatprep.subr.mxu0 0.0
    %1738 = vmatpush1.msra.mxu0 0.0
    %1739 = vmatprep.subr.mxu0 0.0
    %1740 = vmatpush1.msra.mxu0 0.0
    %1741 = vmatprep.subr.mxu0 0.0
    %1742 = vmatpush1.msra.mxu0 0.0
    %1743 = vmatprep.subr.mxu0 0.0
    %1744 = vmatpush1.msra.mxu0 0.0
    %1745 = vmatprep.subr.mxu0 0.0
    %1746 = vmatpush1.msra.mxu0 0.0
    %1747 = vmatprep.subr.mxu0 0.0
    %1748 = vmatpush1.msra.mxu0 0.0
    %1749 = vmatprep.subr.mxu0 0.0
    %1750 = vmatpush1.msra.mxu0 0.0
    %1751 = vmatprep.subr.mxu0 0.0
    %1752 = vmatpush1.msra.mxu0 0.0
    %1753 = vmatprep.subr.mxu0 0.0
    %1754 = vmatpush1.msra.mxu0 0.0
    %1755 = vmatprep.subr.mxu0 %v429
    %1756 = vmatpush1.msra.mxu0 %v428
    %1757 = vmatprep.subr.mxu0 %v425
    %1758 = vmatpush1.msra.mxu0 %v424
    %1759 = vmatprep.subr.mxu0 %v421
    %1760 = vmatpush1.msra.mxu0 %v420
    %1761 = vmatprep.subr.mxu0 %v417
    %1762 = vmatpush1.msra.mxu0 %v416
    %1763 = vmatprep.subr.mxu0 0.0
    %1764 = vmatpush2.msra.mxu0 0.0
    %1765 = vmatprep.subr.mxu0 0.0
    %1766 = vmatpush2.msra.mxu0 0.0
    %1767 = vmatprep.subr.mxu0 0.0
    %1768 = vmatpush2.msra.mxu0 0.0
    %1769 = vmatprep.subr.mxu0 0.0
    %1770 = vmatpush2.msra.mxu0 0.0
    %1771 = vmatprep.subr.mxu0 0.0
    %1772 = vmatpush2.msra.mxu0 0.0
    %1773 = vmatprep.subr.mxu0 0.0
    %1774 = vmatpush2.msra.mxu0 0.0
    %1775 = vmatprep.subr.mxu0 0.0
    %1776 = vmatpush2.msra.mxu0 0.0
    %1777 = vmatprep.subr.mxu0 0.0
    %1778 = vmatpush2.msra.mxu0 0.0
    %1779 = vmatprep.subr.mxu0 0.0
    %1780 = vmatpush2.msra.mxu0 0.0
    %1781 = vmatprep.subr.mxu0 0.0
    %1782 = vmatpush2.msra.mxu0 0.0
    %1783 = vmatprep.subr.mxu0 0.0
    %1784 = vmatpush2.msra.mxu0 0.0
    %1785 = vmatprep.subr.mxu0 0.0
    %1786 = vmatpush2.msra.mxu0 0.0
    %1787 = vmatprep.subr.mxu0 0.0
    %1788 = vmatpush2.msra.mxu0 0.0
    %1789 = vmatprep.subr.mxu0 0.0
    %1790 = vmatpush2.msra.mxu0 0.0
    %1791 = vmatprep.subr.mxu0 0.0
    %1792 = vmatpush2.msra.mxu0 0.0
    %1793 = vmatprep.subr.mxu0 0.0
    %1794 = vmatpush2.msra.mxu0 0.0
    %1795 = vmatprep.mubr.f32.mxu0 0.0
    %1796 = vmatmul.mubr.f32.gmra.mxu0 %v1729
    %v1797 = vpop.f32.mrf.mxu0
    %v1798 = vadd.f32 0.0, %v1797
    %v1799 = vpop.f32.mrf.mxu0
    %v1800 = vadd.f32 0.0, %v1799
    %1801 = vdwg.mxu0
    %1802 = vmatprep.subr.mxu0 0.0
    %1803 = vmatpush1.msra.mxu0 0.0
    %1804 = vmatprep.subr.mxu0 0.0
    %1805 = vmatpush1.msra.mxu0 0.0
    %1806 = vmatprep.subr.mxu0 0.0
    %1807 = vmatpush1.msra.mxu0 0.0
    %1808 = vmatprep.subr.mxu0 0.0
    %1809 = vmatpush1.msra.mxu0 0.0
    %1810 = vmatprep.subr.mxu0 0.0
    %1811 = vmatpush1.msra.mxu0 0.0
    %1812 = vmatprep.subr.mxu0 0.0
    %1813 = vmatpush1.msra.mxu0 0.0
    %1814 = vmatprep.subr.mxu0 0.0
    %1815 = vmatpush1.msra.mxu0 0.0
    %1816 = vmatprep.subr.mxu0 0.0
    %1817 = vmatpush1.msra.mxu0 0.0
    %1818 = vmatprep.subr.mxu0 0.0
    %1819 = vmatpush1.msra.mxu0 0.0
    %1820 = vmatprep.subr.mxu0 0.0
    %1821 = vmatpush1.msra.mxu0 0.0
    %1822 = vmatprep.subr.mxu0 0.0
    %1823 = vmatpush1.msra.mxu0 0.0
    %1824 = vmatprep.subr.mxu0 0.0
    %1825 = vmatpush1.msra.mxu0 0.0
    %1826 = vmatprep.subr.mxu0 %v431
    %1827 = vmatpush1.msra.mxu0 %v430
    %1828 = vmatprep.subr.mxu0 %v427
    %1829 = vmatpush1.msra.mxu0 %v426
    %1830 = vmatprep.subr.mxu0 %v423
    %1831 = vmatpush1.msra.mxu0 %v422
    %1832 = vmatprep.subr.mxu0 %v419
    %1833 = vmatpush1.msra.mxu0 %v418
    %1834 = vmatprep.subr.mxu0 0.0
    %1835 = vmatpush2.msra.mxu0 0.0
    %1836 = vmatprep.subr.mxu0 0.0
    %1837 = vmatpush2.msra.mxu0 0.0
    %1838 = vmatprep.subr.mxu0 0.0
    %1839 = vmatpush2.msra.mxu0 0.0
    %1840 = vmatprep.subr.mxu0 0.0
    %1841 = vmatpush2.msra.mxu0 0.0
    %1842 = vmatprep.subr.mxu0 0.0
    %1843 = vmatpush2.msra.mxu0 0.0
    %1844 = vmatprep.subr.mxu0 0.0
    %1845 = vmatpush2.msra.mxu0 0.0
    %1846 = vmatprep.subr.mxu0 0.0
    %1847 = vmatpush2.msra.mxu0 0.0
    %1848 = vmatprep.subr.mxu0 0.0
    %1849 = vmatpush2.msra.mxu0 0.0
    %1850 = vmatprep.subr.mxu0 0.0
    %1851 = vmatpush2.msra.mxu0 0.0
    %1852 = vmatprep.subr.mxu0 0.0
    %1853 = vmatpush2.msra.mxu0 0.0
    %1854 = vmatprep.subr.mxu0 0.0
    %1855 = vmatpush2.msra.mxu0 0.0
    %1856 = vmatprep.subr.mxu0 0.0
    %1857 = vmatpush2.msra.mxu0 0.0
    %1858 = vmatprep.subr.mxu0 0.0
    %1859 = vmatpush2.msra.mxu0 0.0
    %1860 = vmatprep.subr.mxu0 0.0
    %1861 = vmatpush2.msra.mxu0 0.0
    %1862 = vmatprep.subr.mxu0 0.0
    %1863 = vmatpush2.msra.mxu0 0.0
    %1864 = vmatprep.subr.mxu0 0.0
    %1865 = vmatpush2.msra.mxu0 0.0
    %1866 = vmatprep.mubr.f32.mxu0 0.0
    %1867 = vmatmul.mubr.f32.gmra.mxu0 %v1729
    %v1868 = vpop.f32.mrf.mxu0
    %v1869 = vadd.f32 0.0, %v1868
    %v1870 = vpop.f32.mrf.mxu0
    %v1871 = vadd.f32 0.0, %v1870
    %1872 = vdwg.mxu0
    %v1874 = vrot.slane %v1871, 5
    %1875 = vrot.lane.b32.xlu0 %v1874, 32
    %v1876 = vpop.permute.xlu0 %1875
    %v1878 = vadd.f32 %v413, %v1876
    %vm1879 = vcmask 339203
    %v1880 = vsel %vm1879, %v1878, -inf
    %1881 = vmax.xlane.f32.xlu0 %v1880
    %v1882 = vpop.xlane.xlu0 %1881
    %v1883 = vsub.f32 %v1878, %v1882
    %v1884 = vmul.f32 %v1883, 1.442695
    %v1885 = vpow.pop %v1884
    %1887 = vrot.lane.b32.xlu0 %v1885, 96
    %v1888 = vpop.permute.xlu0 %1887
    %vm1890 = vcmask 76803
    %v1891 = vsel %vm1890, %v1888, 0.0
    %1892 = vadd.xlane.f32.xlu0 %v1891
    %v1893 = vpop.xlane.xlu0 %1892
    %v1894 = vrcp.pop %v1893
    %v1895 = vmul.f32 %v1885, %v1894
    %v1897 = vrot.slane %v1895, 3
    %1898 = vrot.lane.b32.xlu0 %v1897, 96
    %v1899 = vpop.permute.xlu0 %1898
    %v1900 = vsel %vm602, %v1899, 0
    %1902 = vmatprep.subr.mxu0 0.0
    %1903 = vmatpush1.msra.mxu0 0.0
    %1904 = vmatprep.subr.mxu0 0.0
    %1905 = vmatpush1.msra.mxu0 0.0
    %1906 = vmatprep.subr.mxu0 0.0
    %1907 = vmatpush1.msra.mxu0 0.0
    %1908 = vmatprep.subr.mxu0 0.0
    %1909 = vmatpush1.msra.mxu0 0.0
    %1910 = vmatprep.subr.mxu0 0.0
    %1911 = vmatpush1.msra.mxu0 0.0
    %1912 = vmatprep.subr.mxu0 0.0
    %1913 = vmatpush1.msra.mxu0 0.0
    %1914 = vmatprep.subr.mxu0 0.0
    %1915 = vmatpush1.msra.mxu0 0.0
    %1916 = vmatprep.subr.mxu0 0.0
    %1917 = vmatpush1.msra.mxu0 0.0
    %1918 = vmatprep.subr.mxu0 0.0
    %1919 = vmatpush1.msra.mxu0 0.0
    %1920 = vmatprep.subr.mxu0 0.0
    %1921 = vmatpush1.msra.mxu0 0.0
    %1922 = vmatprep.subr.mxu0 0.0
    %1923 = vmatpush1.msra.mxu0 0.0
    %1924 = vmatprep.subr.mxu0 0.0
    %1925 = vmatpush1.msra.mxu0 0.0
    %1926 = vmatprep.subr.mxu0 0.0
    %1927 = vmatpush1.msra.mxu0 0.0
    %1928 = vmatprep.subr.mxu0 0.0
    %1929 = vmatpush1.msra.mxu0 0.0
    %1930 = vmatprep.subr.mxu0 0.0
    %1931 = vmatpush1.msra.mxu0 %v606
    %1932 = vmatprep.subr.mxu0 0.0
    %1933 = vmatpush1.msra.mxu0 %v195
    %1934 = vmatprep.subr.mxu0 0.0
    %1935 = vmatpush2.msra.mxu0 0.0
    %1936 = vmatprep.subr.mxu0 0.0
    %1937 = vmatpush2.msra.mxu0 0.0
    %1938 = vmatprep.subr.mxu0 0.0
    %1939 = vmatpush2.msra.mxu0 0.0
    %1940 = vmatprep.subr.mxu0 0.0
    %1941 = vmatpush2.msra.mxu0 0.0
    %1942 = vmatprep.subr.mxu0 0.0
    %1943 = vmatpush2.msra.mxu0 0.0
    %1944 = vmatprep.subr.mxu0 0.0
    %1945 = vmatpush2.msra.mxu0 0.0
    %1946 = vmatprep.subr.mxu0 0.0
    %1947 = vmatpush2.msra.mxu0 0.0
    %1948 = vmatprep.subr.mxu0 0.0
    %1949 = vmatpush2.msra.mxu0 0.0
    %1950 = vmatprep.subr.mxu0 0.0
    %1951 = vmatpush2.msra.mxu0 0.0
    %1952 = vmatprep.subr.mxu0 0.0
    %1953 = vmatpush2.msra.mxu0 0.0
    %1954 = vmatprep.subr.mxu0 0.0
    %1955 = vmatpush2.msra.mxu0 0.0
    %1956 = vmatprep.subr.mxu0 0.0
    %1957 = vmatpush2.msra.mxu0 0.0
    %1958 = vmatprep.subr.mxu0 0.0
    %1959 = vmatpush2.msra.mxu0 0.0
    %1960 = vmatprep.subr.mxu0 0.0
    %1961 = vmatpush2.msra.mxu0 0.0
    %1962 = vmatprep.subr.mxu0 0.0
    %1963 = vmatpush2.msra.mxu0 0.0
    %1964 = vmatprep.subr.mxu0 0.0
    %1965 = vmatpush2.msra.mxu0 0.0
    %1966 = vmatprep.mubr.f32.mxu0 0.0
    %1967 = vmatmul.mubr.f32.gmra.mxu0 %v1900
    %v1968 = vpop.f32.mrf.mxu0
    %v1969 = vadd.f32 0.0, %v1968
    %v1970 = vpop.f32.mrf.mxu0
    %1971 = vdwg.mxu0
    %v1973 = vrot.slane %v1969, 5
    %v1975 = vadd.f32 %v403, %v1973
    %v1976 = vmax.f32 %v1975, 0.0
    %v1978 = vrot.slane %v1976, 3
    %v1979 = vsel %vm121, %v1978, 0
    %1981 = vmatprep.subr.mxu0 0.0
    %1982 = vmatpush1.msra.mxu0 0.0
    %1983 = vmatprep.subr.mxu0 0.0
    %1984 = vmatpush1.msra.mxu0 0.0
    %1985 = vmatprep.subr.mxu0 0.0
    %1986 = vmatpush1.msra.mxu0 0.0
    %1987 = vmatprep.subr.mxu0 0.0
    %1988 = vmatpush1.msra.mxu0 0.0
    %1989 = vmatprep.subr.mxu0 0.0
    %1990 = vmatpush1.msra.mxu0 0.0
    %1991 = vmatprep.subr.mxu0 0.0
    %1992 = vmatpush1.msra.mxu0 0.0
    %1993 = vmatprep.subr.mxu0 0.0
    %1994 = vmatpush1.msra.mxu0 0.0
    %1995 = vmatprep.subr.mxu0 0.0
    %1996 = vmatpush1.msra.mxu0 0.0
    %1997 = vmatprep.subr.mxu0 0.0
    %1998 = vmatpush1.msra.mxu0 0.0
    %1999 = vmatprep.subr.mxu0 0.0
    %2000 = vmatpush1.msra.mxu0 0.0
    %2001 = vmatprep.subr.mxu0 0.0
    %2002 = vmatpush1.msra.mxu0 0.0
    %2003 = vmatprep.subr.mxu0 0.0
    %2004 = vmatpush1.msra.mxu0 0.0
    %2005 = vmatprep.subr.mxu0 %v690
    %2006 = vmatpush1.msra.mxu0 %v689
    %2007 = vmatprep.subr.mxu0 %v687
    %2008 = vmatpush1.msra.mxu0 %v686
    %2009 = vmatprep.subr.mxu0 %v684
    %2010 = vmatpush1.msra.mxu0 %v683
    %2011 = vmatprep.subr.mxu0 %v681
    %2012 = vmatpush1.msra.mxu0 %v680
    %2013 = vmatprep.subr.mxu0 0.0
    %2014 = vmatpush2.msra.mxu0 0.0
    %2015 = vmatprep.subr.mxu0 0.0
    %2016 = vmatpush2.msra.mxu0 0.0
    %2017 = vmatprep.subr.mxu0 0.0
    %2018 = vmatpush2.msra.mxu0 0.0
    %2019 = vmatprep.subr.mxu0 0.0
    %2020 = vmatpush2.msra.mxu0 0.0
    %2021 = vmatprep.subr.mxu0 0.0
    %2022 = vmatpush2.msra.mxu0 0.0
    %2023 = vmatprep.subr.mxu0 0.0
    %2024 = vmatpush2.msra.mxu0 0.0
    %2025 = vmatprep.subr.mxu0 0.0
    %2026 = vmatpush2.msra.mxu0 0.0
    %2027 = vmatprep.subr.mxu0 0.0
    %2028 = vmatpush2.msra.mxu0 0.0
    %2029 = vmatprep.subr.mxu0 0.0
    %2030 = vmatpush2.msra.mxu0 0.0
    %2031 = vmatprep.subr.mxu0 0.0
    %2032 = vmatpush2.msra.mxu0 0.0
    %2033 = vmatprep.subr.mxu0 0.0
    %2034 = vmatpush2.msra.mxu0 0.0
    %2035 = vmatprep.subr.mxu0 0.0
    %2036 = vmatpush2.msra.mxu0 0.0
    %2037 = vmatprep.subr.mxu0 0.0
    %2038 = vmatpush2.msra.mxu0 0.0
    %2039 = vmatprep.subr.mxu0 0.0
    %2040 = vmatpush2.msra.mxu0 0.0
    %2041 = vmatprep.subr.mxu0 0.0
    %2042 = vmatpush2.msra.mxu0 0.0
    %2043 = vmatprep.subr.mxu0 0.0
    %2044 = vmatpush2.msra.mxu0 0.0
    %2045 = vmatprep.mubr.f32.mxu0 0.0
    %2046 = vmatmul.mubr.f32.gmra.mxu0 %v1979
    %v2047 = vpop.f32.mrf.mxu0
    %v2048 = vadd.f32 %v696, %v2047
    %v2049 = vpop.f32.mrf.mxu0
    %v2050 = vadd.f32 %v700, %v2049
    %2051 = vdwg.mxu0
    %2052 = vmatprep.subr.mxu0 0.0
    %2053 = vmatpush1.msra.mxu0 0.0
    %2054 = vmatprep.subr.mxu0 0.0
    %2055 = vmatpush1.msra.mxu0 0.0
    %2056 = vmatprep.subr.mxu0 0.0
    %2057 = vmatpush1.msra.mxu0 0.0
    %2058 = vmatprep.subr.mxu0 0.0
    %2059 = vmatpush1.msra.mxu0 0.0
    %2060 = vmatprep.subr.mxu0 0.0
    %2061 = vmatpush1.msra.mxu0 0.0
    %2062 = vmatprep.subr.mxu0 0.0
    %2063 = vmatpush1.msra.mxu0 0.0
    %2064 = vmatprep.subr.mxu0 0.0
    %2065 = vmatpush1.msra.mxu0 0.0
    %2066 = vmatprep.subr.mxu0 0.0
    %2067 = vmatpush1.msra.mxu0 0.0
    %2068 = vmatprep.subr.mxu0 0.0
    %2069 = vmatpush1.msra.mxu0 0.0
    %2070 = vmatprep.subr.mxu0 0.0
    %2071 = vmatpush1.msra.mxu0 0.0
    %2072 = vmatprep.subr.mxu0 0.0
    %2073 = vmatpush1.msra.mxu0 0.0
    %2074 = vmatprep.subr.mxu0 0.0
    %2075 = vmatpush1.msra.mxu0 0.0
    %2076 = vmatprep.subr.mxu0 0.0
    %2077 = vmatpush1.msra.mxu0 %v691
    %2078 = vmatprep.subr.mxu0 0.0
    %2079 = vmatpush1.msra.mxu0 %v688
    %2080 = vmatprep.subr.mxu0 0.0
    %2081 = vmatpush1.msra.mxu0 %v685
    %2082 = vmatprep.subr.mxu0 0.0
    %2083 = vmatpush1.msra.mxu0 %v682
    %2084 = vmatprep.subr.mxu0 0.0
    %2085 = vmatpush2.msra.mxu0 0.0
    %2086 = vmatprep.subr.mxu0 0.0
    %2087 = vmatpush2.msra.mxu0 0.0
    %2088 = vmatprep.subr.mxu0 0.0
    %2089 = vmatpush2.msra.mxu0 0.0
    %2090 = vmatprep.subr.mxu0 0.0
    %2091 = vmatpush2.msra.mxu0 0.0
    %2092 = vmatprep.subr.mxu0 0.0
    %2093 = vmatpush2.msra.mxu0 0.0
    %2094 = vmatprep.subr.mxu0 0.0
    %2095 = vmatpush2.msra.mxu0 0.0
    %2096 = vmatprep.subr.mxu0 0.0
    %2097 = vmatpush2.msra.mxu0 0.0
    %2098 = vmatprep.subr.mxu0 0.0
    %2099 = vmatpush2.msra.mxu0 0.0
    %2100 = vmatprep.subr.mxu0 0.0
    %2101 = vmatpush2.msra.mxu0 0.0
    %2102 = vmatprep.subr.mxu0 0.0
    %2103 = vmatpush2.msra.mxu0 0.0
    %2104 = vmatprep.subr.mxu0 0.0
    %2105 = vmatpush2.msra.mxu0 0.0
    %2106 = vmatprep.subr.mxu0 0.0
    %2107 = vmatpush2.msra.mxu0 0.0
    %2108 = vmatprep.subr.mxu0 0.0
    %2109 = vmatpush2.msra.mxu0 0.0
    %2110 = vmatprep.subr.mxu0 0.0
    %2111 = vmatpush2.msra.mxu0 0.0
    %2112 = vmatprep.subr.mxu0 0.0
    %2113 = vmatpush2.msra.mxu0 0.0
    %2114 = vmatprep.subr.mxu0 0.0
    %2115 = vmatpush2.msra.mxu0 0.0
    %2116 = vmatprep.mubr.f32.mxu0 0.0
    %2117 = vmatmul.mubr.f32.gmra.mxu0 %v1979
    %v2118 = vpop.f32.mrf.mxu0
    %v2119 = vadd.f32 %v704, %v2118
    %v2120 = vpop.f32.mrf.mxu0
    %2121 = vdwg.mxu0
    %v2122 = vadd.f32 %v1798, %v856
    %v2123 = vadd.f32 %v1800, %v860
    %v2124 = vadd.f32 %v1869, %v864
    %v2125 = vadd.f32 %v2048, %v2122
    %v2126 = vxor.u32 %v2125, 2147483648
    %v2127 = vmul.f32 %v2126, 1.442695
    %v2128 = vpow.pop %v2127
    %v2129 = vadd.f32 %v2128, 1.0
    %v2130 = vrcp.pop %v2129
    %v2131 = vmul.f32 1.0, %v2130
    %v2132 = vadd.f32 %v2050, %v2123
    %v2133 = vxor.u32 %v2132, 2147483648
    %v2134 = vmul.f32 %v2133, 1.442695
    %v2135 = vpow.pop %v2134
    %v2136 = vadd.f32 %v2135, 1.0
    %v2137 = vrcp.pop %v2136
    %v2138 = vmul.f32 1.0, %v2137
    %v2139 = vmul.f32 %v2131, %v2124
    %v2140 = vadd.f32 %v2119, %v2139
    %v2141 = vtanh.pop %v2140
    %v2142 = vsub.f32 1.0, %v2138
    %v2143 = vmul.f32 %v2142, %v2141
    %v2144 = vmul.f32 %v2138, %v1727
    %v2145 = vadd.f32 %v2143, %v2144
    %v2147 = vsel %vm121, %v2145, 0
    %2149 = vmatprep.subr.mxu0 0.0
    %2150 = vmatpush1.msra.mxu0 0.0
    %2151 = vmatprep.subr.mxu0 0.0
    %2152 = vmatpush1.msra.mxu0 0.0
    %2153 = vmatprep.subr.mxu0 0.0
    %2154 = vmatpush1.msra.mxu0 0.0
    %2155 = vmatprep.subr.mxu0 0.0
    %2156 = vmatpush1.msra.mxu0 0.0
    %2157 = vmatprep.subr.mxu0 0.0
    %2158 = vmatpush1.msra.mxu0 0.0
    %2159 = vmatprep.subr.mxu0 0.0
    %2160 = vmatpush1.msra.mxu0 0.0
    %2161 = vmatprep.subr.mxu0 0.0
    %2162 = vmatpush1.msra.mxu0 0.0
    %2163 = vmatprep.subr.mxu0 0.0
    %2164 = vmatpush1.msra.mxu0 0.0
    %2165 = vmatprep.subr.mxu0 0.0
    %2166 = vmatpush1.msra.mxu0 0.0
    %2167 = vmatprep.subr.mxu0 0.0
    %2168 = vmatpush1.msra.mxu0 0.0
    %2169 = vmatprep.subr.mxu0 0.0
    %2170 = vmatpush1.msra.mxu0 0.0
    %2171 = vmatprep.subr.mxu0 0.0
    %2172 = vmatpush1.msra.mxu0 0.0
    %2173 = vmatprep.subr.mxu0 %v429
    %2174 = vmatpush1.msra.mxu0 %v428
    %2175 = vmatprep.subr.mxu0 %v425
    %2176 = vmatpush1.msra.mxu0 %v424
    %2177 = vmatprep.subr.mxu0 %v421
    %2178 = vmatpush1.msra.mxu0 %v420
    %2179 = vmatprep.subr.mxu0 %v417
    %2180 = vmatpush1.msra.mxu0 %v416
    %2181 = vmatprep.subr.mxu0 0.0
    %2182 = vmatpush2.msra.mxu0 0.0
    %2183 = vmatprep.subr.mxu0 0.0
    %2184 = vmatpush2.msra.mxu0 0.0
    %2185 = vmatprep.subr.mxu0 0.0
    %2186 = vmatpush2.msra.mxu0 0.0
    %2187 = vmatprep.subr.mxu0 0.0
    %2188 = vmatpush2.msra.mxu0 0.0
    %2189 = vmatprep.subr.mxu0 0.0
    %2190 = vmatpush2.msra.mxu0 0.0
    %2191 = vmatprep.subr.mxu0 0.0
    %2192 = vmatpush2.msra.mxu0 0.0
    %2193 = vmatprep.subr.mxu0 0.0
    %2194 = vmatpush2.msra.mxu0 0.0
    %2195 = vmatprep.subr.mxu0 0.0
    %2196 = vmatpush2.msra.mxu0 0.0
    %2197 = vmatprep.subr.mxu0 0.0
    %2198 = vmatpush2.msra.mxu0 0.0
    %2199 = vmatprep.subr.mxu0 0.0
    %2200 = vmatpush2.msra.mxu0 0.0
    %2201 = vmatprep.subr.mxu0 0.0
    %2202 = vmatpush2.msra.mxu0 0.0
    %2203 = vmatprep.subr.mxu0 0.0
    %2204 = vmatpush2.msra.mxu0 0.0
    %2205 = vmatprep.subr.mxu0 0.0
    %2206 = vmatpush2.msra.mxu0 0.0
    %2207 = vmatprep.subr.mxu0 0.0
    %2208 = vmatpush2.msra.mxu0 0.0
    %2209 = vmatprep.subr.mxu0 0.0
    %2210 = vmatpush2.msra.mxu0 0.0
    %2211 = vmatprep.subr.mxu0 0.0
    %2212 = vmatpush2.msra.mxu0 0.0
    %2213 = vmatprep.mubr.f32.mxu0 0.0
    %2214 = vmatmul.mubr.f32.gmra.mxu0 %v2147
    %v2215 = vpop.f32.mrf.mxu0
    %v2216 = vadd.f32 0.0, %v2215
    %v2217 = vpop.f32.mrf.mxu0
    %v2218 = vadd.f32 0.0, %v2217
    %2219 = vdwg.mxu0
    %2220 = vmatprep.subr.mxu0 0.0
    %2221 = vmatpush1.msra.mxu0 0.0
    %2222 = vmatprep.subr.mxu0 0.0
    %2223 = vmatpush1.msra.mxu0 0.0
    %2224 = vmatprep.subr.mxu0 0.0
    %2225 = vmatpush1.msra.mxu0 0.0
    %2226 = vmatprep.subr.mxu0 0.0
    %2227 = vmatpush1.msra.mxu0 0.0
    %2228 = vmatprep.subr.mxu0 0.0
    %2229 = vmatpush1.msra.mxu0 0.0
    %2230 = vmatprep.subr.mxu0 0.0
    %2231 = vmatpush1.msra.mxu0 0.0
    %2232 = vmatprep.subr.mxu0 0.0
    %2233 = vmatpush1.msra.mxu0 0.0
    %2234 = vmatprep.subr.mxu0 0.0
    %2235 = vmatpush1.msra.mxu0 0.0
    %2236 = vmatprep.subr.mxu0 0.0
    %2237 = vmatpush1.msra.mxu0 0.0
    %2238 = vmatprep.subr.mxu0 0.0
    %2239 = vmatpush1.msra.mxu0 0.0
    %2240 = vmatprep.subr.mxu0 0.0
    %2241 = vmatpush1.msra.mxu0 0.0
    %2242 = vmatprep.subr.mxu0 0.0
    %2243 = vmatpush1.msra.mxu0 0.0
    %2244 = vmatprep.subr.mxu0 %v431
    %2245 = vmatpush1.msra.mxu0 %v430
    %2246 = vmatprep.subr.mxu0 %v427
    %2247 = vmatpush1.msra.mxu0 %v426
    %2248 = vmatprep.subr.mxu0 %v423
    %2249 = vmatpush1.msra.mxu0 %v422
    %2250 = vmatprep.subr.mxu0 %v419
    %2251 = vmatpush1.msra.mxu0 %v418
    %2252 = vmatprep.subr.mxu0 0.0
    %2253 = vmatpush2.msra.mxu0 0.0
    %2254 = vmatprep.subr.mxu0 0.0
    %2255 = vmatpush2.msra.mxu0 0.0
    %2256 = vmatprep.subr.mxu0 0.0
    %2257 = vmatpush2.msra.mxu0 0.0
    %2258 = vmatprep.subr.mxu0 0.0
    %2259 = vmatpush2.msra.mxu0 0.0
    %2260 = vmatprep.subr.mxu0 0.0
    %2261 = vmatpush2.msra.mxu0 0.0
    %2262 = vmatprep.subr.mxu0 0.0
    %2263 = vmatpush2.msra.mxu0 0.0
    %2264 = vmatprep.subr.mxu0 0.0
    %2265 = vmatpush2.msra.mxu0 0.0
    %2266 = vmatprep.subr.mxu0 0.0
    %2267 = vmatpush2.msra.mxu0 0.0
    %2268 = vmatprep.subr.mxu0 0.0
    %2269 = vmatpush2.msra.mxu0 0.0
    %2270 = vmatprep.subr.mxu0 0.0
    %2271 = vmatpush2.msra.mxu0 0.0
    %2272 = vmatprep.subr.mxu0 0.0
    %2273 = vmatpush2.msra.mxu0 0.0
    %2274 = vmatprep.subr.mxu0 0.0
    %2275 = vmatpush2.msra.mxu0 0.0
    %2276 = vmatprep.subr.mxu0 0.0
    %2277 = vmatpush2.msra.mxu0 0.0
    %2278 = vmatprep.subr.mxu0 0.0
    %2279 = vmatpush2.msra.mxu0 0.0
    %2280 = vmatprep.subr.mxu0 0.0
    %2281 = vmatpush2.msra.mxu0 0.0
    %2282 = vmatprep.subr.mxu0 0.0
    %2283 = vmatpush2.msra.mxu0 0.0
    %2284 = vmatprep.mubr.f32.mxu0 0.0
    %2285 = vmatmul.mubr.f32.gmra.mxu0 %v2147
    %v2286 = vpop.f32.mrf.mxu0
    %v2287 = vadd.f32 0.0, %v2286
    %v2288 = vpop.f32.mrf.mxu0
    %v2289 = vadd.f32 0.0, %v2288
    %2290 = vdwg.mxu0
    %v2292 = vrot.slane %v2289, 4
    %2293 = vrot.lane.b32.xlu0 %v2292, 32
    %v2294 = vpop.permute.xlu0 %2293
    %v2296 = vadd.f32 %v413, %v2294
    %vm2297 = vcmask 340228
    %v2298 = vsel %vm2297, %v2296, -inf
    %2299 = vmax.xlane.f32.xlu0 %v2298
    %v2300 = vpop.xlane.xlu0 %2299
    %v2301 = vsub.f32 %v2296, %v2300
    %v2302 = vmul.f32 %v2301, 1.442695
    %v2303 = vpow.pop %v2302
    %2305 = vrot.lane.b32.xlu0 %v2303, 96
    %v2306 = vpop.permute.xlu0 %2305
    %vm2308 = vcmask 77828
    %v2309 = vsel %vm2308, %v2306, 0.0
    %2310 = vadd.xlane.f32.xlu0 %v2309
    %v2311 = vpop.xlane.xlu0 %2310
    %v2312 = vrcp.pop %v2311
    %v2313 = vmul.f32 %v2303, %v2312
    %v2315 = vrot.slane %v2313, 4
    %2316 = vrot.lane.b32.xlu0 %v2315, 96
    %v2317 = vpop.permute.xlu0 %2316
    %v2318 = vsel %vm602, %v2317, 0
    %2320 = vmatprep.subr.mxu0 0.0
    %2321 = vmatpush1.msra.mxu0 0.0
    %2322 = vmatprep.subr.mxu0 0.0
    %2323 = vmatpush1.msra.mxu0 0.0
    %2324 = vmatprep.subr.mxu0 0.0
    %2325 = vmatpush1.msra.mxu0 0.0
    %2326 = vmatprep.subr.mxu0 0.0
    %2327 = vmatpush1.msra.mxu0 0.0
    %2328 = vmatprep.subr.mxu0 0.0
    %2329 = vmatpush1.msra.mxu0 0.0
    %2330 = vmatprep.subr.mxu0 0.0
    %2331 = vmatpush1.msra.mxu0 0.0
    %2332 = vmatprep.subr.mxu0 0.0
    %2333 = vmatpush1.msra.mxu0 0.0
    %2334 = vmatprep.subr.mxu0 0.0
    %2335 = vmatpush1.msra.mxu0 0.0
    %2336 = vmatprep.subr.mxu0 0.0
    %2337 = vmatpush1.msra.mxu0 0.0
    %2338 = vmatprep.subr.mxu0 0.0
    %2339 = vmatpush1.msra.mxu0 0.0
    %2340 = vmatprep.subr.mxu0 0.0
    %2341 = vmatpush1.msra.mxu0 0.0
    %2342 = vmatprep.subr.mxu0 0.0
    %2343 = vmatpush1.msra.mxu0 0.0
    %2344 = vmatprep.subr.mxu0 0.0
    %2345 = vmatpush1.msra.mxu0 0.0
    %2346 = vmatprep.subr.mxu0 0.0
    %2347 = vmatpush1.msra.mxu0 0.0
    %2348 = vmatprep.subr.mxu0 0.0
    %2349 = vmatpush1.msra.mxu0 %v606
    %2350 = vmatprep.subr.mxu0 0.0
    %2351 = vmatpush1.msra.mxu0 %v195
    %2352 = vmatprep.subr.mxu0 0.0
    %2353 = vmatpush2.msra.mxu0 0.0
    %2354 = vmatprep.subr.mxu0 0.0
    %2355 = vmatpush2.msra.mxu0 0.0
    %2356 = vmatprep.subr.mxu0 0.0
    %2357 = vmatpush2.msra.mxu0 0.0
    %2358 = vmatprep.subr.mxu0 0.0
    %2359 = vmatpush2.msra.mxu0 0.0
    %2360 = vmatprep.subr.mxu0 0.0
    %2361 = vmatpush2.msra.mxu0 0.0
    %2362 = vmatprep.subr.mxu0 0.0
    %2363 = vmatpush2.msra.mxu0 0.0
    %2364 = vmatprep.subr.mxu0 0.0
    %2365 = vmatpush2.msra.mxu0 0.0
    %2366 = vmatprep.subr.mxu0 0.0
    %2367 = vmatpush2.msra.mxu0 0.0
    %2368 = vmatprep.subr.mxu0 0.0
    %2369 = vmatpush2.msra.mxu0 0.0
    %2370 = vmatprep.subr.mxu0 0.0
    %2371 = vmatpush2.msra.mxu0 0.0
    %2372 = vmatprep.subr.mxu0 0.0
    %2373 = vmatpush2.msra.mxu0 0.0
    %2374 = vmatprep.subr.mxu0 0.0
    %2375 = vmatpush2.msra.mxu0 0.0
    %2376 = vmatprep.subr.mxu0 0.0
    %2377 = vmatpush2.msra.mxu0 0.0
    %2378 = vmatprep.subr.mxu0 0.0
    %2379 = vmatpush2.msra.mxu0 0.0
    %2380 = vmatprep.subr.mxu0 0.0
    %2381 = vmatpush2.msra.mxu0 0.0
    %2382 = vmatprep.subr.mxu0 0.0
    %2383 = vmatpush2.msra.mxu0 0.0
    %2384 = vmatprep.mubr.f32.mxu0 0.0
    %2385 = vmatmul.mubr.f32.gmra.mxu0 %v2318
    %v2386 = vpop.f32.mrf.mxu0
    %v2387 = vadd.f32 0.0, %v2386
    %v2388 = vpop.f32.mrf.mxu0
    %2389 = vdwg.mxu0
    %v2391 = vrot.slane %v2387, 4
    %v2393 = vadd.f32 %v403, %v2391
    %v2394 = vmax.f32 %v2393, 0.0
    %v2396 = vrot.slane %v2394, 4
    %v2397 = vsel %vm121, %v2396, 0
    %2399 = vmatprep.subr.mxu0 0.0
    %2400 = vmatpush1.msra.mxu0 0.0
    %2401 = vmatprep.subr.mxu0 0.0
    %2402 = vmatpush1.msra.mxu0 0.0
    %2403 = vmatprep.subr.mxu0 0.0
    %2404 = vmatpush1.msra.mxu0 0.0
    %2405 = vmatprep.subr.mxu0 0.0
    %2406 = vmatpush1.msra.mxu0 0.0
    %2407 = vmatprep.subr.mxu0 0.0
    %2408 = vmatpush1.msra.mxu0 0.0
    %2409 = vmatprep.subr.mxu0 0.0
    %2410 = vmatpush1.msra.mxu0 0.0
    %2411 = vmatprep.subr.mxu0 0.0
    %2412 = vmatpush1.msra.mxu0 0.0
    %2413 = vmatprep.subr.mxu0 0.0
    %2414 = vmatpush1.msra.mxu0 0.0
    %2415 = vmatprep.subr.mxu0 0.0
    %2416 = vmatpush1.msra.mxu0 0.0
    %2417 = vmatprep.subr.mxu0 0.0
    %2418 = vmatpush1.msra.mxu0 0.0
    %2419 = vmatprep.subr.mxu0 0.0
    %2420 = vmatpush1.msra.mxu0 0.0
    %2421 = vmatprep.subr.mxu0 0.0
    %2422 = vmatpush1.msra.mxu0 0.0
    %2423 = vmatprep.subr.mxu0 %v690
    %2424 = vmatpush1.msra.mxu0 %v689
    %2425 = vmatprep.subr.mxu0 %v687
    %2426 = vmatpush1.msra.mxu0 %v686
    %2427 = vmatprep.subr.mxu0 %v684
    %2428 = vmatpush1.msra.mxu0 %v683
    %2429 = vmatprep.subr.mxu0 %v681
    %2430 = vmatpush1.msra.mxu0 %v680
    %2431 = vmatprep.subr.mxu0 0.0
    %2432 = vmatpush2.msra.mxu0 0.0
    %2433 = vmatprep.subr.mxu0 0.0
    %2434 = vmatpush2.msra.mxu0 0.0
    %2435 = vmatprep.subr.mxu0 0.0
    %2436 = vmatpush2.msra.mxu0 0.0
    %2437 = vmatprep.subr.mxu0 0.0
    %2438 = vmatpush2.msra.mxu0 0.0
    %2439 = vmatprep.subr.mxu0 0.0
    %2440 = vmatpush2.msra.mxu0 0.0
    %2441 = vmatprep.subr.mxu0 0.0
    %2442 = vmatpush2.msra.mxu0 0.0
    %2443 = vmatprep.subr.mxu0 0.0
    %2444 = vmatpush2.msra.mxu0 0.0
    %2445 = vmatprep.subr.mxu0 0.0
    %2446 = vmatpush2.msra.mxu0 0.0
    %2447 = vmatprep.subr.mxu0 0.0
    %2448 = vmatpush2.msra.mxu0 0.0
    %2449 = vmatprep.subr.mxu0 0.0
    %2450 = vmatpush2.msra.mxu0 0.0
    %2451 = vmatprep.subr.mxu0 0.0
    %2452 = vmatpush2.msra.mxu0 0.0
    %2453 = vmatprep.subr.mxu0 0.0
    %2454 = vmatpush2.msra.mxu0 0.0
    %2455 = vmatprep.subr.mxu0 0.0
    %2456 = vmatpush2.msra.mxu0 0.0
    %2457 = vmatprep.subr.mxu0 0.0
    %2458 = vmatpush2.msra.mxu0 0.0
    %2459 = vmatprep.subr.mxu0 0.0
    %2460 = vmatpush2.msra.mxu0 0.0
    %2461 = vmatprep.subr.mxu0 0.0
    %2462 = vmatpush2.msra.mxu0 0.0
    %2463 = vmatprep.mubr.f32.mxu0 0.0
    %2464 = vmatmul.mubr.f32.gmra.mxu0 %v2397
    %v2465 = vpop.f32.mrf.mxu0
    %v2466 = vadd.f32 %v696, %v2465
    %v2467 = vpop.f32.mrf.mxu0
    %v2468 = vadd.f32 %v700, %v2467
    %2469 = vdwg.mxu0
    %2470 = vmatprep.subr.mxu0 0.0
    %2471 = vmatpush1.msra.mxu0 0.0
    %2472 = vmatprep.subr.mxu0 0.0
    %2473 = vmatpush1.msra.mxu0 0.0
    %2474 = vmatprep.subr.mxu0 0.0
    %2475 = vmatpush1.msra.mxu0 0.0
    %2476 = vmatprep.subr.mxu0 0.0
    %2477 = vmatpush1.msra.mxu0 0.0
    %2478 = vmatprep.subr.mxu0 0.0
    %2479 = vmatpush1.msra.mxu0 0.0
    %2480 = vmatprep.subr.mxu0 0.0
    %2481 = vmatpush1.msra.mxu0 0.0
    %2482 = vmatprep.subr.mxu0 0.0
    %2483 = vmatpush1.msra.mxu0 0.0
    %2484 = vmatprep.subr.mxu0 0.0
    %2485 = vmatpush1.msra.mxu0 0.0
    %2486 = vmatprep.subr.mxu0 0.0
    %2487 = vmatpush1.msra.mxu0 0.0
    %2488 = vmatprep.subr.mxu0 0.0
    %2489 = vmatpush1.msra.mxu0 0.0
    %2490 = vmatprep.subr.mxu0 0.0
    %2491 = vmatpush1.msra.mxu0 0.0
    %2492 = vmatprep.subr.mxu0 0.0
    %2493 = vmatpush1.msra.mxu0 0.0
    %2494 = vmatprep.subr.mxu0 0.0
    %2495 = vmatpush1.msra.mxu0 %v691
    %2496 = vmatprep.subr.mxu0 0.0
    %2497 = vmatpush1.msra.mxu0 %v688
    %2498 = vmatprep.subr.mxu0 0.0
    %2499 = vmatpush1.msra.mxu0 %v685
    %2500 = vmatprep.subr.mxu0 0.0
    %2501 = vmatpush1.msra.mxu0 %v682
    %2502 = vmatprep.subr.mxu0 0.0
    %2503 = vmatpush2.msra.mxu0 0.0
    %2504 = vmatprep.subr.mxu0 0.0
    %2505 = vmatpush2.msra.mxu0 0.0
    %2506 = vmatprep.subr.mxu0 0.0
    %2507 = vmatpush2.msra.mxu0 0.0
    %2508 = vmatprep.subr.mxu0 0.0
    %2509 = vmatpush2.msra.mxu0 0.0
    %2510 = vmatprep.subr.mxu0 0.0
    %2511 = vmatpush2.msra.mxu0 0.0
    %2512 = vmatprep.subr.mxu0 0.0
    %2513 = vmatpush2.msra.mxu0 0.0
    %2514 = vmatprep.subr.mxu0 0.0
    %2515 = vmatpush2.msra.mxu0 0.0
    %2516 = vmatprep.subr.mxu0 0.0
    %2517 = vmatpush2.msra.mxu0 0.0
    %2518 = vmatprep.subr.mxu0 0.0
    %2519 = vmatpush2.msra.mxu0 0.0
    %2520 = vmatprep.subr.mxu0 0.0
    %2521 = vmatpush2.msra.mxu0 0.0
    %2522 = vmatprep.subr.mxu0 0.0
    %2523 = vmatpush2.msra.mxu0 0.0
    %2524 = vmatprep.subr.mxu0 0.0
    %2525 = vmatpush2.msra.mxu0 0.0
    %2526 = vmatprep.subr.mxu0 0.0
    %2527 = vmatpush2.msra.mxu0 0.0
    %2528 = vmatprep.subr.mxu0 0.0
    %2529 = vmatpush2.msra.mxu0 0.0
    %2530 = vmatprep.subr.mxu0 0.0
    %2531 = vmatpush2.msra.mxu0 0.0
    %2532 = vmatprep.subr.mxu0 0.0
    %2533 = vmatpush2.msra.mxu0 0.0
    %2534 = vmatprep.mubr.f32.mxu0 0.0
    %2535 = vmatmul.mubr.f32.gmra.mxu0 %v2397
    %v2536 = vpop.f32.mrf.mxu0
    %v2537 = vadd.f32 %v704, %v2536
    %v2538 = vpop.f32.mrf.mxu0
    %2539 = vdwg.mxu0
    %v2540 = vadd.f32 %v2216, %v856
    %v2541 = vadd.f32 %v2218, %v860
    %v2542 = vadd.f32 %v2287, %v864
    %v2543 = vadd.f32 %v2466, %v2540
    %v2544 = vxor.u32 %v2543, 2147483648
    %v2545 = vmul.f32 %v2544, 1.442695
    %v2546 = vpow.pop %v2545
    %v2547 = vadd.f32 %v2546, 1.0
    %v2548 = vrcp.pop %v2547
    %v2549 = vmul.f32 1.0, %v2548
    %v2550 = vadd.f32 %v2468, %v2541
    %v2551 = vxor.u32 %v2550, 2147483648
    %v2552 = vmul.f32 %v2551, 1.442695
    %v2553 = vpow.pop %v2552
    %v2554 = vadd.f32 %v2553, 1.0
    %v2555 = vrcp.pop %v2554
    %v2556 = vmul.f32 1.0, %v2555
    %v2557 = vmul.f32 %v2549, %v2542
    %v2558 = vadd.f32 %v2537, %v2557
    %v2559 = vtanh.pop %v2558
    %v2560 = vsub.f32 1.0, %v2556
    %v2561 = vmul.f32 %v2560, %v2559
    %v2562 = vmul.f32 %v2556, %v2145
    %v2563 = vadd.f32 %v2561, %v2562
    %v2565 = vsel %vm121, %v2563, 0
    %2567 = vmatprep.subr.mxu0 0.0
    %2568 = vmatpush1.msra.mxu0 0.0
    %2569 = vmatprep.subr.mxu0 0.0
    %2570 = vmatpush1.msra.mxu0 0.0
    %2571 = vmatprep.subr.mxu0 0.0
    %2572 = vmatpush1.msra.mxu0 0.0
    %2573 = vmatprep.subr.mxu0 0.0
    %2574 = vmatpush1.msra.mxu0 0.0
    %2575 = vmatprep.subr.mxu0 0.0
    %2576 = vmatpush1.msra.mxu0 0.0
    %2577 = vmatprep.subr.mxu0 0.0
    %2578 = vmatpush1.msra.mxu0 0.0
    %2579 = vmatprep.subr.mxu0 0.0
    %2580 = vmatpush1.msra.mxu0 0.0
    %2581 = vmatprep.subr.mxu0 0.0
    %2582 = vmatpush1.msra.mxu0 0.0
    %2583 = vmatprep.subr.mxu0 0.0
    %2584 = vmatpush1.msra.mxu0 0.0
    %2585 = vmatprep.subr.mxu0 0.0
    %2586 = vmatpush1.msra.mxu0 0.0
    %2587 = vmatprep.subr.mxu0 0.0
    %2588 = vmatpush1.msra.mxu0 0.0
    %2589 = vmatprep.subr.mxu0 0.0
    %2590 = vmatpush1.msra.mxu0 0.0
    %2591 = vmatprep.subr.mxu0 %v429
    %2592 = vmatpush1.msra.mxu0 %v428
    %2593 = vmatprep.subr.mxu0 %v425
    %2594 = vmatpush1.msra.mxu0 %v424
    %2595 = vmatprep.subr.mxu0 %v421
    %2596 = vmatpush1.msra.mxu0 %v420
    %2597 = vmatprep.subr.mxu0 %v417
    %2598 = vmatpush1.msra.mxu0 %v416
    %2599 = vmatprep.subr.mxu0 0.0
    %2600 = vmatpush2.msra.mxu0 0.0
    %2601 = vmatprep.subr.mxu0 0.0
    %2602 = vmatpush2.msra.mxu0 0.0
    %2603 = vmatprep.subr.mxu0 0.0
    %2604 = vmatpush2.msra.mxu0 0.0
    %2605 = vmatprep.subr.mxu0 0.0
    %2606 = vmatpush2.msra.mxu0 0.0
    %2607 = vmatprep.subr.mxu0 0.0
    %2608 = vmatpush2.msra.mxu0 0.0
    %2609 = vmatprep.subr.mxu0 0.0
    %2610 = vmatpush2.msra.mxu0 0.0
    %2611 = vmatprep.subr.mxu0 0.0
    %2612 = vmatpush2.msra.mxu0 0.0
    %2613 = vmatprep.subr.mxu0 0.0
    %2614 = vmatpush2.msra.mxu0 0.0
    %2615 = vmatprep.subr.mxu0 0.0
    %2616 = vmatpush2.msra.mxu0 0.0
    %2617 = vmatprep.subr.mxu0 0.0
    %2618 = vmatpush2.msra.mxu0 0.0
    %2619 = vmatprep.subr.mxu0 0.0
    %2620 = vmatpush2.msra.mxu0 0.0
    %2621 = vmatprep.subr.mxu0 0.0
    %2622 = vmatpush2.msra.mxu0 0.0
    %2623 = vmatprep.subr.mxu0 0.0
    %2624 = vmatpush2.msra.mxu0 0.0
    %2625 = vmatprep.subr.mxu0 0.0
    %2626 = vmatpush2.msra.mxu0 0.0
    %2627 = vmatprep.subr.mxu0 0.0
    %2628 = vmatpush2.msra.mxu0 0.0
    %2629 = vmatprep.subr.mxu0 0.0
    %2630 = vmatpush2.msra.mxu0 0.0
    %2631 = vmatprep.mubr.f32.mxu0 0.0
    %2632 = vmatmul.mubr.f32.gmra.mxu0 %v2565
    %v2633 = vpop.f32.mrf.mxu0
    %v2634 = vadd.f32 0.0, %v2633
    %v2635 = vpop.f32.mrf.mxu0
    %v2636 = vadd.f32 0.0, %v2635
    %2637 = vdwg.mxu0
    %2638 = vmatprep.subr.mxu0 0.0
    %2639 = vmatpush1.msra.mxu0 0.0
    %2640 = vmatprep.subr.mxu0 0.0
    %2641 = vmatpush1.msra.mxu0 0.0
    %2642 = vmatprep.subr.mxu0 0.0
    %2643 = vmatpush1.msra.mxu0 0.0
    %2644 = vmatprep.subr.mxu0 0.0
    %2645 = vmatpush1.msra.mxu0 0.0
    %2646 = vmatprep.subr.mxu0 0.0
    %2647 = vmatpush1.msra.mxu0 0.0
    %2648 = vmatprep.subr.mxu0 0.0
    %2649 = vmatpush1.msra.mxu0 0.0
    %2650 = vmatprep.subr.mxu0 0.0
    %2651 = vmatpush1.msra.mxu0 0.0
    %2652 = vmatprep.subr.mxu0 0.0
    %2653 = vmatpush1.msra.mxu0 0.0
    %2654 = vmatprep.subr.mxu0 0.0
    %2655 = vmatpush1.msra.mxu0 0.0
    %2656 = vmatprep.subr.mxu0 0.0
    %2657 = vmatpush1.msra.mxu0 0.0
    %2658 = vmatprep.subr.mxu0 0.0
    %2659 = vmatpush1.msra.mxu0 0.0
    %2660 = vmatprep.subr.mxu0 0.0
    %2661 = vmatpush1.msra.mxu0 0.0
    %2662 = vmatprep.subr.mxu0 %v431
    %2663 = vmatpush1.msra.mxu0 %v430
    %2664 = vmatprep.subr.mxu0 %v427
    %2665 = vmatpush1.msra.mxu0 %v426
    %2666 = vmatprep.subr.mxu0 %v423
    %2667 = vmatpush1.msra.mxu0 %v422
    %2668 = vmatprep.subr.mxu0 %v419
    %2669 = vmatpush1.msra.mxu0 %v418
    %2670 = vmatprep.subr.mxu0 0.0
    %2671 = vmatpush2.msra.mxu0 0.0
    %2672 = vmatprep.subr.mxu0 0.0
    %2673 = vmatpush2.msra.mxu0 0.0
    %2674 = vmatprep.subr.mxu0 0.0
    %2675 = vmatpush2.msra.mxu0 0.0
    %2676 = vmatprep.subr.mxu0 0.0
    %2677 = vmatpush2.msra.mxu0 0.0
    %2678 = vmatprep.subr.mxu0 0.0
    %2679 = vmatpush2.msra.mxu0 0.0
    %2680 = vmatprep.subr.mxu0 0.0
    %2681 = vmatpush2.msra.mxu0 0.0
    %2682 = vmatprep.subr.mxu0 0.0
    %2683 = vmatpush2.msra.mxu0 0.0
    %2684 = vmatprep.subr.mxu0 0.0
    %2685 = vmatpush2.msra.mxu0 0.0
    %2686 = vmatprep.subr.mxu0 0.0
    %2687 = vmatpush2.msra.mxu0 0.0
    %2688 = vmatprep.subr.mxu0 0.0
    %2689 = vmatpush2.msra.mxu0 0.0
    %2690 = vmatprep.subr.mxu0 0.0
    %2691 = vmatpush2.msra.mxu0 0.0
    %2692 = vmatprep.subr.mxu0 0.0
    %2693 = vmatpush2.msra.mxu0 0.0
    %2694 = vmatprep.subr.mxu0 0.0
    %2695 = vmatpush2.msra.mxu0 0.0
    %2696 = vmatprep.subr.mxu0 0.0
    %2697 = vmatpush2.msra.mxu0 0.0
    %2698 = vmatprep.subr.mxu0 0.0
    %2699 = vmatpush2.msra.mxu0 0.0
    %2700 = vmatprep.subr.mxu0 0.0
    %2701 = vmatpush2.msra.mxu0 0.0
    %2702 = vmatprep.mubr.f32.mxu0 0.0
    %2703 = vmatmul.mubr.f32.gmra.mxu0 %v2565
    %v2704 = vpop.f32.mrf.mxu0
    %v2705 = vadd.f32 0.0, %v2704
    %v2706 = vpop.f32.mrf.mxu0
    %v2707 = vadd.f32 0.0, %v2706
    %2708 = vdwg.mxu0
    %v2710 = vrot.slane %v2707, 3
    %2711 = vrot.lane.b32.xlu0 %v2710, 32
    %v2712 = vpop.permute.xlu0 %2711
    %v2714 = vadd.f32 %v413, %v2712
    %vm2715 = vcmask 341253
    %v2716 = vsel %vm2715, %v2714, -inf
    %2717 = vmax.xlane.f32.xlu0 %v2716
    %v2718 = vpop.xlane.xlu0 %2717
    %v2719 = vsub.f32 %v2714, %v2718
    %v2720 = vmul.f32 %v2719, 1.442695
    %v2721 = vpow.pop %v2720
    %2723 = vrot.lane.b32.xlu0 %v2721, 96
    %v2724 = vpop.permute.xlu0 %2723
    %vm2726 = vcmask 78853
    %v2727 = vsel %vm2726, %v2724, 0.0
    %2728 = vadd.xlane.f32.xlu0 %v2727
    %v2729 = vpop.xlane.xlu0 %2728
    %v2730 = vrcp.pop %v2729
    %v2731 = vmul.f32 %v2721, %v2730
    %v2733 = vrot.slane %v2731, 5
    %2734 = vrot.lane.b32.xlu0 %v2733, 96
    %v2735 = vpop.permute.xlu0 %2734
    %v2736 = vsel %vm602, %v2735, 0
    %2738 = vmatprep.subr.mxu0 0.0
    %2739 = vmatpush1.msra.mxu0 0.0
    %2740 = vmatprep.subr.mxu0 0.0
    %2741 = vmatpush1.msra.mxu0 0.0
    %2742 = vmatprep.subr.mxu0 0.0
    %2743 = vmatpush1.msra.mxu0 0.0
    %2744 = vmatprep.subr.mxu0 0.0
    %2745 = vmatpush1.msra.mxu0 0.0
    %2746 = vmatprep.subr.mxu0 0.0
    %2747 = vmatpush1.msra.mxu0 0.0
    %2748 = vmatprep.subr.mxu0 0.0
    %2749 = vmatpush1.msra.mxu0 0.0
    %2750 = vmatprep.subr.mxu0 0.0
    %2751 = vmatpush1.msra.mxu0 0.0
    %2752 = vmatprep.subr.mxu0 0.0
    %2753 = vmatpush1.msra.mxu0 0.0
    %2754 = vmatprep.subr.mxu0 0.0
    %2755 = vmatpush1.msra.mxu0 0.0
    %2756 = vmatprep.subr.mxu0 0.0
    %2757 = vmatpush1.msra.mxu0 0.0
    %2758 = vmatprep.subr.mxu0 0.0
    %2759 = vmatpush1.msra.mxu0 0.0
    %2760 = vmatprep.subr.mxu0 0.0
    %2761 = vmatpush1.msra.mxu0 0.0
    %2762 = vmatprep.subr.mxu0 0.0
    %2763 = vmatpush1.msra.mxu0 0.0
    %2764 = vmatprep.subr.mxu0 0.0
    %2765 = vmatpush1.msra.mxu0 0.0
    %2766 = vmatprep.subr.mxu0 0.0
    %2767 = vmatpush1.msra.mxu0 %v606
    %2768 = vmatprep.subr.mxu0 0.0
    %2769 = vmatpush1.msra.mxu0 %v195
    %2770 = vmatprep.subr.mxu0 0.0
    %2771 = vmatpush2.msra.mxu0 0.0
    %2772 = vmatprep.subr.mxu0 0.0
    %2773 = vmatpush2.msra.mxu0 0.0
    %2774 = vmatprep.subr.mxu0 0.0
    %2775 = vmatpush2.msra.mxu0 0.0
    %2776 = vmatprep.subr.mxu0 0.0
    %2777 = vmatpush2.msra.mxu0 0.0
    %2778 = vmatprep.subr.mxu0 0.0
    %2779 = vmatpush2.msra.mxu0 0.0
    %2780 = vmatprep.subr.mxu0 0.0
    %2781 = vmatpush2.msra.mxu0 0.0
    %2782 = vmatprep.subr.mxu0 0.0
    %2783 = vmatpush2.msra.mxu0 0.0
    %2784 = vmatprep.subr.mxu0 0.0
    %2785 = vmatpush2.msra.mxu0 0.0
    %2786 = vmatprep.subr.mxu0 0.0
    %2787 = vmatpush2.msra.mxu0 0.0
    %2788 = vmatprep.subr.mxu0 0.0
    %2789 = vmatpush2.msra.mxu0 0.0
    %2790 = vmatprep.subr.mxu0 0.0
    %2791 = vmatpush2.msra.mxu0 0.0
    %2792 = vmatprep.subr.mxu0 0.0
    %2793 = vmatpush2.msra.mxu0 0.0
    %2794 = vmatprep.subr.mxu0 0.0
    %2795 = vmatpush2.msra.mxu0 0.0
    %2796 = vmatprep.subr.mxu0 0.0
    %2797 = vmatpush2.msra.mxu0 0.0
    %2798 = vmatprep.subr.mxu0 0.0
    %2799 = vmatpush2.msra.mxu0 0.0
    %2800 = vmatprep.subr.mxu0 0.0
    %2801 = vmatpush2.msra.mxu0 0.0
    %2802 = vmatprep.mubr.f32.mxu0 0.0
    %2803 = vmatmul.mubr.f32.gmra.mxu0 %v2736
    %v2804 = vpop.f32.mrf.mxu0
    %v2805 = vadd.f32 0.0, %v2804
    %v2806 = vpop.f32.mrf.mxu0
    %2807 = vdwg.mxu0
    %v2809 = vrot.slane %v2805, 3
    %v2811 = vadd.f32 %v403, %v2809
    %v2812 = vmax.f32 %v2811, 0.0
    %v2814 = vrot.slane %v2812, 5
    %v2815 = vsel %vm121, %v2814, 0
    %2817 = vmatprep.subr.mxu0 0.0
    %2818 = vmatpush1.msra.mxu0 0.0
    %2819 = vmatprep.subr.mxu0 0.0
    %2820 = vmatpush1.msra.mxu0 0.0
    %2821 = vmatprep.subr.mxu0 0.0
    %2822 = vmatpush1.msra.mxu0 0.0
    %2823 = vmatprep.subr.mxu0 0.0
    %2824 = vmatpush1.msra.mxu0 0.0
    %2825 = vmatprep.subr.mxu0 0.0
    %2826 = vmatpush1.msra.mxu0 0.0
    %2827 = vmatprep.subr.mxu0 0.0
    %2828 = vmatpush1.msra.mxu0 0.0
    %2829 = vmatprep.subr.mxu0 0.0
    %2830 = vmatpush1.msra.mxu0 0.0
    %2831 = vmatprep.subr.mxu0 0.0
    %2832 = vmatpush1.msra.mxu0 0.0
    %2833 = vmatprep.subr.mxu0 0.0
    %2834 = vmatpush1.msra.mxu0 0.0
    %2835 = vmatprep.subr.mxu0 0.0
    %2836 = vmatpush1.msra.mxu0 0.0
    %2837 = vmatprep.subr.mxu0 0.0
    %2838 = vmatpush1.msra.mxu0 0.0
    %2839 = vmatprep.subr.mxu0 0.0
    %2840 = vmatpush1.msra.mxu0 0.0
    %2841 = vmatprep.subr.mxu0 %v690
    %2842 = vmatpush1.msra.mxu0 %v689
    %2843 = vmatprep.subr.mxu0 %v687
    %2844 = vmatpush1.msra.mxu0 %v686
    %2845 = vmatprep.subr.mxu0 %v684
    %2846 = vmatpush1.msra.mxu0 %v683
    %2847 = vmatprep.subr.mxu0 %v681
    %2848 = vmatpush1.msra.mxu0 %v680
    %2849 = vmatprep.subr.mxu0 0.0
    %2850 = vmatpush2.msra.mxu0 0.0
    %2851 = vmatprep.subr.mxu0 0.0
    %2852 = vmatpush2.msra.mxu0 0.0
    %2853 = vmatprep.subr.mxu0 0.0
    %2854 = vmatpush2.msra.mxu0 0.0
    %2855 = vmatprep.subr.mxu0 0.0
    %2856 = vmatpush2.msra.mxu0 0.0
    %2857 = vmatprep.subr.mxu0 0.0
    %2858 = vmatpush2.msra.mxu0 0.0
    %2859 = vmatprep.subr.mxu0 0.0
    %2860 = vmatpush2.msra.mxu0 0.0
    %2861 = vmatprep.subr.mxu0 0.0
    %2862 = vmatpush2.msra.mxu0 0.0
    %2863 = vmatprep.subr.mxu0 0.0
    %2864 = vmatpush2.msra.mxu0 0.0
    %2865 = vmatprep.subr.mxu0 0.0
    %2866 = vmatpush2.msra.mxu0 0.0
    %2867 = vmatprep.subr.mxu0 0.0
    %2868 = vmatpush2.msra.mxu0 0.0
    %2869 = vmatprep.subr.mxu0 0.0
    %2870 = vmatpush2.msra.mxu0 0.0
    %2871 = vmatprep.subr.mxu0 0.0
    %2872 = vmatpush2.msra.mxu0 0.0
    %2873 = vmatprep.subr.mxu0 0.0
    %2874 = vmatpush2.msra.mxu0 0.0
    %2875 = vmatprep.subr.mxu0 0.0
    %2876 = vmatpush2.msra.mxu0 0.0
    %2877 = vmatprep.subr.mxu0 0.0
    %2878 = vmatpush2.msra.mxu0 0.0
    %2879 = vmatprep.subr.mxu0 0.0
    %2880 = vmatpush2.msra.mxu0 0.0
    %2881 = vmatprep.mubr.f32.mxu0 0.0
    %2882 = vmatmul.mubr.f32.gmra.mxu0 %v2815
    %v2883 = vpop.f32.mrf.mxu0
    %v2884 = vadd.f32 %v696, %v2883
    %v2885 = vpop.f32.mrf.mxu0
    %v2886 = vadd.f32 %v700, %v2885
    %2887 = vdwg.mxu0
    %2888 = vmatprep.subr.mxu0 0.0
    %2889 = vmatpush1.msra.mxu0 0.0
    %2890 = vmatprep.subr.mxu0 0.0
    %2891 = vmatpush1.msra.mxu0 0.0
    %2892 = vmatprep.subr.mxu0 0.0
    %2893 = vmatpush1.msra.mxu0 0.0
    %2894 = vmatprep.subr.mxu0 0.0
    %2895 = vmatpush1.msra.mxu0 0.0
    %2896 = vmatprep.subr.mxu0 0.0
    %2897 = vmatpush1.msra.mxu0 0.0
    %2898 = vmatprep.subr.mxu0 0.0
    %2899 = vmatpush1.msra.mxu0 0.0
    %2900 = vmatprep.subr.mxu0 0.0
    %2901 = vmatpush1.msra.mxu0 0.0
    %2902 = vmatprep.subr.mxu0 0.0
    %2903 = vmatpush1.msra.mxu0 0.0
    %2904 = vmatprep.subr.mxu0 0.0
    %2905 = vmatpush1.msra.mxu0 0.0
    %2906 = vmatprep.subr.mxu0 0.0
    %2907 = vmatpush1.msra.mxu0 0.0
    %2908 = vmatprep.subr.mxu0 0.0
    %2909 = vmatpush1.msra.mxu0 0.0
    %2910 = vmatprep.subr.mxu0 0.0
    %2911 = vmatpush1.msra.mxu0 0.0
    %2912 = vmatprep.subr.mxu0 0.0
    %2913 = vmatpush1.msra.mxu0 %v691
    %2914 = vmatprep.subr.mxu0 0.0
    %2915 = vmatpush1.msra.mxu0 %v688
    %2916 = vmatprep.subr.mxu0 0.0
    %2917 = vmatpush1.msra.mxu0 %v685
    %2918 = vmatprep.subr.mxu0 0.0
    %2919 = vmatpush1.msra.mxu0 %v682
    %2920 = vmatprep.subr.mxu0 0.0
    %2921 = vmatpush2.msra.mxu0 0.0
    %2922 = vmatprep.subr.mxu0 0.0
    %2923 = vmatpush2.msra.mxu0 0.0
    %2924 = vmatprep.subr.mxu0 0.0
    %2925 = vmatpush2.msra.mxu0 0.0
    %2926 = vmatprep.subr.mxu0 0.0
    %2927 = vmatpush2.msra.mxu0 0.0
    %2928 = vmatprep.subr.mxu0 0.0
    %2929 = vmatpush2.msra.mxu0 0.0
    %2930 = vmatprep.subr.mxu0 0.0
    %2931 = vmatpush2.msra.mxu0 0.0
    %2932 = vmatprep.subr.mxu0 0.0
    %2933 = vmatpush2.msra.mxu0 0.0
    %2934 = vmatprep.subr.mxu0 0.0
    %2935 = vmatpush2.msra.mxu0 0.0
    %2936 = vmatprep.subr.mxu0 0.0
    %2937 = vmatpush2.msra.mxu0 0.0
    %2938 = vmatprep.subr.mxu0 0.0
    %2939 = vmatpush2.msra.mxu0 0.0
    %2940 = vmatprep.subr.mxu0 0.0
    %2941 = vmatpush2.msra.mxu0 0.0
    %2942 = vmatprep.subr.mxu0 0.0
    %2943 = vmatpush2.msra.mxu0 0.0
    %2944 = vmatprep.subr.mxu0 0.0
    %2945 = vmatpush2.msra.mxu0 0.0
    %2946 = vmatprep.subr.mxu0 0.0
    %2947 = vmatpush2.msra.mxu0 0.0
    %2948 = vmatprep.subr.mxu0 0.0
    %2949 = vmatpush2.msra.mxu0 0.0
    %2950 = vmatprep.subr.mxu0 0.0
    %2951 = vmatpush2.msra.mxu0 0.0
    %2952 = vmatprep.mubr.f32.mxu0 0.0
    %2953 = vmatmul.mubr.f32.gmra.mxu0 %v2815
    %v2954 = vpop.f32.mrf.mxu0
    %v2955 = vadd.f32 %v704, %v2954
    %v2956 = vpop.f32.mrf.mxu0
    %2957 = vdwg.mxu0
    %v2958 = vadd.f32 %v2634, %v856
    %v2959 = vadd.f32 %v2636, %v860
    %v2960 = vadd.f32 %v2705, %v864
    %v2961 = vadd.f32 %v2884, %v2958
    %v2962 = vxor.u32 %v2961, 2147483648
    %v2963 = vmul.f32 %v2962, 1.442695
    %v2964 = vpow.pop %v2963
    %v2965 = vadd.f32 %v2964, 1.0
    %v2966 = vrcp.pop %v2965
    %v2967 = vmul.f32 1.0, %v2966
    %v2968 = vadd.f32 %v2886, %v2959
    %v2969 = vxor.u32 %v2968, 2147483648
    %v2970 = vmul.f32 %v2969, 1.442695
    %v2971 = vpow.pop %v2970
    %v2972 = vadd.f32 %v2971, 1.0
    %v2973 = vrcp.pop %v2972
    %v2974 = vmul.f32 1.0, %v2973
    %v2975 = vmul.f32 %v2967, %v2960
    %v2976 = vadd.f32 %v2955, %v2975
    %v2977 = vtanh.pop %v2976
    %v2978 = vsub.f32 1.0, %v2974
    %v2979 = vmul.f32 %v2978, %v2977
    %v2980 = vmul.f32 %v2974, %v2563
    %v2981 = vadd.f32 %v2979, %v2980
    %v2983 = vsel %vm121, %v2981, 0
    %2985 = vmatprep.subr.mxu0 0.0
    %2986 = vmatpush1.msra.mxu0 0.0
    %2987 = vmatprep.subr.mxu0 0.0
    %2988 = vmatpush1.msra.mxu0 0.0
    %2989 = vmatprep.subr.mxu0 0.0
    %2990 = vmatpush1.msra.mxu0 0.0
    %2991 = vmatprep.subr.mxu0 0.0
    %2992 = vmatpush1.msra.mxu0 0.0
    %2993 = vmatprep.subr.mxu0 0.0
    %2994 = vmatpush1.msra.mxu0 0.0
    %2995 = vmatprep.subr.mxu0 0.0
    %2996 = vmatpush1.msra.mxu0 0.0
    %2997 = vmatprep.subr.mxu0 0.0
    %2998 = vmatpush1.msra.mxu0 0.0
    %2999 = vmatprep.subr.mxu0 0.0
    %3000 = vmatpush1.msra.mxu0 0.0
    %3001 = vmatprep.subr.mxu0 0.0
    %3002 = vmatpush1.msra.mxu0 0.0
    %3003 = vmatprep.subr.mxu0 0.0
    %3004 = vmatpush1.msra.mxu0 0.0
    %3005 = vmatprep.subr.mxu0 0.0
    %3006 = vmatpush1.msra.mxu0 0.0
    %3007 = vmatprep.subr.mxu0 0.0
    %3008 = vmatpush1.msra.mxu0 0.0
    %3009 = vmatprep.subr.mxu0 %v429
    %3010 = vmatpush1.msra.mxu0 %v428
    %3011 = vmatprep.subr.mxu0 %v425
    %3012 = vmatpush1.msra.mxu0 %v424
    %3013 = vmatprep.subr.mxu0 %v421
    %3014 = vmatpush1.msra.mxu0 %v420
    %3015 = vmatprep.subr.mxu0 %v417
    %3016 = vmatpush1.msra.mxu0 %v416
    %3017 = vmatprep.subr.mxu0 0.0
    %3018 = vmatpush2.msra.mxu0 0.0
    %3019 = vmatprep.subr.mxu0 0.0
    %3020 = vmatpush2.msra.mxu0 0.0
    %3021 = vmatprep.subr.mxu0 0.0
    %3022 = vmatpush2.msra.mxu0 0.0
    %3023 = vmatprep.subr.mxu0 0.0
    %3024 = vmatpush2.msra.mxu0 0.0
    %3025 = vmatprep.subr.mxu0 0.0
    %3026 = vmatpush2.msra.mxu0 0.0
    %3027 = vmatprep.subr.mxu0 0.0
    %3028 = vmatpush2.msra.mxu0 0.0
    %3029 = vmatprep.subr.mxu0 0.0
    %3030 = vmatpush2.msra.mxu0 0.0
    %3031 = vmatprep.subr.mxu0 0.0
    %3032 = vmatpush2.msra.mxu0 0.0
    %3033 = vmatprep.subr.mxu0 0.0
    %3034 = vmatpush2.msra.mxu0 0.0
    %3035 = vmatprep.subr.mxu0 0.0
    %3036 = vmatpush2.msra.mxu0 0.0
    %3037 = vmatprep.subr.mxu0 0.0
    %3038 = vmatpush2.msra.mxu0 0.0
    %3039 = vmatprep.subr.mxu0 0.0
    %3040 = vmatpush2.msra.mxu0 0.0
    %3041 = vmatprep.subr.mxu0 0.0
    %3042 = vmatpush2.msra.mxu0 0.0
    %3043 = vmatprep.subr.mxu0 0.0
    %3044 = vmatpush2.msra.mxu0 0.0
    %3045 = vmatprep.subr.mxu0 0.0
    %3046 = vmatpush2.msra.mxu0 0.0
    %3047 = vmatprep.subr.mxu0 0.0
    %3048 = vmatpush2.msra.mxu0 0.0
    %3049 = vmatprep.mubr.f32.mxu0 0.0
    %3050 = vmatmul.mubr.f32.gmra.mxu0 %v2983
    %v3051 = vpop.f32.mrf.mxu0
    %v3052 = vadd.f32 0.0, %v3051
    %v3053 = vpop.f32.mrf.mxu0
    %v3054 = vadd.f32 0.0, %v3053
    %3055 = vdwg.mxu0
    %3056 = vmatprep.subr.mxu0 0.0
    %3057 = vmatpush1.msra.mxu0 0.0
    %3058 = vmatprep.subr.mxu0 0.0
    %3059 = vmatpush1.msra.mxu0 0.0
    %3060 = vmatprep.subr.mxu0 0.0
    %3061 = vmatpush1.msra.mxu0 0.0
    %3062 = vmatprep.subr.mxu0 0.0
    %3063 = vmatpush1.msra.mxu0 0.0
    %3064 = vmatprep.subr.mxu0 0.0
    %3065 = vmatpush1.msra.mxu0 0.0
    %3066 = vmatprep.subr.mxu0 0.0
    %3067 = vmatpush1.msra.mxu0 0.0
    %3068 = vmatprep.subr.mxu0 0.0
    %3069 = vmatpush1.msra.mxu0 0.0
    %3070 = vmatprep.subr.mxu0 0.0
    %3071 = vmatpush1.msra.mxu0 0.0
    %3072 = vmatprep.subr.mxu0 0.0
    %3073 = vmatpush1.msra.mxu0 0.0
    %3074 = vmatprep.subr.mxu0 0.0
    %3075 = vmatpush1.msra.mxu0 0.0
    %3076 = vmatprep.subr.mxu0 0.0
    %3077 = vmatpush1.msra.mxu0 0.0
    %3078 = vmatprep.subr.mxu0 0.0
    %3079 = vmatpush1.msra.mxu0 0.0
    %3080 = vmatprep.subr.mxu0 %v431
    %3081 = vmatpush1.msra.mxu0 %v430
    %3082 = vmatprep.subr.mxu0 %v427
    %3083 = vmatpush1.msra.mxu0 %v426
    %3084 = vmatprep.subr.mxu0 %v423
    %3085 = vmatpush1.msra.mxu0 %v422
    %3086 = vmatprep.subr.mxu0 %v419
    %3087 = vmatpush1.msra.mxu0 %v418
    %3088 = vmatprep.subr.mxu0 0.0
    %3089 = vmatpush2.msra.mxu0 0.0
    %3090 = vmatprep.subr.mxu0 0.0
    %3091 = vmatpush2.msra.mxu0 0.0
    %3092 = vmatprep.subr.mxu0 0.0
    %3093 = vmatpush2.msra.mxu0 0.0
    %3094 = vmatprep.subr.mxu0 0.0
    %3095 = vmatpush2.msra.mxu0 0.0
    %3096 = vmatprep.subr.mxu0 0.0
    %3097 = vmatpush2.msra.mxu0 0.0
    %3098 = vmatprep.subr.mxu0 0.0
    %3099 = vmatpush2.msra.mxu0 0.0
    %3100 = vmatprep.subr.mxu0 0.0
    %3101 = vmatpush2.msra.mxu0 0.0
    %3102 = vmatprep.subr.mxu0 0.0
    %3103 = vmatpush2.msra.mxu0 0.0
    %3104 = vmatprep.subr.mxu0 0.0
    %3105 = vmatpush2.msra.mxu0 0.0
    %3106 = vmatprep.subr.mxu0 0.0
    %3107 = vmatpush2.msra.mxu0 0.0
    %3108 = vmatprep.subr.mxu0 0.0
    %3109 = vmatpush2.msra.mxu0 0.0
    %3110 = vmatprep.subr.mxu0 0.0
    %3111 = vmatpush2.msra.mxu0 0.0
    %3112 = vmatprep.subr.mxu0 0.0
    %3113 = vmatpush2.msra.mxu0 0.0
    %3114 = vmatprep.subr.mxu0 0.0
    %3115 = vmatpush2.msra.mxu0 0.0
    %3116 = vmatprep.subr.mxu0 0.0
    %3117 = vmatpush2.msra.mxu0 0.0
    %3118 = vmatprep.subr.mxu0 0.0
    %3119 = vmatpush2.msra.mxu0 0.0
    %3120 = vmatprep.mubr.f32.mxu0 0.0
    %3121 = vmatmul.mubr.f32.gmra.mxu0 %v2983
    %v3122 = vpop.f32.mrf.mxu0
    %v3123 = vadd.f32 0.0, %v3122
    %v3124 = vpop.f32.mrf.mxu0
    %v3125 = vadd.f32 0.0, %v3124
    %3126 = vdwg.mxu0
    %v3128 = vrot.slane %v3125, 2
    %3129 = vrot.lane.b32.xlu0 %v3128, 32
    %v3130 = vpop.permute.xlu0 %3129
    %v3132 = vadd.f32 %v413, %v3130
    %vm3133 = vcmask 342278
    %v3134 = vsel %vm3133, %v3132, -inf
    %3135 = vmax.xlane.f32.xlu0 %v3134
    %v3136 = vpop.xlane.xlu0 %3135
    %v3137 = vsub.f32 %v3132, %v3136
    %v3138 = vmul.f32 %v3137, 1.442695
    %v3139 = vpow.pop %v3138
    %3141 = vrot.lane.b32.xlu0 %v3139, 96
    %v3142 = vpop.permute.xlu0 %3141
    %vm3144 = vcmask 79878
    %v3145 = vsel %vm3144, %v3142, 0.0
    %3146 = vadd.xlane.f32.xlu0 %v3145
    %v3147 = vpop.xlane.xlu0 %3146
    %v3148 = vrcp.pop %v3147
    %v3149 = vmul.f32 %v3139, %v3148
    %v3151 = vrot.slane %v3149, 6
    %3152 = vrot.lane.b32.xlu0 %v3151, 96
    %v3153 = vpop.permute.xlu0 %3152
    %v3154 = vsel %vm602, %v3153, 0
    %3156 = vmatprep.subr.mxu0 0.0
    %3157 = vmatpush1.msra.mxu0 0.0
    %3158 = vmatprep.subr.mxu0 0.0
    %3159 = vmatpush1.msra.mxu0 0.0
    %3160 = vmatprep.subr.mxu0 0.0
    %3161 = vmatpush1.msra.mxu0 0.0
    %3162 = vmatprep.subr.mxu0 0.0
    %3163 = vmatpush1.msra.mxu0 0.0
    %3164 = vmatprep.subr.mxu0 0.0
    %3165 = vmatpush1.msra.mxu0 0.0
    %3166 = vmatprep.subr.mxu0 0.0
    %3167 = vmatpush1.msra.mxu0 0.0
    %3168 = vmatprep.subr.mxu0 0.0
    %3169 = vmatpush1.msra.mxu0 0.0
    %3170 = vmatprep.subr.mxu0 0.0
    %3171 = vmatpush1.msra.mxu0 0.0
    %3172 = vmatprep.subr.mxu0 0.0
    %3173 = vmatpush1.msra.mxu0 0.0
    %3174 = vmatprep.subr.mxu0 0.0
    %3175 = vmatpush1.msra.mxu0 0.0
    %3176 = vmatprep.subr.mxu0 0.0
    %3177 = vmatpush1.msra.mxu0 0.0
    %3178 = vmatprep.subr.mxu0 0.0
    %3179 = vmatpush1.msra.mxu0 0.0
    %3180 = vmatprep.subr.mxu0 0.0
    %3181 = vmatpush1.msra.mxu0 0.0
    %3182 = vmatprep.subr.mxu0 0.0
    %3183 = vmatpush1.msra.mxu0 0.0
    %3184 = vmatprep.subr.mxu0 0.0
    %3185 = vmatpush1.msra.mxu0 %v606
    %3186 = vmatprep.subr.mxu0 0.0
    %3187 = vmatpush1.msra.mxu0 %v195
    %3188 = vmatprep.subr.mxu0 0.0
    %3189 = vmatpush2.msra.mxu0 0.0
    %3190 = vmatprep.subr.mxu0 0.0
    %3191 = vmatpush2.msra.mxu0 0.0
    %3192 = vmatprep.subr.mxu0 0.0
    %3193 = vmatpush2.msra.mxu0 0.0
    %3194 = vmatprep.subr.mxu0 0.0
    %3195 = vmatpush2.msra.mxu0 0.0
    %3196 = vmatprep.subr.mxu0 0.0
    %3197 = vmatpush2.msra.mxu0 0.0
    %3198 = vmatprep.subr.mxu0 0.0
    %3199 = vmatpush2.msra.mxu0 0.0
    %3200 = vmatprep.subr.mxu0 0.0
    %3201 = vmatpush2.msra.mxu0 0.0
    %3202 = vmatprep.subr.mxu0 0.0
    %3203 = vmatpush2.msra.mxu0 0.0
    %3204 = vmatprep.subr.mxu0 0.0
    %3205 = vmatpush2.msra.mxu0 0.0
    %3206 = vmatprep.subr.mxu0 0.0
    %3207 = vmatpush2.msra.mxu0 0.0
    %3208 = vmatprep.subr.mxu0 0.0
    %3209 = vmatpush2.msra.mxu0 0.0
    %3210 = vmatprep.subr.mxu0 0.0
    %3211 = vmatpush2.msra.mxu0 0.0
    %3212 = vmatprep.subr.mxu0 0.0
    %3213 = vmatpush2.msra.mxu0 0.0
    %3214 = vmatprep.subr.mxu0 0.0
    %3215 = vmatpush2.msra.mxu0 0.0
    %3216 = vmatprep.subr.mxu0 0.0
    %3217 = vmatpush2.msra.mxu0 0.0
    %3218 = vmatprep.subr.mxu0 0.0
    %3219 = vmatpush2.msra.mxu0 0.0
    %3220 = vmatprep.mubr.f32.mxu0 0.0
    %3221 = vmatmul.mubr.f32.gmra.mxu0 %v3154
    %v3222 = vpop.f32.mrf.mxu0
    %v3223 = vadd.f32 0.0, %v3222
    %v3224 = vpop.f32.mrf.mxu0
    %3225 = vdwg.mxu0
    %v3227 = vrot.slane %v3223, 2
    %v3229 = vadd.f32 %v403, %v3227
    %v3230 = vmax.f32 %v3229, 0.0
    %v3232 = vrot.slane %v3230, 6
    %v3233 = vsel %vm121, %v3232, 0
    %3235 = vmatprep.subr.mxu0 0.0
    %3236 = vmatpush1.msra.mxu0 0.0
    %3237 = vmatprep.subr.mxu0 0.0
    %3238 = vmatpush1.msra.mxu0 0.0
    %3239 = vmatprep.subr.mxu0 0.0
    %3240 = vmatpush1.msra.mxu0 0.0
    %3241 = vmatprep.subr.mxu0 0.0
    %3242 = vmatpush1.msra.mxu0 0.0
    %3243 = vmatprep.subr.mxu0 0.0
    %3244 = vmatpush1.msra.mxu0 0.0
    %3245 = vmatprep.subr.mxu0 0.0
    %3246 = vmatpush1.msra.mxu0 0.0
    %3247 = vmatprep.subr.mxu0 0.0
    %3248 = vmatpush1.msra.mxu0 0.0
    %3249 = vmatprep.subr.mxu0 0.0
    %3250 = vmatpush1.msra.mxu0 0.0
    %3251 = vmatprep.subr.mxu0 0.0
    %3252 = vmatpush1.msra.mxu0 0.0
    %3253 = vmatprep.subr.mxu0 0.0
    %3254 = vmatpush1.msra.mxu0 0.0
    %3255 = vmatprep.subr.mxu0 0.0
    %3256 = vmatpush1.msra.mxu0 0.0
    %3257 = vmatprep.subr.mxu0 0.0
    %3258 = vmatpush1.msra.mxu0 0.0
    %3259 = vmatprep.subr.mxu0 %v690
    %3260 = vmatpush1.msra.mxu0 %v689
    %3261 = vmatprep.subr.mxu0 %v687
    %3262 = vmatpush1.msra.mxu0 %v686
    %3263 = vmatprep.subr.mxu0 %v684
    %3264 = vmatpush1.msra.mxu0 %v683
    %3265 = vmatprep.subr.mxu0 %v681
    %3266 = vmatpush1.msra.mxu0 %v680
    %3267 = vmatprep.subr.mxu0 0.0
    %3268 = vmatpush2.msra.mxu0 0.0
    %3269 = vmatprep.subr.mxu0 0.0
    %3270 = vmatpush2.msra.mxu0 0.0
    %3271 = vmatprep.subr.mxu0 0.0
    %3272 = vmatpush2.msra.mxu0 0.0
    %3273 = vmatprep.subr.mxu0 0.0
    %3274 = vmatpush2.msra.mxu0 0.0
    %3275 = vmatprep.subr.mxu0 0.0
    %3276 = vmatpush2.msra.mxu0 0.0
    %3277 = vmatprep.subr.mxu0 0.0
    %3278 = vmatpush2.msra.mxu0 0.0
    %3279 = vmatprep.subr.mxu0 0.0
    %3280 = vmatpush2.msra.mxu0 0.0
    %3281 = vmatprep.subr.mxu0 0.0
    %3282 = vmatpush2.msra.mxu0 0.0
    %3283 = vmatprep.subr.mxu0 0.0
    %3284 = vmatpush2.msra.mxu0 0.0
    %3285 = vmatprep.subr.mxu0 0.0
    %3286 = vmatpush2.msra.mxu0 0.0
    %3287 = vmatprep.subr.mxu0 0.0
    %3288 = vmatpush2.msra.mxu0 0.0
    %3289 = vmatprep.subr.mxu0 0.0
    %3290 = vmatpush2.msra.mxu0 0.0
    %3291 = vmatprep.subr.mxu0 0.0
    %3292 = vmatpush2.msra.mxu0 0.0
    %3293 = vmatprep.subr.mxu0 0.0
    %3294 = vmatpush2.msra.mxu0 0.0
    %3295 = vmatprep.subr.mxu0 0.0
    %3296 = vmatpush2.msra.mxu0 0.0
    %3297 = vmatprep.subr.mxu0 0.0
    %3298 = vmatpush2.msra.mxu0 0.0
    %3299 = vmatprep.mubr.f32.mxu0 0.0
    %3300 = vmatmul.mubr.f32.gmra.mxu0 %v3233
    %v3301 = vpop.f32.mrf.mxu0
    %v3302 = vadd.f32 %v696, %v3301
    %v3303 = vpop.f32.mrf.mxu0
    %v3304 = vadd.f32 %v700, %v3303
    %3305 = vdwg.mxu0
    %3306 = vmatprep.subr.mxu0 0.0
    %3307 = vmatpush1.msra.mxu0 0.0
    %3308 = vmatprep.subr.mxu0 0.0
    %3309 = vmatpush1.msra.mxu0 0.0
    %3310 = vmatprep.subr.mxu0 0.0
    %3311 = vmatpush1.msra.mxu0 0.0
    %3312 = vmatprep.subr.mxu0 0.0
    %3313 = vmatpush1.msra.mxu0 0.0
    %3314 = vmatprep.subr.mxu0 0.0
    %3315 = vmatpush1.msra.mxu0 0.0
    %3316 = vmatprep.subr.mxu0 0.0
    %3317 = vmatpush1.msra.mxu0 0.0
    %3318 = vmatprep.subr.mxu0 0.0
    %3319 = vmatpush1.msra.mxu0 0.0
    %3320 = vmatprep.subr.mxu0 0.0
    %3321 = vmatpush1.msra.mxu0 0.0
    %3322 = vmatprep.subr.mxu0 0.0
    %3323 = vmatpush1.msra.mxu0 0.0
    %3324 = vmatprep.subr.mxu0 0.0
    %3325 = vmatpush1.msra.mxu0 0.0
    %3326 = vmatprep.subr.mxu0 0.0
    %3327 = vmatpush1.msra.mxu0 0.0
    %3328 = vmatprep.subr.mxu0 0.0
    %3329 = vmatpush1.msra.mxu0 0.0
    %3330 = vmatprep.subr.mxu0 0.0
    %3331 = vmatpush1.msra.mxu0 %v691
    %3332 = vmatprep.subr.mxu0 0.0
    %3333 = vmatpush1.msra.mxu0 %v688
    %3334 = vmatprep.subr.mxu0 0.0
    %3335 = vmatpush1.msra.mxu0 %v685
    %3336 = vmatprep.subr.mxu0 0.0
    %3337 = vmatpush1.msra.mxu0 %v682
    %3338 = vmatprep.subr.mxu0 0.0
    %3339 = vmatpush2.msra.mxu0 0.0
    %3340 = vmatprep.subr.mxu0 0.0
    %3341 = vmatpush2.msra.mxu0 0.0
    %3342 = vmatprep.subr.mxu0 0.0
    %3343 = vmatpush2.msra.mxu0 0.0
    %3344 = vmatprep.subr.mxu0 0.0
    %3345 = vmatpush2.msra.mxu0 0.0
    %3346 = vmatprep.subr.mxu0 0.0
    %3347 = vmatpush2.msra.mxu0 0.0
    %3348 = vmatprep.subr.mxu0 0.0
    %3349 = vmatpush2.msra.mxu0 0.0
    %3350 = vmatprep.subr.mxu0 0.0
    %3351 = vmatpush2.msra.mxu0 0.0
    %3352 = vmatprep.subr.mxu0 0.0
    %3353 = vmatpush2.msra.mxu0 0.0
    %3354 = vmatprep.subr.mxu0 0.0
    %3355 = vmatpush2.msra.mxu0 0.0
    %3356 = vmatprep.subr.mxu0 0.0
    %3357 = vmatpush2.msra.mxu0 0.0
    %3358 = vmatprep.subr.mxu0 0.0
    %3359 = vmatpush2.msra.mxu0 0.0
    %3360 = vmatprep.subr.mxu0 0.0
    %3361 = vmatpush2.msra.mxu0 0.0
    %3362 = vmatprep.subr.mxu0 0.0
    %3363 = vmatpush2.msra.mxu0 0.0
    %3364 = vmatprep.subr.mxu0 0.0
    %3365 = vmatpush2.msra.mxu0 0.0
    %3366 = vmatprep.subr.mxu0 0.0
    %3367 = vmatpush2.msra.mxu0 0.0
    %3368 = vmatprep.subr.mxu0 0.0
    %3369 = vmatpush2.msra.mxu0 0.0
    %3370 = vmatprep.mubr.f32.mxu0 0.0
    %3371 = vmatmul.mubr.f32.gmra.mxu0 %v3233
    %v3372 = vpop.f32.mrf.mxu0
    %v3373 = vadd.f32 %v704, %v3372
    %v3374 = vpop.f32.mrf.mxu0
    %3375 = vdwg.mxu0
    %v3376 = vadd.f32 %v3052, %v856
    %v3377 = vadd.f32 %v3054, %v860
    %v3378 = vadd.f32 %v3123, %v864
    %v3379 = vadd.f32 %v3302, %v3376
    %v3380 = vxor.u32 %v3379, 2147483648
    %v3381 = vmul.f32 %v3380, 1.442695
    %v3382 = vpow.pop %v3381
    %v3383 = vadd.f32 %v3382, 1.0
    %v3384 = vrcp.pop %v3383
    %v3385 = vmul.f32 1.0, %v3384
    %v3386 = vadd.f32 %v3304, %v3377
    %v3387 = vxor.u32 %v3386, 2147483648
    %v3388 = vmul.f32 %v3387, 1.442695
    %v3389 = vpow.pop %v3388
    %v3390 = vadd.f32 %v3389, 1.0
    %v3391 = vrcp.pop %v3390
    %v3392 = vmul.f32 1.0, %v3391
    %v3393 = vmul.f32 %v3385, %v3378
    %v3394 = vadd.f32 %v3373, %v3393
    %v3395 = vtanh.pop %v3394
    %v3396 = vsub.f32 1.0, %v3392
    %v3397 = vmul.f32 %v3396, %v3395
    %v3398 = vmul.f32 %v3392, %v2981
    %v3399 = vadd.f32 %v3397, %v3398
    %v3401 = vsel %vm121, %v3399, 0
    %3403 = vmatprep.subr.mxu0 0.0
    %3404 = vmatpush1.msra.mxu0 0.0
    %3405 = vmatprep.subr.mxu0 0.0
    %3406 = vmatpush1.msra.mxu0 0.0
    %3407 = vmatprep.subr.mxu0 0.0
    %3408 = vmatpush1.msra.mxu0 0.0
    %3409 = vmatprep.subr.mxu0 0.0
    %3410 = vmatpush1.msra.mxu0 0.0
    %3411 = vmatprep.subr.mxu0 0.0
    %3412 = vmatpush1.msra.mxu0 0.0
    %3413 = vmatprep.subr.mxu0 0.0
    %3414 = vmatpush1.msra.mxu0 0.0
    %3415 = vmatprep.subr.mxu0 0.0
    %3416 = vmatpush1.msra.mxu0 0.0
    %3417 = vmatprep.subr.mxu0 0.0
    %3418 = vmatpush1.msra.mxu0 0.0
    %3419 = vmatprep.subr.mxu0 0.0
    %3420 = vmatpush1.msra.mxu0 0.0
    %3421 = vmatprep.subr.mxu0 0.0
    %3422 = vmatpush1.msra.mxu0 0.0
    %3423 = vmatprep.subr.mxu0 0.0
    %3424 = vmatpush1.msra.mxu0 0.0
    %3425 = vmatprep.subr.mxu0 0.0
    %3426 = vmatpush1.msra.mxu0 0.0
    %3427 = vmatprep.subr.mxu0 %v429
    %3428 = vmatpush1.msra.mxu0 %v428
    %3429 = vmatprep.subr.mxu0 %v425
    %3430 = vmatpush1.msra.mxu0 %v424
    %3431 = vmatprep.subr.mxu0 %v421
    %3432 = vmatpush1.msra.mxu0 %v420
    %3433 = vmatprep.subr.mxu0 %v417
    %3434 = vmatpush1.msra.mxu0 %v416
    %3435 = vmatprep.subr.mxu0 0.0
    %3436 = vmatpush2.msra.mxu0 0.0
    %3437 = vmatprep.subr.mxu0 0.0
    %3438 = vmatpush2.msra.mxu0 0.0
    %3439 = vmatprep.subr.mxu0 0.0
    %3440 = vmatpush2.msra.mxu0 0.0
    %3441 = vmatprep.subr.mxu0 0.0
    %3442 = vmatpush2.msra.mxu0 0.0
    %3443 = vmatprep.subr.mxu0 0.0
    %3444 = vmatpush2.msra.mxu0 0.0
    %3445 = vmatprep.subr.mxu0 0.0
    %3446 = vmatpush2.msra.mxu0 0.0
    %3447 = vmatprep.subr.mxu0 0.0
    %3448 = vmatpush2.msra.mxu0 0.0
    %3449 = vmatprep.subr.mxu0 0.0
    %3450 = vmatpush2.msra.mxu0 0.0
    %3451 = vmatprep.subr.mxu0 0.0
    %3452 = vmatpush2.msra.mxu0 0.0
    %3453 = vmatprep.subr.mxu0 0.0
    %3454 = vmatpush2.msra.mxu0 0.0
    %3455 = vmatprep.subr.mxu0 0.0
    %3456 = vmatpush2.msra.mxu0 0.0
    %3457 = vmatprep.subr.mxu0 0.0
    %3458 = vmatpush2.msra.mxu0 0.0
    %3459 = vmatprep.subr.mxu0 0.0
    %3460 = vmatpush2.msra.mxu0 0.0
    %3461 = vmatprep.subr.mxu0 0.0
    %3462 = vmatpush2.msra.mxu0 0.0
    %3463 = vmatprep.subr.mxu0 0.0
    %3464 = vmatpush2.msra.mxu0 0.0
    %3465 = vmatprep.subr.mxu0 0.0
    %3466 = vmatpush2.msra.mxu0 0.0
    %3467 = vmatprep.mubr.f32.mxu0 0.0
    %3468 = vmatmul.mubr.f32.gmra.mxu0 %v3401
    %v3469 = vpop.f32.mrf.mxu0
    %v3470 = vadd.f32 0.0, %v3469
    %v3471 = vpop.f32.mrf.mxu0
    %v3472 = vadd.f32 0.0, %v3471
    %3473 = vdwg.mxu0
    %3474 = vmatprep.subr.mxu0 0.0
    %3475 = vmatpush1.msra.mxu0 0.0
    %3476 = vmatprep.subr.mxu0 0.0
    %3477 = vmatpush1.msra.mxu0 0.0
    %3478 = vmatprep.subr.mxu0 0.0
    %3479 = vmatpush1.msra.mxu0 0.0
    %3480 = vmatprep.subr.mxu0 0.0
    %3481 = vmatpush1.msra.mxu0 0.0
    %3482 = vmatprep.subr.mxu0 0.0
    %3483 = vmatpush1.msra.mxu0 0.0
    %3484 = vmatprep.subr.mxu0 0.0
    %3485 = vmatpush1.msra.mxu0 0.0
    %3486 = vmatprep.subr.mxu0 0.0
    %3487 = vmatpush1.msra.mxu0 0.0
    %3488 = vmatprep.subr.mxu0 0.0
    %3489 = vmatpush1.msra.mxu0 0.0
    %3490 = vmatprep.subr.mxu0 0.0
    %3491 = vmatpush1.msra.mxu0 0.0
    %3492 = vmatprep.subr.mxu0 0.0
    %3493 = vmatpush1.msra.mxu0 0.0
    %3494 = vmatprep.subr.mxu0 0.0
    %3495 = vmatpush1.msra.mxu0 0.0
    %3496 = vmatprep.subr.mxu0 0.0
    %3497 = vmatpush1.msra.mxu0 0.0
    %3498 = vmatprep.subr.mxu0 %v431
    %3499 = vmatpush1.msra.mxu0 %v430
    %3500 = vmatprep.subr.mxu0 %v427
    %3501 = vmatpush1.msra.mxu0 %v426
    %3502 = vmatprep.subr.mxu0 %v423
    %3503 = vmatpush1.msra.mxu0 %v422
    %3504 = vmatprep.subr.mxu0 %v419
    %3505 = vmatpush1.msra.mxu0 %v418
    %3506 = vmatprep.subr.mxu0 0.0
    %3507 = vmatpush2.msra.mxu0 0.0
    %3508 = vmatprep.subr.mxu0 0.0
    %3509 = vmatpush2.msra.mxu0 0.0
    %3510 = vmatprep.subr.mxu0 0.0
    %3511 = vmatpush2.msra.mxu0 0.0
    %3512 = vmatprep.subr.mxu0 0.0
    %3513 = vmatpush2.msra.mxu0 0.0
    %3514 = vmatprep.subr.mxu0 0.0
    %3515 = vmatpush2.msra.mxu0 0.0
    %3516 = vmatprep.subr.mxu0 0.0
    %3517 = vmatpush2.msra.mxu0 0.0
    %3518 = vmatprep.subr.mxu0 0.0
    %3519 = vmatpush2.msra.mxu0 0.0
    %3520 = vmatprep.subr.mxu0 0.0
    %3521 = vmatpush2.msra.mxu0 0.0
    %3522 = vmatprep.subr.mxu0 0.0
    %3523 = vmatpush2.msra.mxu0 0.0
    %3524 = vmatprep.subr.mxu0 0.0
    %3525 = vmatpush2.msra.mxu0 0.0
    %3526 = vmatprep.subr.mxu0 0.0
    %3527 = vmatpush2.msra.mxu0 0.0
    %3528 = vmatprep.subr.mxu0 0.0
    %3529 = vmatpush2.msra.mxu0 0.0
    %3530 = vmatprep.subr.mxu0 0.0
    %3531 = vmatpush2.msra.mxu0 0.0
    %3532 = vmatprep.subr.mxu0 0.0
    %3533 = vmatpush2.msra.mxu0 0.0
    %3534 = vmatprep.subr.mxu0 0.0
    %3535 = vmatpush2.msra.mxu0 0.0
    %3536 = vmatprep.subr.mxu0 0.0
    %3537 = vmatpush2.msra.mxu0 0.0
    %3538 = vmatprep.mubr.f32.mxu0 0.0
    %3539 = vmatmul.mubr.f32.gmra.mxu0 %v3401
    %v3540 = vpop.f32.mrf.mxu0
    %v3541 = vadd.f32 0.0, %v3540
    %v3542 = vpop.f32.mrf.mxu0
    %v3543 = vadd.f32 0.0, %v3542
    %3544 = vdwg.mxu0
    %v3546 = vrot.slane %v3543, 1
    %3547 = vrot.lane.b32.xlu0 %v3546, 32
    %v3548 = vpop.permute.xlu0 %3547
    %v3550 = vadd.f32 %v413, %v3548
    %vm3551 = vcmask 343303
    %v3552 = vsel %vm3551, %v3550, -inf
    %3553 = vmax.xlane.f32.xlu0 %v3552
    %v3554 = vpop.xlane.xlu0 %3553
    %v3555 = vsub.f32 %v3550, %v3554
    %v3556 = vmul.f32 %v3555, 1.442695
    %v3557 = vpow.pop %v3556
    %3559 = vrot.lane.b32.xlu0 %v3557, 96
    %v3560 = vpop.permute.xlu0 %3559
    %vm3562 = vcmask 80903
    %v3563 = vsel %vm3562, %v3560, 0.0
    %3564 = vadd.xlane.f32.xlu0 %v3563
    %v3565 = vpop.xlane.xlu0 %3564
    %v3566 = vrcp.pop %v3565
    %v3567 = vmul.f32 %v3557, %v3566
    %v3569 = vrot.slane %v3567, 7
    %3570 = vrot.lane.b32.xlu0 %v3569, 96
    %v3571 = vpop.permute.xlu0 %3570
    %v3572 = vsel %vm602, %v3571, 0
    %3574 = vmatprep.subr.mxu0 0.0
    %3575 = vmatpush1.msra.mxu0 0.0
    %3576 = vmatprep.subr.mxu0 0.0
    %3577 = vmatpush1.msra.mxu0 0.0
    %3578 = vmatprep.subr.mxu0 0.0
    %3579 = vmatpush1.msra.mxu0 0.0
    %3580 = vmatprep.subr.mxu0 0.0
    %3581 = vmatpush1.msra.mxu0 0.0
    %3582 = vmatprep.subr.mxu0 0.0
    %3583 = vmatpush1.msra.mxu0 0.0
    %3584 = vmatprep.subr.mxu0 0.0
    %3585 = vmatpush1.msra.mxu0 0.0
    %3586 = vmatprep.subr.mxu0 0.0
    %3587 = vmatpush1.msra.mxu0 0.0
    %3588 = vmatprep.subr.mxu0 0.0
    %3589 = vmatpush1.msra.mxu0 0.0
    %3590 = vmatprep.subr.mxu0 0.0
    %3591 = vmatpush1.msra.mxu0 0.0
    %3592 = vmatprep.subr.mxu0 0.0
    %3593 = vmatpush1.msra.mxu0 0.0
    %3594 = vmatprep.subr.mxu0 0.0
    %3595 = vmatpush1.msra.mxu0 0.0
    %3596 = vmatprep.subr.mxu0 0.0
    %3597 = vmatpush1.msra.mxu0 0.0
    %3598 = vmatprep.subr.mxu0 0.0
    %3599 = vmatpush1.msra.mxu0 0.0
    %3600 = vmatprep.subr.mxu0 0.0
    %3601 = vmatpush1.msra.mxu0 0.0
    %3602 = vmatprep.subr.mxu0 0.0
    %3603 = vmatpush1.msra.mxu0 %v606
    %3604 = vmatprep.subr.mxu0 0.0
    %3605 = vmatpush1.msra.mxu0 %v195
    %3606 = vmatprep.subr.mxu0 0.0
    %3607 = vmatpush2.msra.mxu0 0.0
    %3608 = vmatprep.subr.mxu0 0.0
    %3609 = vmatpush2.msra.mxu0 0.0
    %3610 = vmatprep.subr.mxu0 0.0
    %3611 = vmatpush2.msra.mxu0 0.0
    %3612 = vmatprep.subr.mxu0 0.0
    %3613 = vmatpush2.msra.mxu0 0.0
    %3614 = vmatprep.subr.mxu0 0.0
    %3615 = vmatpush2.msra.mxu0 0.0
    %3616 = vmatprep.subr.mxu0 0.0
    %3617 = vmatpush2.msra.mxu0 0.0
    %3618 = vmatprep.subr.mxu0 0.0
    %3619 = vmatpush2.msra.mxu0 0.0
    %3620 = vmatprep.subr.mxu0 0.0
    %3621 = vmatpush2.msra.mxu0 0.0
    %3622 = vmatprep.subr.mxu0 0.0
    %3623 = vmatpush2.msra.mxu0 0.0
    %3624 = vmatprep.subr.mxu0 0.0
    %3625 = vmatpush2.msra.mxu0 0.0
    %3626 = vmatprep.subr.mxu0 0.0
    %3627 = vmatpush2.msra.mxu0 0.0
    %3628 = vmatprep.subr.mxu0 0.0
    %3629 = vmatpush2.msra.mxu0 0.0
    %3630 = vmatprep.subr.mxu0 0.0
    %3631 = vmatpush2.msra.mxu0 0.0
    %3632 = vmatprep.subr.mxu0 0.0
    %3633 = vmatpush2.msra.mxu0 0.0
    %3634 = vmatprep.subr.mxu0 0.0
    %3635 = vmatpush2.msra.mxu0 0.0
    %3636 = vmatprep.subr.mxu0 0.0
    %3637 = vmatpush2.msra.mxu0 0.0
    %3638 = vmatprep.mubr.f32.mxu0 0.0
    %3639 = vmatmul.mubr.f32.gmra.mxu0 %v3572
    %v3640 = vpop.f32.mrf.mxu0
    %v3641 = vadd.f32 0.0, %v3640
    %v3642 = vpop.f32.mrf.mxu0
    %3643 = vdwg.mxu0
    %v3645 = vrot.slane %v3641, 1
    %v3647 = vadd.f32 %v403, %v3645
    %v3648 = vmax.f32 %v3647, 0.0
    %v3650 = vrot.slane %v3648, 7
    %v3651 = vsel %vm121, %v3650, 0
    %3653 = vmatprep.subr.mxu0 0.0
    %3654 = vmatpush1.msra.mxu0 0.0
    %3655 = vmatprep.subr.mxu0 0.0
    %3656 = vmatpush1.msra.mxu0 0.0
    %3657 = vmatprep.subr.mxu0 0.0
    %3658 = vmatpush1.msra.mxu0 0.0
    %3659 = vmatprep.subr.mxu0 0.0
    %3660 = vmatpush1.msra.mxu0 0.0
    %3661 = vmatprep.subr.mxu0 0.0
    %3662 = vmatpush1.msra.mxu0 0.0
    %3663 = vmatprep.subr.mxu0 0.0
    %3664 = vmatpush1.msra.mxu0 0.0
    %3665 = vmatprep.subr.mxu0 0.0
    %3666 = vmatpush1.msra.mxu0 0.0
    %3667 = vmatprep.subr.mxu0 0.0
    %3668 = vmatpush1.msra.mxu0 0.0
    %3669 = vmatprep.subr.mxu0 0.0
    %3670 = vmatpush1.msra.mxu0 0.0
    %3671 = vmatprep.subr.mxu0 0.0
    %3672 = vmatpush1.msra.mxu0 0.0
    %3673 = vmatprep.subr.mxu0 0.0
    %3674 = vmatpush1.msra.mxu0 0.0
    %3675 = vmatprep.subr.mxu0 0.0
    %3676 = vmatpush1.msra.mxu0 0.0
    %3677 = vmatprep.subr.mxu0 %v690
    %3678 = vmatpush1.msra.mxu0 %v689
    %3679 = vmatprep.subr.mxu0 %v687
    %3680 = vmatpush1.msra.mxu0 %v686
    %3681 = vmatprep.subr.mxu0 %v684
    %3682 = vmatpush1.msra.mxu0 %v683
    %3683 = vmatprep.subr.mxu0 %v681
    %3684 = vmatpush1.msra.mxu0 %v680
    %3685 = vmatprep.subr.mxu0 0.0
    %3686 = vmatpush2.msra.mxu0 0.0
    %3687 = vmatprep.subr.mxu0 0.0
    %3688 = vmatpush2.msra.mxu0 0.0
    %3689 = vmatprep.subr.mxu0 0.0
    %3690 = vmatpush2.msra.mxu0 0.0
    %3691 = vmatprep.subr.mxu0 0.0
    %3692 = vmatpush2.msra.mxu0 0.0
    %3693 = vmatprep.subr.mxu0 0.0
    %3694 = vmatpush2.msra.mxu0 0.0
    %3695 = vmatprep.subr.mxu0 0.0
    %3696 = vmatpush2.msra.mxu0 0.0
    %3697 = vmatprep.subr.mxu0 0.0
    %3698 = vmatpush2.msra.mxu0 0.0
    %3699 = vmatprep.subr.mxu0 0.0
    %3700 = vmatpush2.msra.mxu0 0.0
    %3701 = vmatprep.subr.mxu0 0.0
    %3702 = vmatpush2.msra.mxu0 0.0
    %3703 = vmatprep.subr.mxu0 0.0
    %3704 = vmatpush2.msra.mxu0 0.0
    %3705 = vmatprep.subr.mxu0 0.0
    %3706 = vmatpush2.msra.mxu0 0.0
    %3707 = vmatprep.subr.mxu0 0.0
    %3708 = vmatpush2.msra.mxu0 0.0
    %3709 = vmatprep.subr.mxu0 0.0
    %3710 = vmatpush2.msra.mxu0 0.0
    %3711 = vmatprep.subr.mxu0 0.0
    %3712 = vmatpush2.msra.mxu0 0.0
    %3713 = vmatprep.subr.mxu0 0.0
    %3714 = vmatpush2.msra.mxu0 0.0
    %3715 = vmatprep.subr.mxu0 0.0
    %3716 = vmatpush2.msra.mxu0 0.0
    %3717 = vmatprep.mubr.f32.mxu0 0.0
    %3718 = vmatmul.mubr.f32.gmra.mxu0 %v3651
    %v3719 = vpop.f32.mrf.mxu0
    %v3720 = vadd.f32 %v696, %v3719
    %v3721 = vpop.f32.mrf.mxu0
    %v3722 = vadd.f32 %v700, %v3721
    %3723 = vdwg.mxu0
    %3724 = vmatprep.subr.mxu0 0.0
    %3725 = vmatpush1.msra.mxu0 0.0
    %3726 = vmatprep.subr.mxu0 0.0
    %3727 = vmatpush1.msra.mxu0 0.0
    %3728 = vmatprep.subr.mxu0 0.0
    %3729 = vmatpush1.msra.mxu0 0.0
    %3730 = vmatprep.subr.mxu0 0.0
    %3731 = vmatpush1.msra.mxu0 0.0
    %3732 = vmatprep.subr.mxu0 0.0
    %3733 = vmatpush1.msra.mxu0 0.0
    %3734 = vmatprep.subr.mxu0 0.0
    %3735 = vmatpush1.msra.mxu0 0.0
    %3736 = vmatprep.subr.mxu0 0.0
    %3737 = vmatpush1.msra.mxu0 0.0
    %3738 = vmatprep.subr.mxu0 0.0
    %3739 = vmatpush1.msra.mxu0 0.0
    %3740 = vmatprep.subr.mxu0 0.0
    %3741 = vmatpush1.msra.mxu0 0.0
    %3742 = vmatprep.subr.mxu0 0.0
    %3743 = vmatpush1.msra.mxu0 0.0
    %3744 = vmatprep.subr.mxu0 0.0
    %3745 = vmatpush1.msra.mxu0 0.0
    %3746 = vmatprep.subr.mxu0 0.0
    %3747 = vmatpush1.msra.mxu0 0.0
    %3748 = vmatprep.subr.mxu0 0.0
    %3749 = vmatpush1.msra.mxu0 %v691
    %3750 = vmatprep.subr.mxu0 0.0
    %3751 = vmatpush1.msra.mxu0 %v688
    %3752 = vmatprep.subr.mxu0 0.0
    %3753 = vmatpush1.msra.mxu0 %v685
    %3754 = vmatprep.subr.mxu0 0.0
    %3755 = vmatpush1.msra.mxu0 %v682
    %3756 = vmatprep.subr.mxu0 0.0
    %3757 = vmatpush2.msra.mxu0 0.0
    %3758 = vmatprep.subr.mxu0 0.0
    %3759 = vmatpush2.msra.mxu0 0.0
    %3760 = vmatprep.subr.mxu0 0.0
    %3761 = vmatpush2.msra.mxu0 0.0
    %3762 = vmatprep.subr.mxu0 0.0
    %3763 = vmatpush2.msra.mxu0 0.0
    %3764 = vmatprep.subr.mxu0 0.0
    %3765 = vmatpush2.msra.mxu0 0.0
    %3766 = vmatprep.subr.mxu0 0.0
    %3767 = vmatpush2.msra.mxu0 0.0
    %3768 = vmatprep.subr.mxu0 0.0
    %3769 = vmatpush2.msra.mxu0 0.0
    %3770 = vmatprep.subr.mxu0 0.0
    %3771 = vmatpush2.msra.mxu0 0.0
    %3772 = vmatprep.subr.mxu0 0.0
    %3773 = vmatpush2.msra.mxu0 0.0
    %3774 = vmatprep.subr.mxu0 0.0
    %3775 = vmatpush2.msra.mxu0 0.0
    %3776 = vmatprep.subr.mxu0 0.0
    %3777 = vmatpush2.msra.mxu0 0.0
    %3778 = vmatprep.subr.mxu0 0.0
    %3779 = vmatpush2.msra.mxu0 0.0
    %3780 = vmatprep.subr.mxu0 0.0
    %3781 = vmatpush2.msra.mxu0 0.0
    %3782 = vmatprep.subr.mxu0 0.0
    %3783 = vmatpush2.msra.mxu0 0.0
    %3784 = vmatprep.subr.mxu0 0.0
    %3785 = vmatpush2.msra.mxu0 0.0
    %3786 = vmatprep.subr.mxu0 0.0
    %3787 = vmatpush2.msra.mxu0 0.0
    %3788 = vmatprep.mubr.f32.mxu0 0.0
    %3789 = vmatmul.mubr.f32.gmra.mxu0 %v3651
    %v3790 = vpop.f32.mrf.mxu0
    %v3791 = vadd.f32 %v704, %v3790
    %v3792 = vpop.f32.mrf.mxu0
    %3793 = vdwg.mxu0
    %v3794 = vadd.f32 %v3470, %v856
    %v3795 = vadd.f32 %v3472, %v860
    %v3796 = vadd.f32 %v3541, %v864
    %v3797 = vadd.f32 %v3720, %v3794
    %v3798 = vxor.u32 %v3797, 2147483648
    %v3799 = vmul.f32 %v3798, 1.442695
    %v3800 = vpow.pop %v3799
    %v3801 = vadd.f32 %v3800, 1.0
    %v3802 = vrcp.pop %v3801
    %v3803 = vmul.f32 1.0, %v3802
    %v3804 = vadd.f32 %v3722, %v3795
    %v3805 = vxor.u32 %v3804, 2147483648
    %v3806 = vmul.f32 %v3805, 1.442695
    %v3807 = vpow.pop %v3806
    %v3808 = vadd.f32 %v3807, 1.0
    %v3809 = vrcp.pop %v3808
    %v3810 = vmul.f32 1.0, %v3809
    %v3811 = vmul.f32 %v3803, %v3796
    %v3812 = vadd.f32 %v3791, %v3811
    %v3813 = vtanh.pop %v3812
    %v3814 = vsub.f32 1.0, %v3810
    %v3815 = vmul.f32 %v3814, %v3813
    %v3816 = vmul.f32 %v3810, %v3399
    %v3817 = vadd.f32 %v3815, %v3816
    %v3819 = vsel %vm121, %v3817, 0
    %3821 = vmatprep.subr.mxu0 0.0
    %3822 = vmatpush1.msra.mxu0 0.0
    %3823 = vmatprep.subr.mxu0 0.0
    %3824 = vmatpush1.msra.mxu0 0.0
    %3825 = vmatprep.subr.mxu0 0.0
    %3826 = vmatpush1.msra.mxu0 0.0
    %3827 = vmatprep.subr.mxu0 0.0
    %3828 = vmatpush1.msra.mxu0 0.0
    %3829 = vmatprep.subr.mxu0 0.0
    %3830 = vmatpush1.msra.mxu0 0.0
    %3831 = vmatprep.subr.mxu0 0.0
    %3832 = vmatpush1.msra.mxu0 0.0
    %3833 = vmatprep.subr.mxu0 0.0
    %3834 = vmatpush1.msra.mxu0 0.0
    %3835 = vmatprep.subr.mxu0 0.0
    %3836 = vmatpush1.msra.mxu0 0.0
    %3837 = vmatprep.subr.mxu0 0.0
    %3838 = vmatpush1.msra.mxu0 0.0
    %3839 = vmatprep.subr.mxu0 0.0
    %3840 = vmatpush1.msra.mxu0 0.0
    %3841 = vmatprep.subr.mxu0 0.0
    %3842 = vmatpush1.msra.mxu0 0.0
    %3843 = vmatprep.subr.mxu0 0.0
    %3844 = vmatpush1.msra.mxu0 0.0
    %3845 = vmatprep.subr.mxu0 %v429
    %3846 = vmatpush1.msra.mxu0 %v428
    %3847 = vmatprep.subr.mxu0 %v425
    %3848 = vmatpush1.msra.mxu0 %v424
    %3849 = vmatprep.subr.mxu0 %v421
    %3850 = vmatpush1.msra.mxu0 %v420
    %3851 = vmatprep.subr.mxu0 %v417
    %3852 = vmatpush1.msra.mxu0 %v416
    %3853 = vmatprep.subr.mxu0 0.0
    %3854 = vmatpush2.msra.mxu0 0.0
    %3855 = vmatprep.subr.mxu0 0.0
    %3856 = vmatpush2.msra.mxu0 0.0
    %3857 = vmatprep.subr.mxu0 0.0
    %3858 = vmatpush2.msra.mxu0 0.0
    %3859 = vmatprep.subr.mxu0 0.0
    %3860 = vmatpush2.msra.mxu0 0.0
    %3861 = vmatprep.subr.mxu0 0.0
    %3862 = vmatpush2.msra.mxu0 0.0
    %3863 = vmatprep.subr.mxu0 0.0
    %3864 = vmatpush2.msra.mxu0 0.0
    %3865 = vmatprep.subr.mxu0 0.0
    %3866 = vmatpush2.msra.mxu0 0.0
    %3867 = vmatprep.subr.mxu0 0.0
    %3868 = vmatpush2.msra.mxu0 0.0
    %3869 = vmatprep.subr.mxu0 0.0
    %3870 = vmatpush2.msra.mxu0 0.0
    %3871 = vmatprep.subr.mxu0 0.0
    %3872 = vmatpush2.msra.mxu0 0.0
    %3873 = vmatprep.subr.mxu0 0.0
    %3874 = vmatpush2.msra.mxu0 0.0
    %3875 = vmatprep.subr.mxu0 0.0
    %3876 = vmatpush2.msra.mxu0 0.0
    %3877 = vmatprep.subr.mxu0 0.0
    %3878 = vmatpush2.msra.mxu0 0.0
    %3879 = vmatprep.subr.mxu0 0.0
    %3880 = vmatpush2.msra.mxu0 0.0
    %3881 = vmatprep.subr.mxu0 0.0
    %3882 = vmatpush2.msra.mxu0 0.0
    %3883 = vmatprep.subr.mxu0 0.0
    %3884 = vmatpush2.msra.mxu0 0.0
    %3885 = vmatprep.mubr.f32.mxu0 0.0
    %3886 = vmatmul.mubr.f32.gmra.mxu0 %v3819
    %v3887 = vpop.f32.mrf.mxu0
    %v3888 = vadd.f32 0.0, %v3887
    %v3889 = vpop.f32.mrf.mxu0
    %v3890 = vadd.f32 0.0, %v3889
    %3891 = vdwg.mxu0
    %3892 = vmatprep.subr.mxu0 0.0
    %3893 = vmatpush1.msra.mxu0 0.0
    %3894 = vmatprep.subr.mxu0 0.0
    %3895 = vmatpush1.msra.mxu0 0.0
    %3896 = vmatprep.subr.mxu0 0.0
    %3897 = vmatpush1.msra.mxu0 0.0
    %3898 = vmatprep.subr.mxu0 0.0
    %3899 = vmatpush1.msra.mxu0 0.0
    %3900 = vmatprep.subr.mxu0 0.0
    %3901 = vmatpush1.msra.mxu0 0.0
    %3902 = vmatprep.subr.mxu0 0.0
    %3903 = vmatpush1.msra.mxu0 0.0
    %3904 = vmatprep.subr.mxu0 0.0
    %3905 = vmatpush1.msra.mxu0 0.0
    %3906 = vmatprep.subr.mxu0 0.0
    %3907 = vmatpush1.msra.mxu0 0.0
    %3908 = vmatprep.subr.mxu0 0.0
    %3909 = vmatpush1.msra.mxu0 0.0
    %3910 = vmatprep.subr.mxu0 0.0
    %3911 = vmatpush1.msra.mxu0 0.0
    %3912 = vmatprep.subr.mxu0 0.0
    %3913 = vmatpush1.msra.mxu0 0.0
    %3914 = vmatprep.subr.mxu0 0.0
    %3915 = vmatpush1.msra.mxu0 0.0
    %3916 = vmatprep.subr.mxu0 %v431
    %3917 = vmatpush1.msra.mxu0 %v430
    %3918 = vmatprep.subr.mxu0 %v427
    %3919 = vmatpush1.msra.mxu0 %v426
    %3920 = vmatprep.subr.mxu0 %v423
    %3921 = vmatpush1.msra.mxu0 %v422
    %3922 = vmatprep.subr.mxu0 %v419
    %3923 = vmatpush1.msra.mxu0 %v418
    %3924 = vmatprep.subr.mxu0 0.0
    %3925 = vmatpush2.msra.mxu0 0.0
    %3926 = vmatprep.subr.mxu0 0.0
    %3927 = vmatpush2.msra.mxu0 0.0
    %3928 = vmatprep.subr.mxu0 0.0
    %3929 = vmatpush2.msra.mxu0 0.0
    %3930 = vmatprep.subr.mxu0 0.0
    %3931 = vmatpush2.msra.mxu0 0.0
    %3932 = vmatprep.subr.mxu0 0.0
    %3933 = vmatpush2.msra.mxu0 0.0
    %3934 = vmatprep.subr.mxu0 0.0
    %3935 = vmatpush2.msra.mxu0 0.0
    %3936 = vmatprep.subr.mxu0 0.0
    %3937 = vmatpush2.msra.mxu0 0.0
    %3938 = vmatprep.subr.mxu0 0.0
    %3939 = vmatpush2.msra.mxu0 0.0
    %3940 = vmatprep.subr.mxu0 0.0
    %3941 = vmatpush2.msra.mxu0 0.0
    %3942 = vmatprep.subr.mxu0 0.0
    %3943 = vmatpush2.msra.mxu0 0.0
    %3944 = vmatprep.subr.mxu0 0.0
    %3945 = vmatpush2.msra.mxu0 0.0
    %3946 = vmatprep.subr.mxu0 0.0
    %3947 = vmatpush2.msra.mxu0 0.0
    %3948 = vmatprep.subr.mxu0 0.0
    %3949 = vmatpush2.msra.mxu0 0.0
    %3950 = vmatprep.subr.mxu0 0.0
    %3951 = vmatpush2.msra.mxu0 0.0
    %3952 = vmatprep.subr.mxu0 0.0
    %3953 = vmatpush2.msra.mxu0 0.0
    %3954 = vmatprep.subr.mxu0 0.0
    %3955 = vmatpush2.msra.mxu0 0.0
    %3956 = vmatprep.mubr.f32.mxu0 0.0
    %3957 = vmatmul.mubr.f32.gmra.mxu0 %v3819
    %v3958 = vpop.f32.mrf.mxu0
    %v3959 = vadd.f32 0.0, %v3958
    %v3960 = vpop.f32.mrf.mxu0
    %v3961 = vadd.f32 0.0, %v3960
    %3962 = vdwg.mxu0
    %3964 = vrot.lane.b32.xlu0 %v3961, 32
    %v3965 = vpop.permute.xlu0 %3964
    %v3967 = vadd.f32 %v414, %v3965
    %v3968 = vsel %vm582, %v3967, -inf
    %3969 = vmax.xlane.f32.xlu0 %v3968
    %v3970 = vpop.xlane.xlu0 %3969
    %v3971 = vsub.f32 %v3967, %v3970
    %v3972 = vmul.f32 %v3971, 1.442695
    %v3973 = vpow.pop %v3972
    %3975 = vrot.lane.b32.xlu0 %v3973, 96
    %v3976 = vpop.permute.xlu0 %3975
    %v3978 = vsel %vm593, %v3976, 0.0
    %3979 = vadd.xlane.f32.xlu0 %v3978
    %v3980 = vpop.xlane.xlu0 %3979
    %v3981 = vrcp.pop %v3980
    %v3982 = vmul.f32 %v3973, %v3981
    %3984 = vrot.lane.b32.xlu0 %v3982, 96
    %v3985 = vpop.permute.xlu0 %3984
    %v3986 = vsel %vm602, %v3985, 0
    %3988 = vmatprep.subr.mxu0 0.0
    %3989 = vmatpush1.msra.mxu0 0.0
    %3990 = vmatprep.subr.mxu0 0.0
    %3991 = vmatpush1.msra.mxu0 0.0
    %3992 = vmatprep.subr.mxu0 0.0
    %3993 = vmatpush1.msra.mxu0 0.0
    %3994 = vmatprep.subr.mxu0 0.0
    %3995 = vmatpush1.msra.mxu0 0.0
    %3996 = vmatprep.subr.mxu0 0.0
    %3997 = vmatpush1.msra.mxu0 0.0
    %3998 = vmatprep.subr.mxu0 0.0
    %3999 = vmatpush1.msra.mxu0 0.0
    %4000 = vmatprep.subr.mxu0 0.0
    %4001 = vmatpush1.msra.mxu0 0.0
    %4002 = vmatprep.subr.mxu0 0.0
    %4003 = vmatpush1.msra.mxu0 0.0
    %4004 = vmatprep.subr.mxu0 0.0
    %4005 = vmatpush1.msra.mxu0 0.0
    %4006 = vmatprep.subr.mxu0 0.0
    %4007 = vmatpush1.msra.mxu0 0.0
    %4008 = vmatprep.subr.mxu0 0.0
    %4009 = vmatpush1.msra.mxu0 0.0
    %4010 = vmatprep.subr.mxu0 0.0
    %4011 = vmatpush1.msra.mxu0 0.0
    %4012 = vmatprep.subr.mxu0 0.0
    %4013 = vmatpush1.msra.mxu0 0.0
    %4014 = vmatprep.subr.mxu0 0.0
    %4015 = vmatpush1.msra.mxu0 0.0
    %4016 = vmatprep.subr.mxu0 0.0
    %4017 = vmatpush1.msra.mxu0 %v606
    %4018 = vmatprep.subr.mxu0 0.0
    %4019 = vmatpush1.msra.mxu0 %v195
    %4020 = vmatprep.subr.mxu0 0.0
    %4021 = vmatpush2.msra.mxu0 0.0
    %4022 = vmatprep.subr.mxu0 0.0
    %4023 = vmatpush2.msra.mxu0 0.0
    %4024 = vmatprep.subr.mxu0 0.0
    %4025 = vmatpush2.msra.mxu0 0.0
    %4026 = vmatprep.subr.mxu0 0.0
    %4027 = vmatpush2.msra.mxu0 0.0
    %4028 = vmatprep.subr.mxu0 0.0
    %4029 = vmatpush2.msra.mxu0 0.0
    %4030 = vmatprep.subr.mxu0 0.0
    %4031 = vmatpush2.msra.mxu0 0.0
    %4032 = vmatprep.subr.mxu0 0.0
    %4033 = vmatpush2.msra.mxu0 0.0
    %4034 = vmatprep.subr.mxu0 0.0
    %4035 = vmatpush2.msra.mxu0 0.0
    %4036 = vmatprep.subr.mxu0 0.0
    %4037 = vmatpush2.msra.mxu0 0.0
    %4038 = vmatprep.subr.mxu0 0.0
    %4039 = vmatpush2.msra.mxu0 0.0
    %4040 = vmatprep.subr.mxu0 0.0
    %4041 = vmatpush2.msra.mxu0 0.0
    %4042 = vmatprep.subr.mxu0 0.0
    %4043 = vmatpush2.msra.mxu0 0.0
    %4044 = vmatprep.subr.mxu0 0.0
    %4045 = vmatpush2.msra.mxu0 0.0
    %4046 = vmatprep.subr.mxu0 0.0
    %4047 = vmatpush2.msra.mxu0 0.0
    %4048 = vmatprep.subr.mxu0 0.0
    %4049 = vmatpush2.msra.mxu0 0.0
    %4050 = vmatprep.subr.mxu0 0.0
    %4051 = vmatpush2.msra.mxu0 0.0
    %4052 = vmatprep.mubr.f32.mxu0 0.0
    %4053 = vmatmul.mubr.f32.gmra.mxu0 %v3986
    %v4054 = vpop.f32.mrf.mxu0
    %v4055 = vadd.f32 0.0, %v4054
    %v4056 = vpop.f32.mrf.mxu0
    %4057 = vdwg.mxu0
    %v4058 = vadd.f32 %v404, %v4055
    %v4059 = vmax.f32 %v4058, 0.0
    %v4061 = vsel %vm121, %v4059, 0
    %4063 = vmatprep.subr.mxu0 0.0
    %4064 = vmatpush1.msra.mxu0 0.0
    %4065 = vmatprep.subr.mxu0 0.0
    %4066 = vmatpush1.msra.mxu0 0.0
    %4067 = vmatprep.subr.mxu0 0.0
    %4068 = vmatpush1.msra.mxu0 0.0
    %4069 = vmatprep.subr.mxu0 0.0
    %4070 = vmatpush1.msra.mxu0 0.0
    %4071 = vmatprep.subr.mxu0 0.0
    %4072 = vmatpush1.msra.mxu0 0.0
    %4073 = vmatprep.subr.mxu0 0.0
    %4074 = vmatpush1.msra.mxu0 0.0
    %4075 = vmatprep.subr.mxu0 0.0
    %4076 = vmatpush1.msra.mxu0 0.0
    %4077 = vmatprep.subr.mxu0 0.0
    %4078 = vmatpush1.msra.mxu0 0.0
    %4079 = vmatprep.subr.mxu0 0.0
    %4080 = vmatpush1.msra.mxu0 0.0
    %4081 = vmatprep.subr.mxu0 0.0
    %4082 = vmatpush1.msra.mxu0 0.0
    %4083 = vmatprep.subr.mxu0 0.0
    %4084 = vmatpush1.msra.mxu0 0.0
    %4085 = vmatprep.subr.mxu0 0.0
    %4086 = vmatpush1.msra.mxu0 0.0
    %4087 = vmatprep.subr.mxu0 %v690
    %4088 = vmatpush1.msra.mxu0 %v689
    %4089 = vmatprep.subr.mxu0 %v687
    %4090 = vmatpush1.msra.mxu0 %v686
    %4091 = vmatprep.subr.mxu0 %v684
    %4092 = vmatpush1.msra.mxu0 %v683
    %4093 = vmatprep.subr.mxu0 %v681
    %4094 = vmatpush1.msra.mxu0 %v680
    %4095 = vmatprep.subr.mxu0 0.0
    %4096 = vmatpush2.msra.mxu0 0.0
    %4097 = vmatprep.subr.mxu0 0.0
    %4098 = vmatpush2.msra.mxu0 0.0
    %4099 = vmatprep.subr.mxu0 0.0
    %4100 = vmatpush2.msra.mxu0 0.0
    %4101 = vmatprep.subr.mxu0 0.0
    %4102 = vmatpush2.msra.mxu0 0.0
    %4103 = vmatprep.subr.mxu0 0.0
    %4104 = vmatpush2.msra.mxu0 0.0
    %4105 = vmatprep.subr.mxu0 0.0
    %4106 = vmatpush2.msra.mxu0 0.0
    %4107 = vmatprep.subr.mxu0 0.0
    %4108 = vmatpush2.msra.mxu0 0.0
    %4109 = vmatprep.subr.mxu0 0.0
    %4110 = vmatpush2.msra.mxu0 0.0
    %4111 = vmatprep.subr.mxu0 0.0
    %4112 = vmatpush2.msra.mxu0 0.0
    %4113 = vmatprep.subr.mxu0 0.0
    %4114 = vmatpush2.msra.mxu0 0.0
    %4115 = vmatprep.subr.mxu0 0.0
    %4116 = vmatpush2.msra.mxu0 0.0
    %4117 = vmatprep.subr.mxu0 0.0
    %4118 = vmatpush2.msra.mxu0 0.0
    %4119 = vmatprep.subr.mxu0 0.0
    %4120 = vmatpush2.msra.mxu0 0.0
    %4121 = vmatprep.subr.mxu0 0.0
    %4122 = vmatpush2.msra.mxu0 0.0
    %4123 = vmatprep.subr.mxu0 0.0
    %4124 = vmatpush2.msra.mxu0 0.0
    %4125 = vmatprep.subr.mxu0 0.0
    %4126 = vmatpush2.msra.mxu0 0.0
    %4127 = vmatprep.mubr.f32.mxu0 0.0
    %4128 = vmatmul.mubr.f32.gmra.mxu0 %v4061
    %v4129 = vpop.f32.mrf.mxu0
    %v4130 = vadd.f32 %v696, %v4129
    %v4131 = vpop.f32.mrf.mxu0
    %v4132 = vadd.f32 %v700, %v4131
    %4133 = vdwg.mxu0
    %4134 = vmatprep.subr.mxu0 0.0
    %4135 = vmatpush1.msra.mxu0 0.0
    %4136 = vmatprep.subr.mxu0 0.0
    %4137 = vmatpush1.msra.mxu0 0.0
    %4138 = vmatprep.subr.mxu0 0.0
    %4139 = vmatpush1.msra.mxu0 0.0
    %4140 = vmatprep.subr.mxu0 0.0
    %4141 = vmatpush1.msra.mxu0 0.0
    %4142 = vmatprep.subr.mxu0 0.0
    %4143 = vmatpush1.msra.mxu0 0.0
    %4144 = vmatprep.subr.mxu0 0.0
    %4145 = vmatpush1.msra.mxu0 0.0
    %4146 = vmatprep.subr.mxu0 0.0
    %4147 = vmatpush1.msra.mxu0 0.0
    %4148 = vmatprep.subr.mxu0 0.0
    %4149 = vmatpush1.msra.mxu0 0.0
    %4150 = vmatprep.subr.mxu0 0.0
    %4151 = vmatpush1.msra.mxu0 0.0
    %4152 = vmatprep.subr.mxu0 0.0
    %4153 = vmatpush1.msra.mxu0 0.0
    %4154 = vmatprep.subr.mxu0 0.0
    %4155 = vmatpush1.msra.mxu0 0.0
    %4156 = vmatprep.subr.mxu0 0.0
    %4157 = vmatpush1.msra.mxu0 0.0
    %4158 = vmatprep.subr.mxu0 0.0
    %4159 = vmatpush1.msra.mxu0 %v691
    %4160 = vmatprep.subr.mxu0 0.0
    %4161 = vmatpush1.msra.mxu0 %v688
    %4162 = vmatprep.subr.mxu0 0.0
    %4163 = vmatpush1.msra.mxu0 %v685
    %4164 = vmatprep.subr.mxu0 0.0
    %4165 = vmatpush1.msra.mxu0 %v682
    %4166 = vmatprep.subr.mxu0 0.0
    %4167 = vmatpush2.msra.mxu0 0.0
    %4168 = vmatprep.subr.mxu0 0.0
    %4169 = vmatpush2.msra.mxu0 0.0
    %4170 = vmatprep.subr.mxu0 0.0
    %4171 = vmatpush2.msra.mxu0 0.0
    %4172 = vmatprep.subr.mxu0 0.0
    %4173 = vmatpush2.msra.mxu0 0.0
    %4174 = vmatprep.subr.mxu0 0.0
    %4175 = vmatpush2.msra.mxu0 0.0
    %4176 = vmatprep.subr.mxu0 0.0
    %4177 = vmatpush2.msra.mxu0 0.0
    %4178 = vmatprep.subr.mxu0 0.0
    %4179 = vmatpush2.msra.mxu0 0.0
    %4180 = vmatprep.subr.mxu0 0.0
    %4181 = vmatpush2.msra.mxu0 0.0
    %4182 = vmatprep.subr.mxu0 0.0
    %4183 = vmatpush2.msra.mxu0 0.0
    %4184 = vmatprep.subr.mxu0 0.0
    %4185 = vmatpush2.msra.mxu0 0.0
    %4186 = vmatprep.subr.mxu0 0.0
    %4187 = vmatpush2.msra.mxu0 0.0
    %4188 = vmatprep.subr.mxu0 0.0
    %4189 = vmatpush2.msra.mxu0 0.0
    %4190 = vmatprep.subr.mxu0 0.0
    %4191 = vmatpush2.msra.mxu0 0.0
    %4192 = vmatprep.subr.mxu0 0.0
    %4193 = vmatpush2.msra.mxu0 0.0
    %4194 = vmatprep.subr.mxu0 0.0
    %4195 = vmatpush2.msra.mxu0 0.0
    %4196 = vmatprep.subr.mxu0 0.0
    %4197 = vmatpush2.msra.mxu0 0.0
    %4198 = vmatprep.mubr.f32.mxu0 0.0
    %4199 = vmatmul.mubr.f32.gmra.mxu0 %v4061
    %v4200 = vpop.f32.mrf.mxu0
    %v4201 = vadd.f32 %v704, %v4200
    %v4202 = vpop.f32.mrf.mxu0
    %4203 = vdwg.mxu0
    %v4204 = vadd.f32 %v3888, %v856
    %v4205 = vadd.f32 %v3890, %v860
    %v4206 = vadd.f32 %v3959, %v864
    %v4207 = vadd.f32 %v4130, %v4204
    %v4208 = vxor.u32 %v4207, 2147483648
    %v4209 = vmul.f32 %v4208, 1.442695
    %v4210 = vpow.pop %v4209
    %v4211 = vadd.f32 %v4210, 1.0
    %v4212 = vrcp.pop %v4211
    %v4213 = vmul.f32 1.0, %v4212
    %v4214 = vadd.f32 %v4132, %v4205
    %v4215 = vxor.u32 %v4214, 2147483648
    %v4216 = vmul.f32 %v4215, 1.442695
    %v4217 = vpow.pop %v4216
    %v4218 = vadd.f32 %v4217, 1.0
    %v4219 = vrcp.pop %v4218
    %v4220 = vmul.f32 1.0, %v4219
    %v4221 = vmul.f32 %v4213, %v4206
    %v4222 = vadd.f32 %v4201, %v4221
    %v4223 = vtanh.pop %v4222
    %v4224 = vsub.f32 1.0, %v4220
    %v4225 = vmul.f32 %v4224, %v4223
    %v4226 = vmul.f32 %v4220, %v3817
    %v4227 = vadd.f32 %v4225, %v4226
    %v4229 = vsel %vm121, %v4227, 0
    %4231 = vmatprep.subr.mxu0 0.0
    %4232 = vmatpush1.msra.mxu0 0.0
    %4233 = vmatprep.subr.mxu0 0.0
    %4234 = vmatpush1.msra.mxu0 0.0
    %4235 = vmatprep.subr.mxu0 0.0
    %4236 = vmatpush1.msra.mxu0 0.0
    %4237 = vmatprep.subr.mxu0 0.0
    %4238 = vmatpush1.msra.mxu0 0.0
    %4239 = vmatprep.subr.mxu0 0.0
    %4240 = vmatpush1.msra.mxu0 0.0
    %4241 = vmatprep.subr.mxu0 0.0
    %4242 = vmatpush1.msra.mxu0 0.0
    %4243 = vmatprep.subr.mxu0 0.0
    %4244 = vmatpush1.msra.mxu0 0.0
    %4245 = vmatprep.subr.mxu0 0.0
    %4246 = vmatpush1.msra.mxu0 0.0
    %4247 = vmatprep.subr.mxu0 0.0
    %4248 = vmatpush1.msra.mxu0 0.0
    %4249 = vmatprep.subr.mxu0 0.0
    %4250 = vmatpush1.msra.mxu0 0.0
    %4251 = vmatprep.subr.mxu0 0.0
    %4252 = vmatpush1.msra.mxu0 0.0
    %4253 = vmatprep.subr.mxu0 0.0
    %4254 = vmatpush1.msra.mxu0 0.0
    %4255 = vmatprep.subr.mxu0 %v429
    %4256 = vmatpush1.msra.mxu0 %v428
    %4257 = vmatprep.subr.mxu0 %v425
    %4258 = vmatpush1.msra.mxu0 %v424
    %4259 = vmatprep.subr.mxu0 %v421
    %4260 = vmatpush1.msra.mxu0 %v420
    %4261 = vmatprep.subr.mxu0 %v417
    %4262 = vmatpush1.msra.mxu0 %v416
    %4263 = vmatprep.subr.mxu0 0.0
    %4264 = vmatpush2.msra.mxu0 0.0
    %4265 = vmatprep.subr.mxu0 0.0
    %4266 = vmatpush2.msra.mxu0 0.0
    %4267 = vmatprep.subr.mxu0 0.0
    %4268 = vmatpush2.msra.mxu0 0.0
    %4269 = vmatprep.subr.mxu0 0.0
    %4270 = vmatpush2.msra.mxu0 0.0
    %4271 = vmatprep.subr.mxu0 0.0
    %4272 = vmatpush2.msra.mxu0 0.0
    %4273 = vmatprep.subr.mxu0 0.0
    %4274 = vmatpush2.msra.mxu0 0.0
    %4275 = vmatprep.subr.mxu0 0.0
    %4276 = vmatpush2.msra.mxu0 0.0
    %4277 = vmatprep.subr.mxu0 0.0
    %4278 = vmatpush2.msra.mxu0 0.0
    %4279 = vmatprep.subr.mxu0 0.0
    %4280 = vmatpush2.msra.mxu0 0.0
    %4281 = vmatprep.subr.mxu0 0.0
    %4282 = vmatpush2.msra.mxu0 0.0
    %4283 = vmatprep.subr.mxu0 0.0
    %4284 = vmatpush2.msra.mxu0 0.0
    %4285 = vmatprep.subr.mxu0 0.0
    %4286 = vmatpush2.msra.mxu0 0.0
    %4287 = vmatprep.subr.mxu0 0.0
    %4288 = vmatpush2.msra.mxu0 0.0
    %4289 = vmatprep.subr.mxu0 0.0
    %4290 = vmatpush2.msra.mxu0 0.0
    %4291 = vmatprep.subr.mxu0 0.0
    %4292 = vmatpush2.msra.mxu0 0.0
    %4293 = vmatprep.subr.mxu0 0.0
    %4294 = vmatpush2.msra.mxu0 0.0
    %4295 = vmatprep.mubr.f32.mxu0 0.0
    %4296 = vmatmul.mubr.f32.gmra.mxu0 %v4229
    %v4297 = vpop.f32.mrf.mxu0
    %v4298 = vadd.f32 0.0, %v4297
    %v4299 = vpop.f32.mrf.mxu0
    %v4300 = vadd.f32 0.0, %v4299
    %4301 = vdwg.mxu0
    %4302 = vmatprep.subr.mxu0 0.0
    %4303 = vmatpush1.msra.mxu0 0.0
    %4304 = vmatprep.subr.mxu0 0.0
    %4305 = vmatpush1.msra.mxu0 0.0
    %4306 = vmatprep.subr.mxu0 0.0
    %4307 = vmatpush1.msra.mxu0 0.0
    %4308 = vmatprep.subr.mxu0 0.0
    %4309 = vmatpush1.msra.mxu0 0.0
    %4310 = vmatprep.subr.mxu0 0.0
    %4311 = vmatpush1.msra.mxu0 0.0
    %4312 = vmatprep.subr.mxu0 0.0
    %4313 = vmatpush1.msra.mxu0 0.0
    %4314 = vmatprep.subr.mxu0 0.0
    %4315 = vmatpush1.msra.mxu0 0.0
    %4316 = vmatprep.subr.mxu0 0.0
    %4317 = vmatpush1.msra.mxu0 0.0
    %4318 = vmatprep.subr.mxu0 0.0
    %4319 = vmatpush1.msra.mxu0 0.0
    %4320 = vmatprep.subr.mxu0 0.0
    %4321 = vmatpush1.msra.mxu0 0.0
    %4322 = vmatprep.subr.mxu0 0.0
    %4323 = vmatpush1.msra.mxu0 0.0
    %4324 = vmatprep.subr.mxu0 0.0
    %4325 = vmatpush1.msra.mxu0 0.0
    %4326 = vmatprep.subr.mxu0 %v431
    %4327 = vmatpush1.msra.mxu0 %v430
    %4328 = vmatprep.subr.mxu0 %v427
    %4329 = vmatpush1.msra.mxu0 %v426
    %4330 = vmatprep.subr.mxu0 %v423
    %4331 = vmatpush1.msra.mxu0 %v422
    %4332 = vmatprep.subr.mxu0 %v419
    %4333 = vmatpush1.msra.mxu0 %v418
    %4334 = vmatprep.subr.mxu0 0.0
    %4335 = vmatpush2.msra.mxu0 0.0
    %4336 = vmatprep.subr.mxu0 0.0
    %4337 = vmatpush2.msra.mxu0 0.0
    %4338 = vmatprep.subr.mxu0 0.0
    %4339 = vmatpush2.msra.mxu0 0.0
    %4340 = vmatprep.subr.mxu0 0.0
    %4341 = vmatpush2.msra.mxu0 0.0
    %4342 = vmatprep.subr.mxu0 0.0
    %4343 = vmatpush2.msra.mxu0 0.0
    %4344 = vmatprep.subr.mxu0 0.0
    %4345 = vmatpush2.msra.mxu0 0.0
    %4346 = vmatprep.subr.mxu0 0.0
    %4347 = vmatpush2.msra.mxu0 0.0
    %4348 = vmatprep.subr.mxu0 0.0
    %4349 = vmatpush2.msra.mxu0 0.0
    %4350 = vmatprep.subr.mxu0 0.0
    %4351 = vmatpush2.msra.mxu0 0.0
    %4352 = vmatprep.subr.mxu0 0.0
    %4353 = vmatpush2.msra.mxu0 0.0
    %4354 = vmatprep.subr.mxu0 0.0
    %4355 = vmatpush2.msra.mxu0 0.0
    %4356 = vmatprep.subr.mxu0 0.0
    %4357 = vmatpush2.msra.mxu0 0.0
    %4358 = vmatprep.subr.mxu0 0.0
    %4359 = vmatpush2.msra.mxu0 0.0
    %4360 = vmatprep.subr.mxu0 0.0
    %4361 = vmatpush2.msra.mxu0 0.0
    %4362 = vmatprep.subr.mxu0 0.0
    %4363 = vmatpush2.msra.mxu0 0.0
    %4364 = vmatprep.subr.mxu0 0.0
    %4365 = vmatpush2.msra.mxu0 0.0
    %4366 = vmatprep.mubr.f32.mxu0 0.0
    %4367 = vmatmul.mubr.f32.gmra.mxu0 %v4229
    %v4368 = vpop.f32.mrf.mxu0
    %v4369 = vadd.f32 0.0, %v4368
    %v4370 = vpop.f32.mrf.mxu0
    %v4371 = vadd.f32 0.0, %v4370
    %4372 = vdwg.mxu0
    %v4374 = vrot.slane %v4371, 7
    %4375 = vrot.lane.b32.xlu0 %v4374, 32
    %v4376 = vpop.permute.xlu0 %4375
    %v4378 = vadd.f32 %v414, %v4376
    %v4379 = vsel %vm1043, %v4378, -inf
    %4380 = vmax.xlane.f32.xlu0 %v4379
    %v4381 = vpop.xlane.xlu0 %4380
    %v4382 = vsub.f32 %v4378, %v4381
    %v4383 = vmul.f32 %v4382, 1.442695
    %v4384 = vpow.pop %v4383
    %4386 = vrot.lane.b32.xlu0 %v4384, 96
    %v4387 = vpop.permute.xlu0 %4386
    %v4389 = vsel %vm1054, %v4387, 0.0
    %4390 = vadd.xlane.f32.xlu0 %v4389
    %v4391 = vpop.xlane.xlu0 %4390
    %v4392 = vrcp.pop %v4391
    %v4393 = vmul.f32 %v4384, %v4392
    %v4395 = vrot.slane %v4393, 1
    %4396 = vrot.lane.b32.xlu0 %v4395, 96
    %v4397 = vpop.permute.xlu0 %4396
    %v4398 = vsel %vm602, %v4397, 0
    %4400 = vmatprep.subr.mxu0 0.0
    %4401 = vmatpush1.msra.mxu0 0.0
    %4402 = vmatprep.subr.mxu0 0.0
    %4403 = vmatpush1.msra.mxu0 0.0
    %4404 = vmatprep.subr.mxu0 0.0
    %4405 = vmatpush1.msra.mxu0 0.0
    %4406 = vmatprep.subr.mxu0 0.0
    %4407 = vmatpush1.msra.mxu0 0.0
    %4408 = vmatprep.subr.mxu0 0.0
    %4409 = vmatpush1.msra.mxu0 0.0
    %4410 = vmatprep.subr.mxu0 0.0
    %4411 = vmatpush1.msra.mxu0 0.0
    %4412 = vmatprep.subr.mxu0 0.0
    %4413 = vmatpush1.msra.mxu0 0.0
    %4414 = vmatprep.subr.mxu0 0.0
    %4415 = vmatpush1.msra.mxu0 0.0
    %4416 = vmatprep.subr.mxu0 0.0
    %4417 = vmatpush1.msra.mxu0 0.0
    %4418 = vmatprep.subr.mxu0 0.0
    %4419 = vmatpush1.msra.mxu0 0.0
    %4420 = vmatprep.subr.mxu0 0.0
    %4421 = vmatpush1.msra.mxu0 0.0
    %4422 = vmatprep.subr.mxu0 0.0
    %4423 = vmatpush1.msra.mxu0 0.0
    %4424 = vmatprep.subr.mxu0 0.0
    %4425 = vmatpush1.msra.mxu0 0.0
    %4426 = vmatprep.subr.mxu0 0.0
    %4427 = vmatpush1.msra.mxu0 0.0
    %4428 = vmatprep.subr.mxu0 0.0
    %4429 = vmatpush1.msra.mxu0 %v606
    %4430 = vmatprep.subr.mxu0 0.0
    %4431 = vmatpush1.msra.mxu0 %v195
    %4432 = vmatprep.subr.mxu0 0.0
    %4433 = vmatpush2.msra.mxu0 0.0
    %4434 = vmatprep.subr.mxu0 0.0
    %4435 = vmatpush2.msra.mxu0 0.0
    %4436 = vmatprep.subr.mxu0 0.0
    %4437 = vmatpush2.msra.mxu0 0.0
    %4438 = vmatprep.subr.mxu0 0.0
    %4439 = vmatpush2.msra.mxu0 0.0
    %4440 = vmatprep.subr.mxu0 0.0
    %4441 = vmatpush2.msra.mxu0 0.0
    %4442 = vmatprep.subr.mxu0 0.0
    %4443 = vmatpush2.msra.mxu0 0.0
    %4444 = vmatprep.subr.mxu0 0.0
    %4445 = vmatpush2.msra.mxu0 0.0
    %4446 = vmatprep.subr.mxu0 0.0
    %4447 = vmatpush2.msra.mxu0 0.0
    %4448 = vmatprep.subr.mxu0 0.0
    %4449 = vmatpush2.msra.mxu0 0.0
    %4450 = vmatprep.subr.mxu0 0.0
    %4451 = vmatpush2.msra.mxu0 0.0
    %4452 = vmatprep.subr.mxu0 0.0
    %4453 = vmatpush2.msra.mxu0 0.0
    %4454 = vmatprep.subr.mxu0 0.0
    %4455 = vmatpush2.msra.mxu0 0.0
    %4456 = vmatprep.subr.mxu0 0.0
    %4457 = vmatpush2.msra.mxu0 0.0
    %4458 = vmatprep.subr.mxu0 0.0
    %4459 = vmatpush2.msra.mxu0 0.0
    %4460 = vmatprep.subr.mxu0 0.0
    %4461 = vmatpush2.msra.mxu0 0.0
    %4462 = vmatprep.subr.mxu0 0.0
    %4463 = vmatpush2.msra.mxu0 0.0
    %4464 = vmatprep.mubr.f32.mxu0 0.0
    %4465 = vmatmul.mubr.f32.gmra.mxu0 %v4398
    %v4466 = vpop.f32.mrf.mxu0
    %v4467 = vadd.f32 0.0, %v4466
    %v4468 = vpop.f32.mrf.mxu0
    %4469 = vdwg.mxu0
    %v4471 = vrot.slane %v4467, 7
    %v4473 = vadd.f32 %v404, %v4471
    %v4474 = vmax.f32 %v4473, 0.0
    %v4476 = vrot.slane %v4474, 1
    %v4477 = vsel %vm121, %v4476, 0
    %4479 = vmatprep.subr.mxu0 0.0
    %4480 = vmatpush1.msra.mxu0 0.0
    %4481 = vmatprep.subr.mxu0 0.0
    %4482 = vmatpush1.msra.mxu0 0.0
    %4483 = vmatprep.subr.mxu0 0.0
    %4484 = vmatpush1.msra.mxu0 0.0
    %4485 = vmatprep.subr.mxu0 0.0
    %4486 = vmatpush1.msra.mxu0 0.0
    %4487 = vmatprep.subr.mxu0 0.0
    %4488 = vmatpush1.msra.mxu0 0.0
    %4489 = vmatprep.subr.mxu0 0.0
    %4490 = vmatpush1.msra.mxu0 0.0
    %4491 = vmatprep.subr.mxu0 0.0
    %4492 = vmatpush1.msra.mxu0 0.0
    %4493 = vmatprep.subr.mxu0 0.0
    %4494 = vmatpush1.msra.mxu0 0.0
    %4495 = vmatprep.subr.mxu0 0.0
    %4496 = vmatpush1.msra.mxu0 0.0
    %4497 = vmatprep.subr.mxu0 0.0
    %4498 = vmatpush1.msra.mxu0 0.0
    %4499 = vmatprep.subr.mxu0 0.0
    %4500 = vmatpush1.msra.mxu0 0.0
    %4501 = vmatprep.subr.mxu0 0.0
    %4502 = vmatpush1.msra.mxu0 0.0
    %4503 = vmatprep.subr.mxu0 %v690
    %4504 = vmatpush1.msra.mxu0 %v689
    %4505 = vmatprep.subr.mxu0 %v687
    %4506 = vmatpush1.msra.mxu0 %v686
    %4507 = vmatprep.subr.mxu0 %v684
    %4508 = vmatpush1.msra.mxu0 %v683
    %4509 = vmatprep.subr.mxu0 %v681
    %4510 = vmatpush1.msra.mxu0 %v680
    %4511 = vmatprep.subr.mxu0 0.0
    %4512 = vmatpush2.msra.mxu0 0.0
    %4513 = vmatprep.subr.mxu0 0.0
    %4514 = vmatpush2.msra.mxu0 0.0
    %4515 = vmatprep.subr.mxu0 0.0
    %4516 = vmatpush2.msra.mxu0 0.0
    %4517 = vmatprep.subr.mxu0 0.0
    %4518 = vmatpush2.msra.mxu0 0.0
    %4519 = vmatprep.subr.mxu0 0.0
    %4520 = vmatpush2.msra.mxu0 0.0
    %4521 = vmatprep.subr.mxu0 0.0
    %4522 = vmatpush2.msra.mxu0 0.0
    %4523 = vmatprep.subr.mxu0 0.0
    %4524 = vmatpush2.msra.mxu0 0.0
    %4525 = vmatprep.subr.mxu0 0.0
    %4526 = vmatpush2.msra.mxu0 0.0
    %4527 = vmatprep.subr.mxu0 0.0
    %4528 = vmatpush2.msra.mxu0 0.0
    %4529 = vmatprep.subr.mxu0 0.0
    %4530 = vmatpush2.msra.mxu0 0.0
    %4531 = vmatprep.subr.mxu0 0.0
    %4532 = vmatpush2.msra.mxu0 0.0
    %4533 = vmatprep.subr.mxu0 0.0
    %4534 = vmatpush2.msra.mxu0 0.0
    %4535 = vmatprep.subr.mxu0 0.0
    %4536 = vmatpush2.msra.mxu0 0.0
    %4537 = vmatprep.subr.mxu0 0.0
    %4538 = vmatpush2.msra.mxu0 0.0
    %4539 = vmatprep.subr.mxu0 0.0
    %4540 = vmatpush2.msra.mxu0 0.0
    %4541 = vmatprep.subr.mxu0 0.0
    %4542 = vmatpush2.msra.mxu0 0.0
    %4543 = vmatprep.mubr.f32.mxu0 0.0
    %4544 = vmatmul.mubr.f32.gmra.mxu0 %v4477
    %v4545 = vpop.f32.mrf.mxu0
    %v4546 = vadd.f32 %v696, %v4545
    %v4547 = vpop.f32.mrf.mxu0
    %v4548 = vadd.f32 %v700, %v4547
    %4549 = vdwg.mxu0
    %4550 = vmatprep.subr.mxu0 0.0
    %4551 = vmatpush1.msra.mxu0 0.0
    %4552 = vmatprep.subr.mxu0 0.0
    %4553 = vmatpush1.msra.mxu0 0.0
    %4554 = vmatprep.subr.mxu0 0.0
    %4555 = vmatpush1.msra.mxu0 0.0
    %4556 = vmatprep.subr.mxu0 0.0
    %4557 = vmatpush1.msra.mxu0 0.0
    %4558 = vmatprep.subr.mxu0 0.0
    %4559 = vmatpush1.msra.mxu0 0.0
    %4560 = vmatprep.subr.mxu0 0.0
    %4561 = vmatpush1.msra.mxu0 0.0
    %4562 = vmatprep.subr.mxu0 0.0
    %4563 = vmatpush1.msra.mxu0 0.0
    %4564 = vmatprep.subr.mxu0 0.0
    %4565 = vmatpush1.msra.mxu0 0.0
    %4566 = vmatprep.subr.mxu0 0.0
    %4567 = vmatpush1.msra.mxu0 0.0
    %4568 = vmatprep.subr.mxu0 0.0
    %4569 = vmatpush1.msra.mxu0 0.0
    %4570 = vmatprep.subr.mxu0 0.0
    %4571 = vmatpush1.msra.mxu0 0.0
    %4572 = vmatprep.subr.mxu0 0.0
    %4573 = vmatpush1.msra.mxu0 0.0
    %4574 = vmatprep.subr.mxu0 0.0
    %4575 = vmatpush1.msra.mxu0 %v691
    %4576 = vmatprep.subr.mxu0 0.0
    %4577 = vmatpush1.msra.mxu0 %v688
    %4578 = vmatprep.subr.mxu0 0.0
    %4579 = vmatpush1.msra.mxu0 %v685
    %4580 = vmatprep.subr.mxu0 0.0
    %4581 = vmatpush1.msra.mxu0 %v682
    %4582 = vmatprep.subr.mxu0 0.0
    %4583 = vmatpush2.msra.mxu0 0.0
    %4584 = vmatprep.subr.mxu0 0.0
    %4585 = vmatpush2.msra.mxu0 0.0
    %4586 = vmatprep.subr.mxu0 0.0
    %4587 = vmatpush2.msra.mxu0 0.0
    %4588 = vmatprep.subr.mxu0 0.0
    %4589 = vmatpush2.msra.mxu0 0.0
    %4590 = vmatprep.subr.mxu0 0.0
    %4591 = vmatpush2.msra.mxu0 0.0
    %4592 = vmatprep.subr.mxu0 0.0
    %4593 = vmatpush2.msra.mxu0 0.0
    %4594 = vmatprep.subr.mxu0 0.0
    %4595 = vmatpush2.msra.mxu0 0.0
    %4596 = vmatprep.subr.mxu0 0.0
    %4597 = vmatpush2.msra.mxu0 0.0
    %4598 = vmatprep.subr.mxu0 0.0
    %4599 = vmatpush2.msra.mxu0 0.0
    %4600 = vmatprep.subr.mxu0 0.0
    %4601 = vmatpush2.msra.mxu0 0.0
    %4602 = vmatprep.subr.mxu0 0.0
    %4603 = vmatpush2.msra.mxu0 0.0
    %4604 = vmatprep.subr.mxu0 0.0
    %4605 = vmatpush2.msra.mxu0 0.0
    %4606 = vmatprep.subr.mxu0 0.0
    %4607 = vmatpush2.msra.mxu0 0.0
    %4608 = vmatprep.subr.mxu0 0.0
    %4609 = vmatpush2.msra.mxu0 0.0
    %4610 = vmatprep.subr.mxu0 0.0
    %4611 = vmatpush2.msra.mxu0 0.0
    %4612 = vmatprep.subr.mxu0 0.0
    %4613 = vmatpush2.msra.mxu0 0.0
    %4614 = vmatprep.mubr.f32.mxu0 0.0
    %4615 = vmatmul.mubr.f32.gmra.mxu0 %v4477
    %v4616 = vpop.f32.mrf.mxu0
    %v4617 = vadd.f32 %v704, %v4616
    %v4618 = vpop.f32.mrf.mxu0
    %4619 = vdwg.mxu0
    %v4620 = vadd.f32 %v4298, %v856
    %v4621 = vadd.f32 %v4300, %v860
    %v4622 = vadd.f32 %v4369, %v864
    %v4623 = vadd.f32 %v4546, %v4620
    %v4624 = vxor.u32 %v4623, 2147483648
    %v4625 = vmul.f32 %v4624, 1.442695
    %v4626 = vpow.pop %v4625
    %v4627 = vadd.f32 %v4626, 1.0
    %v4628 = vrcp.pop %v4627
    %v4629 = vmul.f32 1.0, %v4628
    %v4630 = vadd.f32 %v4548, %v4621
    %v4631 = vxor.u32 %v4630, 2147483648
    %v4632 = vmul.f32 %v4631, 1.442695
    %v4633 = vpow.pop %v4632
    %v4634 = vadd.f32 %v4633, 1.0
    %v4635 = vrcp.pop %v4634
    %v4636 = vmul.f32 1.0, %v4635
    %v4637 = vmul.f32 %v4629, %v4622
    %v4638 = vadd.f32 %v4617, %v4637
    %v4639 = vtanh.pop %v4638
    %v4640 = vsub.f32 1.0, %v4636
    %v4641 = vmul.f32 %v4640, %v4639
    %v4642 = vmul.f32 %v4636, %v4227
    %v4643 = vadd.f32 %v4641, %v4642
    %v4644 = vrot.slane %v1309, 7
    %v4646 = vrot.slane %v1727, 6
    %v4648 = vrot.slane %v2145, 5
    %v4650 = vrot.slane %v2563, 4
    %v4652 = vrot.slane %v2981, 3
    %v4654 = vrot.slane %v3399, 2
    %v4656 = vrot.slane %v3817, 1
    %v4659 = vrot.slane %v4643, 7
    %v4661 = vsel %vm297, %v891, %v4644
    %v4662 = vsel %vm299, %v4661, %v4646
    %v4663 = vsel %vm301, %v4662, %v4648
    %v4664 = vsel %vm303, %v4663, %v4650
    %v4665 = vsel %vm305, %v4664, %v4652
    %v4666 = vsel %vm307, %v4665, %v4654
    %v4667 = vsel %vm309, %v4666, %v4656
    %v4668 = vsel %vm297, %v4227, %v4659
    %v4669 = vsel %vm297, %v598, %v1059
    %v4670 = vsel %vm299, %v4669, %v1477
    %v4671 = vsel %vm301, %v4670, %v1895
    %v4672 = vsel %vm303, %v4671, %v2313
    %v4673 = vsel %vm305, %v4672, %v2731
    %v4674 = vsel %vm307, %v4673, %v3149
    %v4675 = vsel %vm309, %v4674, %v3567
    %v4676 = vsel %vm297, %v3982, %v4393
    %v4677 = vld [vmem:[%s8] sm:$0xff]
    %v4678 = vld [vmem:[%s8 + $0x8] sm:$0xff]
    %v4679 = vld [vmem:[%s8 + $0x10] sm:$0xff]
    %v4680 = vld [vmem:[%s8 + $0x18] sm:$0xff]
    %v4682 = vlaneseq
    %v4683 = vshrl.u32 %v4682, 7
    %v4684 = vsub.s32 0, %v4683
    %v4685 = vrot.slane %v114, %v4684
    %v4688 = vsel %vm121, %v4667, 0
    %v4691 = vsel %vm121, %v4668, 0
    %4693 = vmatprep.subr.mxu0 0.0
    %4694 = vmatpush1.msra.mxu0 0.0
    %4695 = vmatprep.subr.mxu0 0.0
    %4696 = vmatpush1.msra.mxu0 0.0
    %4697 = vmatprep.subr.mxu0 0.0
    %4698 = vmatpush1.msra.mxu0 0.0
    %4699 = vmatprep.subr.mxu0 0.0
    %4700 = vmatpush1.msra.mxu0 0.0
    %4701 = vmatprep.subr.mxu0 0.0
    %4702 = vmatpush1.msra.mxu0 0.0
    %4703 = vmatprep.subr.mxu0 0.0
    %4704 = vmatpush1.msra.mxu0 0.0
    %4705 = vmatprep.subr.mxu0 0.0
    %4706 = vmatpush1.msra.mxu0 0.0
    %4707 = vmatprep.subr.mxu0 0.0
    %4708 = vmatpush1.msra.mxu0 0.0
    %4709 = vmatprep.subr.mxu0 0.0
    %4710 = vmatpush1.msra.mxu0 0.0
    %4711 = vmatprep.subr.mxu0 0.0
    %4712 = vmatpush1.msra.mxu0 0.0
    %4713 = vmatprep.subr.mxu0 0.0
    %4714 = vmatpush1.msra.mxu0 0.0
    %4715 = vmatprep.subr.mxu0 0.0
    %4716 = vmatpush1.msra.mxu0 0.0
    %4717 = vmatprep.subr.mxu0 0.0
    %4718 = vmatpush1.msra.mxu0 %v4680
    %4719 = vmatprep.subr.mxu0 0.0
    %4720 = vmatpush1.msra.mxu0 %v4679
    %4721 = vmatprep.subr.mxu0 0.0
    %4722 = vmatpush1.msra.mxu0 %v4678
    %4723 = vmatprep.subr.mxu0 0.0
    %4724 = vmatpush1.msra.mxu0 %v4677
    %4725 = vmatprep.subr.mxu0 0.0
    %4726 = vmatpush2.msra.mxu0 0.0
    %4727 = vmatprep.subr.mxu0 0.0
    %4728 = vmatpush2.msra.mxu0 0.0
    %4729 = vmatprep.subr.mxu0 0.0
    %4730 = vmatpush2.msra.mxu0 0.0
    %4731 = vmatprep.subr.mxu0 0.0
    %4732 = vmatpush2.msra.mxu0 0.0
    %4733 = vmatprep.subr.mxu0 0.0
    %4734 = vmatpush2.msra.mxu0 0.0
    %4735 = vmatprep.subr.mxu0 0.0
    %4736 = vmatpush2.msra.mxu0 0.0
    %4737 = vmatprep.subr.mxu0 0.0
    %4738 = vmatpush2.msra.mxu0 0.0
    %4739 = vmatprep.subr.mxu0 0.0
    %4740 = vmatpush2.msra.mxu0 0.0
    %4741 = vmatprep.subr.mxu0 0.0
    %4742 = vmatpush2.msra.mxu0 0.0
    %4743 = vmatprep.subr.mxu0 0.0
    %4744 = vmatpush2.msra.mxu0 0.0
    %4745 = vmatprep.subr.mxu0 0.0
    %4746 = vmatpush2.msra.mxu0 0.0
    %4747 = vmatprep.subr.mxu0 0.0
    %4748 = vmatpush2.msra.mxu0 0.0
    %4749 = vmatprep.subr.mxu0 0.0
    %4750 = vmatpush2.msra.mxu0 0.0
    %4751 = vmatprep.subr.mxu0 0.0
    %4752 = vmatpush2.msra.mxu0 0.0
    %4753 = vmatprep.subr.mxu0 0.0
    %4754 = vmatpush2.msra.mxu0 0.0
    %4755 = vmatprep.subr.mxu0 0.0
    %4756 = vmatpush2.msra.mxu0 0.0
    %4757 = vmatprep.mubr.f32.mxu0 0.0
    %4758 = vmatmul.mubr.f32.gmra.mxu0 %v4688
    %v4759 = vpop.f32.mrf.mxu0
    %v4760 = vadd.f32 %v4685, %v4759
    %v4761 = vpop.f32.mrf.mxu0
    %4762 = vmatprep.mubr.f32.mxu0 0.0
    %4763 = vmatmul.mubr.f32.gmra.mxu0 %v4691
    %v4764 = vpop.f32.mrf.mxu0
    %v4765 = vadd.f32 %v4685, %v4764
    %v4766 = vpop.f32.mrf.mxu0
    %4767 = vdwg.mxu0
    %vm4768 = vcmask 162816
    %v4769 = vsel %vm4768, %v4760, -inf
    %4770 = vmax.xlane.f32.xlu0 %v4769
    %v4771 = vpop.xlane.xlu0 %4770
    %vm4772 = vcmask 156672
    %v4773 = vsel %vm4772, %v4765, -inf
    %4774 = vmax.xlane.f32.xlu0 %v4773
    %v4775 = vpop.xlane.xlu0 %4774
    %v4776 = vsub.f32 %v4760, %v4771
    %v4777 = vsub.f32 %v4765, %v4775
    %v4778 = vmul.f32 %v4776, 1.442695
    %v4779 = vpow.pop %v4778
    %v4780 = vmul.f32 %v4777, 1.442695
    %v4781 = vpow.pop %v4780
    %v4782 = vsel %vm4768, %v4779, 0.0
    %4783 = vadd.xlane.f32.xlu0 %v4782
    %v4784 = vpop.xlane.xlu0 %4783
    %v4785 = vsel %vm4772, %v4781, 0.0
    %4786 = vadd.xlane.f32.xlu0 %v4785
    %v4787 = vpop.xlane.xlu0 %4786
    %v4788 = vlog2.pop %v4784
    %v4789 = vmul.f32 %v4788, 0.6931472
    %v4790 = vlog2.pop %v4787
    %v4791 = vmul.f32 %v4790, 0.6931472
    %v4792 = vadd.f32 %v4789, %v4771
    %v4793 = vadd.f32 %v4791, %v4775
    %v4794 = vsub.f32 %v4760, %v4792
    %v4795 = vsub.f32 %v4765, %v4793
    %4796 = vrot.lane.b32.xlu0 %v4667, 20
    %v4797 = vpop.permute.xlu0 %4796
    %4798 = vrot.lane.b32.xlu0 %v4668, 20
    %v4799 = vpop.permute.xlu0 %4798
    %4804 = vrot.lane.b32.xlu0 %v4675, 20
    %v4805 = vpop.permute.xlu0 %4804
    %4806 = vrot.lane.b32.xlu0 %v4676, 20
    %v4807 = vpop.permute.xlu0 %4806
    %v4810 = vsel %vm4768, %v4794, %v4797
    %v4811 = vsel %vm4768, %v4795, %v4799
    %vm4812 = vcmask 424960
    %v4813 = vsel %vm4812, %v4810, %v4805
    %v4814 = vsel %vm4812, %v4811, %v4807
    %vm4815 = vcmask 506880
    %v4816 = vsel %vm4815, %v4813, 0.0
    %v4817 = vsel %vm4815, %v4814, 0.0
    %4818 = vst [vmem:[%s10] sm:$0xff] %v4816
    %4819 = vst [vmem:[%s10 + $0x8] sm:$0x3] %v4817
    // Predicated region
    $region66: #{attn_decoder_forward.1} parent=1 // pred_check
      _
    $region67: #{attn_decoder_forward.1} parent=1 // pred_check_branch
      %4821 = sbr.rel (0) target = $region69
    $region68: #{attn_decoder_forward.1} parent=1 // pred_region
      _
    $region69: #{attn_decoder_forward.1} parent=1 // pred_fallthru
      _
    // Predicated region
    $region70: #{attn_decoder_forward.1} parent=1 // pred_check
      _
    $region71: #{attn_decoder_forward.1} parent=1 // pred_check_branch
      %4823 = sbr.rel (0) target = $region73
    $region72: #{attn_decoder_forward.1} parent=1 // pred_region
      _
    $region73: #{attn_decoder_forward.1} parent=1 // pred_fallthru
      _
    %4824 = vsyncpa [#allocation3], 1
    %4825 = vsyncpa [#allocation7], 1
    %4826 = vsyncpa [#allocation10], 1
    %4827 = vsyncpa [#allocation4], 1

</llo_original>
